<compile_context>
chip_gen: v7x
topology: tpu7x:2x2x1
jax: 0.10.0
libtpu: 0.0.40
codegen_flags: <defaults>
</compile_context>

<pallas_src>
import math

import jax
import jax.numpy as jnp
from jax import lax
from jax.experimental import pallas as pl
from jax.experimental.pallas import tpu as pltpu

# ----------------------------- model config ---------------------------------
D_MODEL = 32
N_HEADS = 4
D_K = 8
D_V = 8
D_FF = 64
N_LAYERS = 2
TGT_VOCAB = 16
SRC_VOCAB = 16
LN_EPS = 1e-5  # PyTorch nn.LayerNorm default

HK = N_HEADS * D_K          # 32
HV = N_HEADS * D_V          # 32
QKV_W = 2 * HK + HV         # 96
KV_W = HK + HV              # 64


# ============================ in-kernel helpers ===============================
def _layernorm(y, gamma, beta):
    """LayerNorm over the last dim (biased variance, eps inside sqrt)."""
    mean = jnp.mean(y, axis=-1, keepdims=True)
    c = y - mean
    var = jnp.mean(c * c, axis=-1, keepdims=True)
    return c * lax.rsqrt(var + LN_EPS) * gamma + beta


def _attn_core(x_res, q, k, v, mask, wfc, gamma, beta, B, Lq, Lk):
    """Scaled-dot-product multi-head attention + output proj + residual + LN.

    x_res: [B*Lq, D]   residual input
    q:     [B*Lq, H*dk]
    k:     [B*Lk, H*dk]
    v:     [B*Lk, H*dv]
    mask:  [B, Lq, Lk]  float, 1.0 == masked
    wfc:   [H*dv, D]
    Returns (y [B*Lq, D], attn [H, B, Lq, Lk]).
    """
    q3 = q.reshape(B, Lq, HK)
    k3 = k.reshape(B, Lk, HK)
    v3 = v.reshape(B, Lk, HV)
    inv_sqrt_dk = 1.0 / math.sqrt(D_K)

    out_acc = jnp.zeros((B * Lq, D_MODEL), jnp.float32)
    attn_heads = []
    for h in range(N_HEADS):  # static unroll, N_HEADS == 4
        qh = q3[:, :, h * D_K:(h + 1) * D_K]          # [B, Lq, dk]
        kh = k3[:, :, h * D_K:(h + 1) * D_K]          # [B, Lk, dk]
        vh = v3[:, :, h * D_V:(h + 1) * D_V]          # [B, Lk, dv]
        # batched over B, contract on dk (no explicit transpose needed)
        s = jnp.einsum('bqd,bkd->bqk', qh, kh,
                       preferred_element_type=jnp.float32) * inv_sqrt_dk
        s = jnp.where(mask > 0.0, jnp.float32(-1e9), s)
        m = jnp.max(s, axis=-1, keepdims=True)
        e = jnp.exp(s - m)
        denom = jnp.sum(e, axis=-1, keepdims=True)
        attn = e * pl.reciprocal(denom, approx=True)   # EUP reciprocal
        attn_heads.append(attn)
        ctx = jnp.einsum('bqk,bkd->bqd', attn, vh,
                         preferred_element_type=jnp.float32)   # [B, Lq, dv]
        # fold fc into per-head accumulation (avoids lane concatenate)
        out_acc = out_acc + jnp.dot(ctx.reshape(B * Lq, D_V),
                                    wfc[h * D_V:(h + 1) * D_V, :],
                                    preferred_element_type=jnp.float32)

    y = _layernorm(out_acc + x_res, gamma, beta)       # residual + LayerNorm
    attn_all = jnp.stack(attn_heads, axis=0)           # [H, B, Lq, Lk], 1 store
    return y, attn_all


# ======================= fused decoder-stack kernel ===========================
def _decoder_kernel(x0_ref, enc_ref, mask_self_ref, mask_enc_ref,
                    w_qkv_s_ref, wfc_s_ref, wq_e_ref, wkv_e_ref, wfc_e_ref,
                    w1_ref, w2_ref, ln_ref,
                    out_ref, self_attn_ref, enc_attn_ref,
                    x_scr):
    layer = pl.program_id(0)

    B, Lq, D = out_ref.shape
    Lk = enc_ref.shape[1]
    Nq = B * Lq
    Nk = B * Lk

    # initialize the resident activation carry at the first layer
    @pl.when(layer == 0)
    def _():
        x_scr[...] = x0_ref[...].reshape(Nq, D)

    x = x_scr[...]                                     # [B*Lq, D]
    enc = enc_ref[...].reshape(Nk, D)                  # [B*Lk, D]
    mask_self = mask_self_ref[...]                     # [B, Lq, Lq]
    mask_enc = mask_enc_ref[...]                       # [B, Lq, Lk]

    ln = ln_ref[0]                                     # [6, D]
    g1, b1 = ln[0:1, :], ln[1:2, :]
    g2, b2 = ln[2:3, :], ln[3:4, :]
    g3, b3 = ln[4:5, :], ln[5:6, :]

    # ------------------ self attention (fused QKV projection) ----------------
    qkv = jnp.dot(x, w_qkv_s_ref[0], preferred_element_type=jnp.float32)  # [Nq, 96]
    q = qkv[:, :HK]
    k = qkv[:, HK:2 * HK]
    v = qkv[:, 2 * HK:]
    x, attn_s = _attn_core(x, q, k, v, mask_self, wfc_s_ref[0],
                           g1, b1, B, Lq, Lq)
    self_attn_ref[0] = attn_s                          # one store per layer

    # ------------------ cross attention (fused KV projection) ----------------
    q = jnp.dot(x, wq_e_ref[0], preferred_element_type=jnp.float32)       # [Nq, 32]
    kv = jnp.dot(enc, wkv_e_ref[0], preferred_element_type=jnp.float32)   # [Nk, 64]
    k = kv[:, :HK]
    v = kv[:, HK:]
    x, attn_e = _attn_core(x, q, k, v, mask_enc, wfc_e_ref[0],
                           g2, b2, B, Lq, Lk)
    enc_attn_ref[0] = attn_e

    # ------------------------ position-wise FFN ------------------------------
    h = jnp.maximum(jnp.dot(x, w1_ref[0], preferred_element_type=jnp.float32), 0.0)
    o = jnp.dot(h, w2_ref[0], preferred_element_type=jnp.float32)
    x = _layernorm(o + x, g3, b3)

    # carry for next layer + (resident) output block
    x_scr[...] = x
    out_ref[...] = x.reshape(B, Lq, D)


def decoder_stack_pallas(x0, enc_out, mask_self, mask_enc, stacked):
    """Run the whole decoder stack in a single fused Pallas kernel."""
    B, Lq, D = x0.shape
    Lk = enc_out.shape[1]
    n_layers = stacked["w_qkv_self"].shape[0]

    out_shape = (
        jax.ShapeDtypeStruct((B, Lq, D), jnp.float32),
        jax.ShapeDtypeStruct((n_layers, N_HEADS, B, Lq, Lq), jnp.float32),
        jax.ShapeDtypeStruct((n_layers, N_HEADS, B, Lq, Lk), jnp.float32),
    )
    grid_spec = pltpu.PrefetchScalarGridSpec(
        num_scalar_prefetch=0,
        grid=(n_layers,),
        in_specs=[
            pl.BlockSpec((B, Lq, D), lambda l: (0, 0, 0)),       # x0
            pl.BlockSpec((B, Lk, D), lambda l: (0, 0, 0)),       # enc_outputs
            pl.BlockSpec((B, Lq, Lq), lambda l: (0, 0, 0)),      # self mask
            pl.BlockSpec((B, Lq, Lk), lambda l: (0, 0, 0)),      # cross mask
            pl.BlockSpec((1, D, QKV_W), lambda l: (l, 0, 0)),    # W_qkv (self)
            pl.BlockSpec((1, HV, D), lambda l: (l, 0, 0)),       # W_fc  (self)
            pl.BlockSpec((1, D, HK), lambda l: (l, 0, 0)),       # W_q   (cross)
            pl.BlockSpec((1, D, KV_W), lambda l: (l, 0, 0)),     # W_kv  (cross)
            pl.BlockSpec((1, HV, D), lambda l: (l, 0, 0)),       # W_fc  (cross)
            pl.BlockSpec((1, D, D_FF), lambda l: (l, 0, 0)),     # FFN W1
            pl.BlockSpec((1, D_FF, D), lambda l: (l, 0, 0)),     # FFN W2
            pl.BlockSpec((1, 6, D), lambda l: (l, 0, 0)),        # LN params
        ],
        out_specs=[
            pl.BlockSpec((B, Lq, D), lambda l: (0, 0, 0)),
            pl.BlockSpec((1, N_HEADS, B, Lq, Lq), lambda l: (l, 0, 0, 0, 0)),
            pl.BlockSpec((1, N_HEADS, B, Lq, Lk), lambda l: (l, 0, 0, 0, 0)),
        ],
        scratch_shapes=[pltpu.VMEM((B * Lq, D), jnp.float32)],   # activation carry
    )

    dec_out, self_attn, enc_attn = pl.pallas_call(
        _decoder_kernel,
        out_shape=out_shape,
        grid_spec=grid_spec,
        compiler_params=pltpu.CompilerParams(
            dimension_semantics=("arbitrary",)),       # layers are sequential
    )(x0, enc_out, mask_self, mask_enc,
      stacked["w_qkv_self"], stacked["wfc_self"],
      stacked["wq_enc"], stacked["wkv_enc"], stacked["wfc_enc"],
      stacked["w1"], stacked["w2"], stacked["ln"])

    # kernel stores attn as [layer, H, B, Lq, Lk]; convert to per-layer [B, H, Lq, Lk]
    self_list = [jnp.transpose(self_attn[l], (1, 0, 2, 3)) for l in range(n_layers)]
    enc_list = [jnp.transpose(enc_attn[l], (1, 0, 2, 3)) for l in range(n_layers)]
    return dec_out, self_list, enc_list


# ============================= plain-JAX glue =================================
def positional_encoding_table(max_len, d_model):
    position = jnp.arange(max_len, dtype=jnp.float32)[:, None]
    div_term = jnp.exp(jnp.arange(0, d_model, 2, dtype=jnp.float32)
                       * (-math.log(10000.0) / d_model))
    pe = jnp.zeros((max_len, d_model), dtype=jnp.float32)
    pe = pe.at[:, 0::2].set(jnp.sin(position * div_term))
    pe = pe.at[:, 1::2].set(jnp.cos(position * div_term))
    return pe                                           # [max_len, d_model]


def get_attn_pad_mask(seq_q, seq_k):
    # float mask [B, len_q, len_k]; 1.0 where k-token == 0 (pad)
    B, len_q = seq_q.shape
    len_k = seq_k.shape[1]
    pad = (seq_k == 0).astype(jnp.float32)[:, None, :]  # [B,1,len_k]
    return jnp.broadcast_to(pad, (B, len_q, len_k))


def get_attn_subsequence_mask(seq):
    B, L = seq.shape
    sub = jnp.triu(jnp.ones((L, L), dtype=jnp.float32), k=1)
    return jnp.broadcast_to(sub[None], (B, L, L))


def init_params(key):
    params = {"layers": []}
    key, k_emb = jax.random.split(key)
    # TODO(synk): SDEmbedding is not defined in the reference; approximate it
    # with a standard target-token embedding table of shape [tgt_vocab, d_model].
    params["tgt_emb"] = 0.02 * jax.random.normal(k_emb, (TGT_VOCAB, D_MODEL), jnp.float32)
    for _ in range(N_LAYERS):
        layer = {}
        for name in ("self_attn", "enc_attn"):
            key, k1, k2, k3, k4 = jax.random.split(key, 5)
            layer[name] = {
                "wq": 0.05 * jax.random.normal(k1, (D_MODEL, HK), jnp.float32),
                "wk": 0.05 * jax.random.normal(k2, (D_MODEL, HK), jnp.float32),
                "wv": 0.05 * jax.random.normal(k3, (D_MODEL, HV), jnp.float32),
                "wfc": 0.05 * jax.random.normal(k4, (HV, D_MODEL), jnp.float32),
                "gamma": jnp.ones((D_MODEL,), jnp.float32),
                "beta": jnp.zeros((D_MODEL,), jnp.float32),
            }
        key, k1, k2 = jax.random.split(key, 3)
        layer["ffn"] = {
            "w1": 0.05 * jax.random.normal(k1, (D_MODEL, D_FF), jnp.float32),
            "w2": 0.05 * jax.random.normal(k2, (D_FF, D_MODEL), jnp.float32),
            "gamma": jnp.ones((D_MODEL,), jnp.float32),
            "beta": jnp.zeros((D_MODEL,), jnp.float32),
        }
        params["layers"].append(layer)
    return params


def stack_layer_params(params):
    """Stack per-layer weights with a leading layer dim (and fuse QKV / KV / LN)."""
    layers = params["layers"]

    def st(fn):
        return jnp.stack([fn(ly) for ly in layers], axis=0)

    return {
        "w_qkv_self": st(lambda ly: jnp.concatenate(
            [ly["self_attn"]["wq"], ly["self_attn"]["wk"], ly["self_attn"]["wv"]],
            axis=1)),                                           # [L, D, 96]
        "wfc_self": st(lambda ly: ly["self_attn"]["wfc"]),      # [L, 32, D]
        "wq_enc": st(lambda ly: ly["enc_attn"]["wq"]),          # [L, D, 32]
        "wkv_enc": st(lambda ly: jnp.concatenate(
            [ly["enc_attn"]["wk"], ly["enc_attn"]["wv"]], axis=1)),  # [L, D, 64]
        "wfc_enc": st(lambda ly: ly["enc_attn"]["wfc"]),        # [L, 32, D]
        "w1": st(lambda ly: ly["ffn"]["w1"]),                   # [L, D, 64]
        "w2": st(lambda ly: ly["ffn"]["w2"]),                   # [L, 64, D]
        "ln": st(lambda ly: jnp.stack([
            ly["self_attn"]["gamma"], ly["self_attn"]["beta"],
            ly["enc_attn"]["gamma"], ly["enc_attn"]["beta"],
            ly["ffn"]["gamma"], ly["ffn"]["beta"]], axis=0)),   # [L, 6, D]
    }


def decoder_forward(params, dec_tokens, enc_tokens, enc_outputs):
    """
    dec_tokens:  [B, tgt_len] int32   (== dec_inputs['token'])
    enc_tokens:  [B, src_len] int32   (== enc_inputs['token'])
    enc_outputs: [B, src_len, d_model] float32
    """
    B, tgt_len = dec_tokens.shape

    # target embedding + positional encoding (dropout is identity in eval mode)
    dec_out = jnp.take(params["tgt_emb"], dec_tokens, axis=0)          # [B, L, D]
    pe = positional_encoding_table(tgt_len, D_MODEL)                   # [L, D]
    dec_out = dec_out + pe[None, :, :]

    # attention masks (float, 1.0 == masked)
    self_pad = get_attn_pad_mask(dec_tokens, dec_tokens)
    self_sub = get_attn_subsequence_mask(dec_tokens)
    dec_self_attn_mask = ((self_pad + self_sub) > 0).astype(jnp.float32)
    dec_enc_attn_mask = get_attn_pad_mask(dec_tokens, enc_tokens)

    stacked = stack_layer_params(params)
    dec_out, dec_self_attns, dec_enc_attns = decoder_stack_pallas(
        dec_out, enc_outputs, dec_self_attn_mask, dec_enc_attn_mask, stacked)
    return dec_out, dec_self_attns, dec_enc_attns


# ================================== main ======================================
if __name__ == "__main__":
    key = jax.random.PRNGKey(0)
    k_param, k_dec, k_enc, k_encout = jax.random.split(key, 4)

    B, TGT_LEN, SRC_LEN = 2, 8, 8
    params = init_params(k_param)

    dec_tokens = jax.random.randint(k_dec, (B, TGT_LEN), 0, TGT_VOCAB, dtype=jnp.int32)
    enc_tokens = jax.random.randint(k_enc, (B, SRC_LEN), 0, SRC_VOCAB, dtype=jnp.int32)
    # make sure there is some padding (token id 0) to exercise the pad mask
    dec_tokens = dec_tokens.at[:, -1].set(0)
    enc_tokens = enc_tokens.at[:, -1].set(0)
    enc_outputs = jax.random.normal(k_encout, (B, SRC_LEN, D_MODEL), jnp.float32)

    dec_out, self_attns, enc_attns = decoder_forward(params, dec_tokens, enc_tokens, enc_outputs)
    jax.block_until_ready(dec_out)
    jax.block_until_ready(self_attns)
    jax.block_until_ready(enc_attns)

    assert dec_out.shape == (B, TGT_LEN, D_MODEL)
    assert len(self_attns) == N_LAYERS and len(enc_attns) == N_LAYERS
    assert self_attns[0].shape == (B, N_HEADS, TGT_LEN, TGT_LEN)
    assert enc_attns[0].shape == (B, N_HEADS, TGT_LEN, SRC_LEN)
    assert bool(jnp.all(jnp.isfinite(dec_out)))
    print("KERNEL_OK")
</pallas_src>

<mosaic_0001>
module attributes {stable_mosaic.version = 11 : i64} {
  func.func @_decoder_kernel(%arg0: i32, %arg1: memref<2x8x32xf32, #tpu.memory_space<vmem>>, %arg2: memref<2x8x32xf32, #tpu.memory_space<vmem>>, %arg3: memref<2x8x8xf32, #tpu.memory_space<vmem>>, %arg4: memref<2x8x8xf32, #tpu.memory_space<vmem>>, %arg5: memref<1x32x96xf32, #tpu.memory_space<vmem>>, %arg6: memref<1x32x32xf32, #tpu.memory_space<vmem>>, %arg7: memref<1x32x32xf32, #tpu.memory_space<vmem>>, %arg8: memref<1x32x64xf32, #tpu.memory_space<vmem>>, %arg9: memref<1x32x32xf32, #tpu.memory_space<vmem>>, %arg10: memref<1x32x64xf32, #tpu.memory_space<vmem>>, %arg11: memref<1x64x32xf32, #tpu.memory_space<vmem>>, %arg12: memref<1x6x32xf32, #tpu.memory_space<vmem>>, %arg13: memref<2x8x32xf32, #tpu.memory_space<vmem>>, %arg14: memref<1x4x2x8x8xf32, #tpu.memory_space<vmem>>, %arg15: memref<1x4x2x8x8xf32, #tpu.memory_space<vmem>>, %arg16: memref<16x32xf32, #tpu.memory_space<vmem>>) attributes {dimension_semantics = [#tpu.dimension_semantics<arbitrary>], iteration_bounds = array<i64: 2>, scalar_prefetch = 0 : i64, scratch_operands = 1 : i64, tpu.core_type = #tpu.core_type<tc>, window_params = [{pipeline_mode = #tpu.pipeline_mode<synchronous>, transform_indices = @transform_0, window_bounds = array<i64: 2, 8, 32>}, {pipeline_mode = #tpu.pipeline_mode<synchronous>, transform_indices = @transform_1, window_bounds = array<i64: 2, 8, 32>}, {pipeline_mode = #tpu.pipeline_mode<synchronous>, transform_indices = @transform_2, window_bounds = array<i64: 2, 8, 8>}, {pipeline_mode = #tpu.pipeline_mode<synchronous>, transform_indices = @transform_3, window_bounds = array<i64: 2, 8, 8>}, {transform_indices = @transform_4, window_bounds = array<i64: 1, 32, 96>}, {transform_indices = @transform_5, window_bounds = array<i64: 1, 32, 32>}, {transform_indices = @transform_6, window_bounds = array<i64: 1, 32, 32>}, {transform_indices = @transform_7, window_bounds = array<i64: 1, 32, 64>}, {transform_indices = @transform_8, window_bounds = array<i64: 1, 32, 32>}, {transform_indices = @transform_9, window_bounds = array<i64: 1, 32, 64>}, {transform_indices = @transform_10, window_bounds = array<i64: 1, 64, 32>}, {transform_indices = @transform_11, window_bounds = array<i64: 1, 6, 32>}, {pipeline_mode = #tpu.pipeline_mode<synchronous>, transform_indices = @transform_12, window_bounds = array<i64: 2, 8, 32>}, {transform_indices = @transform_13, window_bounds = array<i64: 1, 4, 2, 8, 8>}, {transform_indices = @transform_14, window_bounds = array<i64: 1, 4, 2, 8, 8>}]} {
    %c0_i32 = arith.constant 0 : i32
    %0 = arith.cmpi eq, %arg0, %c0_i32 : i32
    %1 = arith.extui %0 : i1 to i32
    %c0_i32_0 = arith.constant 0 : i32
    %2 = arith.cmpi ne, %1, %c0_i32_0 : i32
    scf.if %2 {
      %c0_136 = arith.constant 0 : index
      %c0_137 = arith.constant 0 : index
      %c0_138 = arith.constant 0 : index
      %332 = vector.load %arg1[%c0_136, %c0_137, %c0_138] : memref<2x8x32xf32, #tpu.memory_space<vmem>>, vector<2x8x32xf32>
      %333 = vector.shape_cast %332 : vector<2x8x32xf32> to vector<16x32xf32>
      %c0_139 = arith.constant 0 : index
      %c0_140 = arith.constant 0 : index
      %334 = vector.load %arg16[%c0_139, %c0_140] : memref<16x32xf32, #tpu.memory_space<vmem>>, vector<16x32xf32>
      tpu.vector_store %arg16[%c0_139, %c0_140], %333 {strides = array<i32>} : memref<16x32xf32, #tpu.memory_space<vmem>>, vector<16x32xf32>,
    } else {
    }
    %c0 = arith.constant 0 : index
    %c0_1 = arith.constant 0 : index
    %3 = vector.load %arg16[%c0, %c0_1] : memref<16x32xf32, #tpu.memory_space<vmem>>, vector<16x32xf32>
    %c0_2 = arith.constant 0 : index
    %c0_3 = arith.constant 0 : index
    %c0_4 = arith.constant 0 : index
    %4 = vector.load %arg2[%c0_2, %c0_3, %c0_4] : memref<2x8x32xf32, #tpu.memory_space<vmem>>, vector<2x8x32xf32>
    %5 = vector.shape_cast %4 : vector<2x8x32xf32> to vector<16x32xf32>
    %c0_5 = arith.constant 0 : index
    %c0_6 = arith.constant 0 : index
    %c0_7 = arith.constant 0 : index
    %6 = vector.load %arg3[%c0_5, %c0_6, %c0_7] : memref<2x8x8xf32, #tpu.memory_space<vmem>>, vector<2x8x8xf32>
    %c0_8 = arith.constant 0 : index
    %c0_9 = arith.constant 0 : index
    %c0_10 = arith.constant 0 : index
    %7 = vector.load %arg4[%c0_8, %c0_9, %c0_10] : memref<2x8x8xf32, #tpu.memory_space<vmem>>, vector<2x8x8xf32>
    %c0_11 = arith.constant 0 : index
    %c0_12 = arith.constant 0 : index
    %c0_13 = arith.constant 0 : index
    %8 = vector.load %arg12[%c0_11, %c0_12, %c0_13] : memref<1x6x32xf32, #tpu.memory_space<vmem>>, vector<1x6x32xf32>
    %9 = vector.shape_cast %8 : vector<1x6x32xf32> to vector<6x32xf32>
    %10 = vector.extract_strided_slice %9 {offsets = [0, 0], sizes = [1, 32], strides = [1, 1]} : vector<6x32xf32> to vector<1x32xf32>
    %11 = vector.extract_strided_slice %9 {offsets = [1, 0], sizes = [1, 32], strides = [1, 1]} : vector<6x32xf32> to vector<1x32xf32>
    %12 = vector.extract_strided_slice %9 {offsets = [2, 0], sizes = [1, 32], strides = [1, 1]} : vector<6x32xf32> to vector<1x32xf32>
    %13 = vector.extract_strided_slice %9 {offsets = [3, 0], sizes = [1, 32], strides = [1, 1]} : vector<6x32xf32> to vector<1x32xf32>
    %14 = vector.extract_strided_slice %9 {offsets = [4, 0], sizes = [1, 32], strides = [1, 1]} : vector<6x32xf32> to vector<1x32xf32>
    %15 = vector.extract_strided_slice %9 {offsets = [5, 0], sizes = [1, 32], strides = [1, 1]} : vector<6x32xf32> to vector<1x32xf32>
    %c0_14 = arith.constant 0 : index
    %c0_15 = arith.constant 0 : index
    %c0_16 = arith.constant 0 : index
    %16 = vector.load %arg5[%c0_14, %c0_15, %c0_16] : memref<1x32x96xf32, #tpu.memory_space<vmem>>, vector<1x32x96xf32>
    %17 = vector.shape_cast %16 : vector<1x32x96xf32> to vector<32x96xf32>
    %cst = arith.constant dense<0.000000e+00> : vector<16x96xf32>
    %18 = tpu.matmul %3, %17, %cst {dimension_numbers = #tpu.dot_dimension_numbers<[1], [0], [0], [1], [0, 0, 1, 1], [], []>} : vector<16x32xf32>, vector<32x96xf32>, vector<16x96xf32> -> vector<16x96xf32>
    %19 = vector.extract_strided_slice %18 {offsets = [0, 0], sizes = [16, 32], strides = [1, 1]} : vector<16x96xf32> to vector<16x32xf32>
    %20 = vector.extract_strided_slice %18 {offsets = [0, 32], sizes = [16, 32], strides = [1, 1]} : vector<16x96xf32> to vector<16x32xf32>
    %21 = vector.extract_strided_slice %18 {offsets = [0, 64], sizes = [16, 32], strides = [1, 1]} : vector<16x96xf32> to vector<16x32xf32>
    %c0_17 = arith.constant 0 : index
    %c0_18 = arith.constant 0 : index
    %c0_19 = arith.constant 0 : index
    %22 = vector.load %arg6[%c0_17, %c0_18, %c0_19] : memref<1x32x32xf32, #tpu.memory_space<vmem>>, vector<1x32x32xf32>
    %23 = vector.shape_cast %22 : vector<1x32x32xf32> to vector<32x32xf32>
    %24 = vector.shape_cast %19 : vector<16x32xf32> to vector<2x8x32xf32>
    %25 = vector.shape_cast %20 : vector<16x32xf32> to vector<2x8x32xf32>
    %26 = vector.shape_cast %21 : vector<16x32xf32> to vector<2x8x32xf32>
    %cst_20 = arith.constant 0.000000e+00 : f32
    %27 = vector.broadcast %cst_20 : f32 to vector<16x32xf32>
    %28 = vector.extract_strided_slice %24 {offsets = [0, 0, 0], sizes = [2, 8, 8], strides = [1, 1, 1]} : vector<2x8x32xf32> to vector<2x8x8xf32>
    %29 = vector.extract_strided_slice %25 {offsets = [0, 0, 0], sizes = [2, 8, 8], strides = [1, 1, 1]} : vector<2x8x32xf32> to vector<2x8x8xf32>
    %30 = vector.extract_strided_slice %26 {offsets = [0, 0, 0], sizes = [2, 8, 8], strides = [1, 1, 1]} : vector<2x8x32xf32> to vector<2x8x8xf32>
    "tpu.trace_start"() <{level = 10 : i32, message = "bqd,bkd->bqk"}> : () -> ()
    %cst_21 = arith.constant dense<0.000000e+00> : vector<2x8x8xf32>
    %31 = tpu.matmul %28, %29, %cst_21 {dimension_numbers = #tpu.dot_dimension_numbers<[2], [2], [1], [1], [0, 0, 0, 1, 1, 1], [0], [0]>} : vector<2x8x8xf32>, vector<2x8x8xf32>, vector<2x8x8xf32> -> vector<2x8x8xf32>
    "tpu.trace_stop"() : () -> ()
    %cst_22 = arith.constant 0.353553385 : f32
    %32 = vector.broadcast %cst_22 : f32 to vector<2x8x8xf32>
    %33 = arith.mulf %31, %32 : vector<2x8x8xf32>
    %cst_23 = arith.constant 0.000000e+00 : f32
    %34 = vector.broadcast %cst_23 : f32 to vector<2x8x8xf32>
    %35 = arith.cmpf ogt, %6, %34 : vector<2x8x8xf32>
    %cst_24 = arith.constant -1.000000e+09 : f32
    %36 = vector.broadcast %cst_24 : f32 to vector<2x8x8xf32>
    %37 = arith.select %35, %36, %33 : vector<2x8x8xi1>, vector<2x8x8xf32>
    %cst_25 = arith.constant dense<0xFF800000> : vector<2x8xf32>
    %38 = vector.multi_reduction <maximumf>, %37, %cst_25 [2] : vector<2x8x8xf32> to vector<2x8xf32>
    %39 = vector.shape_cast %38 : vector<2x8xf32> to vector<2x8x1xf32>
    %40 = vector.broadcast %39 : vector<2x8x1xf32> to vector<2x8x8xf32>
    %41 = arith.subf %37, %40 : vector<2x8x8xf32>
    %42 = math.exp %41 : vector<2x8x8xf32>
    %cst_26 = arith.constant dense<0.000000e+00> : vector<2x8xf32>
    %43 = vector.multi_reduction <add>, %42, %cst_26 [2] : vector<2x8x8xf32> to vector<2x8xf32>
    %44 = vector.shape_cast %43 : vector<2x8xf32> to vector<2x8x1xf32>
    %45 = tpu.reciprocal %44 {approx = true} : vector<2x8x1xf32> -> vector<2x8x1xf32>
    %46 = vector.broadcast %45 : vector<2x8x1xf32> to vector<2x8x8xf32>
    %47 = arith.mulf %42, %46 : vector<2x8x8xf32>
    "tpu.trace_start"() <{level = 10 : i32, message = "bqk,bkd->bqd"}> : () -> ()
    %cst_27 = arith.constant dense<0.000000e+00> : vector<2x8x8xf32>
    %48 = tpu.matmul %47, %30, %cst_27 {dimension_numbers = #tpu.dot_dimension_numbers<[2], [1], [1], [2], [0, 0, 0, 1, 1, 2], [0], [0]>} : vector<2x8x8xf32>, vector<2x8x8xf32>, vector<2x8x8xf32> -> vector<2x8x8xf32>
    "tpu.trace_stop"() : () -> ()
    %49 = vector.shape_cast %48 : vector<2x8x8xf32> to vector<16x8xf32>
    %50 = vector.extract_strided_slice %23 {offsets = [0, 0], sizes = [8, 32], strides = [1, 1]} : vector<32x32xf32> to vector<8x32xf32>
    %cst_28 = arith.constant dense<0.000000e+00> : vector<16x32xf32>
    %51 = tpu.matmul %49, %50, %cst_28 {dimension_numbers = #tpu.dot_dimension_numbers<[1], [0], [0], [1], [0, 0, 1, 1], [], []>} : vector<16x8xf32>, vector<8x32xf32>, vector<16x32xf32> -> vector<16x32xf32>
    %52 = arith.addf %27, %51 : vector<16x32xf32>
    %53 = vector.extract_strided_slice %24 {offsets = [0, 0, 8], sizes = [2, 8, 8], strides = [1, 1, 1]} : vector<2x8x32xf32> to vector<2x8x8xf32>
    %54 = vector.extract_strided_slice %25 {offsets = [0, 0, 8], sizes = [2, 8, 8], strides = [1, 1, 1]} : vector<2x8x32xf32> to vector<2x8x8xf32>
    %55 = vector.extract_strided_slice %26 {offsets = [0, 0, 8], sizes = [2, 8, 8], strides = [1, 1, 1]} : vector<2x8x32xf32> to vector<2x8x8xf32>
    "tpu.trace_start"() <{level = 10 : i32, message = "bqd,bkd->bqk"}> : () -> ()
    %cst_29 = arith.constant dense<0.000000e+00> : vector<2x8x8xf32>
    %56 = tpu.matmul %53, %54, %cst_29 {dimension_numbers = #tpu.dot_dimension_numbers<[2], [2], [1], [1], [0, 0, 0, 1, 1, 1], [0], [0]>} : vector<2x8x8xf32>, vector<2x8x8xf32>, vector<2x8x8xf32> -> vector<2x8x8xf32>
    "tpu.trace_stop"() : () -> ()
    %cst_30 = arith.constant 0.353553385 : f32
    %57 = vector.broadcast %cst_30 : f32 to vector<2x8x8xf32>
    %58 = arith.mulf %56, %57 : vector<2x8x8xf32>
    %cst_31 = arith.constant 0.000000e+00 : f32
    %59 = vector.broadcast %cst_31 : f32 to vector<2x8x8xf32>
    %60 = arith.cmpf ogt, %6, %59 : vector<2x8x8xf32>
    %cst_32 = arith.constant -1.000000e+09 : f32
    %61 = vector.broadcast %cst_32 : f32 to vector<2x8x8xf32>
    %62 = arith.select %60, %61, %58 : vector<2x8x8xi1>, vector<2x8x8xf32>
    %cst_33 = arith.constant dense<0xFF800000> : vector<2x8xf32>
    %63 = vector.multi_reduction <maximumf>, %62, %cst_33 [2] : vector<2x8x8xf32> to vector<2x8xf32>
    %64 = vector.shape_cast %63 : vector<2x8xf32> to vector<2x8x1xf32>
    %65 = vector.broadcast %64 : vector<2x8x1xf32> to vector<2x8x8xf32>
    %66 = arith.subf %62, %65 : vector<2x8x8xf32>
    %67 = math.exp %66 : vector<2x8x8xf32>
    %cst_34 = arith.constant dense<0.000000e+00> : vector<2x8xf32>
    %68 = vector.multi_reduction <add>, %67, %cst_34 [2] : vector<2x8x8xf32> to vector<2x8xf32>
    %69 = vector.shape_cast %68 : vector<2x8xf32> to vector<2x8x1xf32>
    %70 = tpu.reciprocal %69 {approx = true} : vector<2x8x1xf32> -> vector<2x8x1xf32>
    %71 = vector.broadcast %70 : vector<2x8x1xf32> to vector<2x8x8xf32>
    %72 = arith.mulf %67, %71 : vector<2x8x8xf32>
    "tpu.trace_start"() <{level = 10 : i32, message = "bqk,bkd->bqd"}> : () -> ()
    %cst_35 = arith.constant dense<0.000000e+00> : vector<2x8x8xf32>
    %73 = tpu.matmul %72, %55, %cst_35 {dimension_numbers = #tpu.dot_dimension_numbers<[2], [1], [1], [2], [0, 0, 0, 1, 1, 2], [0], [0]>} : vector<2x8x8xf32>, vector<2x8x8xf32>, vector<2x8x8xf32> -> vector<2x8x8xf32>
    "tpu.trace_stop"() : () -> ()
    %74 = vector.shape_cast %73 : vector<2x8x8xf32> to vector<16x8xf32>
    %75 = vector.extract_strided_slice %23 {offsets = [8, 0], sizes = [8, 32], strides = [1, 1]} : vector<32x32xf32> to vector<8x32xf32>
    %cst_36 = arith.constant dense<0.000000e+00> : vector<16x32xf32>
    %76 = tpu.matmul %74, %75, %cst_36 {dimension_numbers = #tpu.dot_dimension_numbers<[1], [0], [0], [1], [0, 0, 1, 1], [], []>} : vector<16x8xf32>, vector<8x32xf32>, vector<16x32xf32> -> vector<16x32xf32>
    %77 = arith.addf %52, %76 : vector<16x32xf32>
    %78 = vector.extract_strided_slice %24 {offsets = [0, 0, 16], sizes = [2, 8, 8], strides = [1, 1, 1]} : vector<2x8x32xf32> to vector<2x8x8xf32>
    %79 = vector.extract_strided_slice %25 {offsets = [0, 0, 16], sizes = [2, 8, 8], strides = [1, 1, 1]} : vector<2x8x32xf32> to vector<2x8x8xf32>
    %80 = vector.extract_strided_slice %26 {offsets = [0, 0, 16], sizes = [2, 8, 8], strides = [1, 1, 1]} : vector<2x8x32xf32> to vector<2x8x8xf32>
    "tpu.trace_start"() <{level = 10 : i32, message = "bqd,bkd->bqk"}> : () -> ()
    %cst_37 = arith.constant dense<0.000000e+00> : vector<2x8x8xf32>
    %81 = tpu.matmul %78, %79, %cst_37 {dimension_numbers = #tpu.dot_dimension_numbers<[2], [2], [1], [1], [0, 0, 0, 1, 1, 1], [0], [0]>} : vector<2x8x8xf32>, vector<2x8x8xf32>, vector<2x8x8xf32> -> vector<2x8x8xf32>
    "tpu.trace_stop"() : () -> ()
    %cst_38 = arith.constant 0.353553385 : f32
    %82 = vector.broadcast %cst_38 : f32 to vector<2x8x8xf32>
    %83 = arith.mulf %81, %82 : vector<2x8x8xf32>
    %cst_39 = arith.constant 0.000000e+00 : f32
    %84 = vector.broadcast %cst_39 : f32 to vector<2x8x8xf32>
    %85 = arith.cmpf ogt, %6, %84 : vector<2x8x8xf32>
    %cst_40 = arith.constant -1.000000e+09 : f32
    %86 = vector.broadcast %cst_40 : f32 to vector<2x8x8xf32>
    %87 = arith.select %85, %86, %83 : vector<2x8x8xi1>, vector<2x8x8xf32>
    %cst_41 = arith.constant dense<0xFF800000> : vector<2x8xf32>
    %88 = vector.multi_reduction <maximumf>, %87, %cst_41 [2] : vector<2x8x8xf32> to vector<2x8xf32>
    %89 = vector.shape_cast %88 : vector<2x8xf32> to vector<2x8x1xf32>
    %90 = vector.broadcast %89 : vector<2x8x1xf32> to vector<2x8x8xf32>
    %91 = arith.subf %87, %90 : vector<2x8x8xf32>
    %92 = math.exp %91 : vector<2x8x8xf32>
    %cst_42 = arith.constant dense<0.000000e+00> : vector<2x8xf32>
    %93 = vector.multi_reduction <add>, %92, %cst_42 [2] : vector<2x8x8xf32> to vector<2x8xf32>
    %94 = vector.shape_cast %93 : vector<2x8xf32> to vector<2x8x1xf32>
    %95 = tpu.reciprocal %94 {approx = true} : vector<2x8x1xf32> -> vector<2x8x1xf32>
    %96 = vector.broadcast %95 : vector<2x8x1xf32> to vector<2x8x8xf32>
    %97 = arith.mulf %92, %96 : vector<2x8x8xf32>
    "tpu.trace_start"() <{level = 10 : i32, message = "bqk,bkd->bqd"}> : () -> ()
    %cst_43 = arith.constant dense<0.000000e+00> : vector<2x8x8xf32>
    %98 = tpu.matmul %97, %80, %cst_43 {dimension_numbers = #tpu.dot_dimension_numbers<[2], [1], [1], [2], [0, 0, 0, 1, 1, 2], [0], [0]>} : vector<2x8x8xf32>, vector<2x8x8xf32>, vector<2x8x8xf32> -> vector<2x8x8xf32>
    "tpu.trace_stop"() : () -> ()
    %99 = vector.shape_cast %98 : vector<2x8x8xf32> to vector<16x8xf32>
    %100 = vector.extract_strided_slice %23 {offsets = [16, 0], sizes = [8, 32], strides = [1, 1]} : vector<32x32xf32> to vector<8x32xf32>
    %cst_44 = arith.constant dense<0.000000e+00> : vector<16x32xf32>
    %101 = tpu.matmul %99, %100, %cst_44 {dimension_numbers = #tpu.dot_dimension_numbers<[1], [0], [0], [1], [0, 0, 1, 1], [], []>} : vector<16x8xf32>, vector<8x32xf32>, vector<16x32xf32> -> vector<16x32xf32>
    %102 = arith.addf %77, %101 : vector<16x32xf32>
    %103 = vector.extract_strided_slice %24 {offsets = [0, 0, 24], sizes = [2, 8, 8], strides = [1, 1, 1]} : vector<2x8x32xf32> to vector<2x8x8xf32>
    %104 = vector.extract_strided_slice %25 {offsets = [0, 0, 24], sizes = [2, 8, 8], strides = [1, 1, 1]} : vector<2x8x32xf32> to vector<2x8x8xf32>
    %105 = vector.extract_strided_slice %26 {offsets = [0, 0, 24], sizes = [2, 8, 8], strides = [1, 1, 1]} : vector<2x8x32xf32> to vector<2x8x8xf32>
    "tpu.trace_start"() <{level = 10 : i32, message = "bqd,bkd->bqk"}> : () -> ()
    %cst_45 = arith.constant dense<0.000000e+00> : vector<2x8x8xf32>
    %106 = tpu.matmul %103, %104, %cst_45 {dimension_numbers = #tpu.dot_dimension_numbers<[2], [2], [1], [1], [0, 0, 0, 1, 1, 1], [0], [0]>} : vector<2x8x8xf32>, vector<2x8x8xf32>, vector<2x8x8xf32> -> vector<2x8x8xf32>
    "tpu.trace_stop"() : () -> ()
    %cst_46 = arith.constant 0.353553385 : f32
    %107 = vector.broadcast %cst_46 : f32 to vector<2x8x8xf32>
    %108 = arith.mulf %106, %107 : vector<2x8x8xf32>
    %cst_47 = arith.constant 0.000000e+00 : f32
    %109 = vector.broadcast %cst_47 : f32 to vector<2x8x8xf32>
    %110 = arith.cmpf ogt, %6, %109 : vector<2x8x8xf32>
    %cst_48 = arith.constant -1.000000e+09 : f32
    %111 = vector.broadcast %cst_48 : f32 to vector<2x8x8xf32>
    %112 = arith.select %110, %111, %108 : vector<2x8x8xi1>, vector<2x8x8xf32>
    %cst_49 = arith.constant dense<0xFF800000> : vector<2x8xf32>
    %113 = vector.multi_reduction <maximumf>, %112, %cst_49 [2] : vector<2x8x8xf32> to vector<2x8xf32>
    %114 = vector.shape_cast %113 : vector<2x8xf32> to vector<2x8x1xf32>
    %115 = vector.broadcast %114 : vector<2x8x1xf32> to vector<2x8x8xf32>
    %116 = arith.subf %112, %115 : vector<2x8x8xf32>
    %117 = math.exp %116 : vector<2x8x8xf32>
    %cst_50 = arith.constant dense<0.000000e+00> : vector<2x8xf32>
    %118 = vector.multi_reduction <add>, %117, %cst_50 [2] : vector<2x8x8xf32> to vector<2x8xf32>
    %119 = vector.shape_cast %118 : vector<2x8xf32> to vector<2x8x1xf32>
    %120 = tpu.reciprocal %119 {approx = true} : vector<2x8x1xf32> -> vector<2x8x1xf32>
    %121 = vector.broadcast %120 : vector<2x8x1xf32> to vector<2x8x8xf32>
    %122 = arith.mulf %117, %121 : vector<2x8x8xf32>
    "tpu.trace_start"() <{level = 10 : i32, message = "bqk,bkd->bqd"}> : () -> ()
    %cst_51 = arith.constant dense<0.000000e+00> : vector<2x8x8xf32>
    %123 = tpu.matmul %122, %105, %cst_51 {dimension_numbers = #tpu.dot_dimension_numbers<[2], [1], [1], [2], [0, 0, 0, 1, 1, 2], [0], [0]>} : vector<2x8x8xf32>, vector<2x8x8xf32>, vector<2x8x8xf32> -> vector<2x8x8xf32>
    "tpu.trace_stop"() : () -> ()
    %124 = vector.shape_cast %123 : vector<2x8x8xf32> to vector<16x8xf32>
    %125 = vector.extract_strided_slice %23 {offsets = [24, 0], sizes = [8, 32], strides = [1, 1]} : vector<32x32xf32> to vector<8x32xf32>
    %cst_52 = arith.constant dense<0.000000e+00> : vector<16x32xf32>
    %126 = tpu.matmul %124, %125, %cst_52 {dimension_numbers = #tpu.dot_dimension_numbers<[1], [0], [0], [1], [0, 0, 1, 1], [], []>} : vector<16x8xf32>, vector<8x32xf32>, vector<16x32xf32> -> vector<16x32xf32>
    %127 = arith.addf %102, %126 : vector<16x32xf32>
    %128 = arith.addf %127, %3 : vector<16x32xf32>
    %cst_53 = arith.constant dense<0.000000e+00> : vector<16xf32>
    %129 = vector.multi_reduction <add>, %128, %cst_53 [1] : vector<16x32xf32> to vector<16xf32>
    %130 = vector.shape_cast %129 : vector<16xf32> to vector<16x1xf32>
    %cst_54 = arith.constant 3.200000e+01 : f32
    %131 = vector.broadcast %cst_54 : f32 to vector<16x1xf32>
    %132 = arith.divf %130, %131 : vector<16x1xf32>
    %133 = vector.broadcast %132 : vector<16x1xf32> to vector<16x32xf32>
    %134 = arith.subf %128, %133 : vector<16x32xf32>
    %135 = arith.mulf %134, %134 : vector<16x32xf32>
    %cst_55 = arith.constant dense<0.000000e+00> : vector<16xf32>
    %136 = vector.multi_reduction <add>, %135, %cst_55 [1] : vector<16x32xf32> to vector<16xf32>
    %137 = vector.shape_cast %136 : vector<16xf32> to vector<16x1xf32>
    %cst_56 = arith.constant 3.200000e+01 : f32
    %138 = vector.broadcast %cst_56 : f32 to vector<16x1xf32>
    %139 = arith.divf %137, %138 : vector<16x1xf32>
    %cst_57 = arith.constant 9.99999974E-6 : f32
    %140 = vector.broadcast %cst_57 : f32 to vector<16x1xf32>
    %141 = arith.addf %139, %140 : vector<16x1xf32>
    %142 = math.rsqrt %141 : vector<16x1xf32>
    %143 = vector.broadcast %142 : vector<16x1xf32> to vector<16x32xf32>
    %144 = arith.mulf %134, %143 : vector<16x32xf32>
    %145 = vector.broadcast %10 : vector<1x32xf32> to vector<16x32xf32>
    %146 = arith.mulf %144, %145 : vector<16x32xf32>
    %147 = vector.broadcast %11 : vector<1x32xf32> to vector<16x32xf32>
    %148 = arith.addf %146, %147 : vector<16x32xf32>
    %149 = vector.shape_cast %47 : vector<2x8x8xf32> to vector<1x2x8x8xf32>
    %150 = vector.shape_cast %72 : vector<2x8x8xf32> to vector<1x2x8x8xf32>
    %151 = vector.shape_cast %97 : vector<2x8x8xf32> to vector<1x2x8x8xf32>
    %152 = vector.shape_cast %122 : vector<2x8x8xf32> to vector<1x2x8x8xf32>
    %153 = tpu.concatenate %149, %150, %151, %152 in 0 : vector<1x2x8x8xf32>, vector<1x2x8x8xf32>, vector<1x2x8x8xf32>, vector<1x2x8x8xf32> -> vector<4x2x8x8xf32>
    %c0_58 = arith.constant 0 : index
    %c0_59 = arith.constant 0 : index
    %c0_60 = arith.constant 0 : index
    %c0_61 = arith.constant 0 : index
    %c0_62 = arith.constant 0 : index
    %154 = vector.load %arg14[%c0_58, %c0_59, %c0_60, %c0_61, %c0_62] : memref<1x4x2x8x8xf32, #tpu.memory_space<vmem>>, vector<1x4x2x8x8xf32>
    %155 = vector.shape_cast %154 : vector<1x4x2x8x8xf32> to vector<4x2x8x8xf32>
    %156 = vector.shape_cast %153 : vector<4x2x8x8xf32> to vector<1x4x2x8x8xf32>
    tpu.vector_store %arg14[%c0_58, %c0_59, %c0_60, %c0_61, %c0_62], %156 {strides = array<i32>} : memref<1x4x2x8x8xf32, #tpu.memory_space<vmem>>, vector<1x4x2x8x8xf32>,
    %c0_63 = arith.constant 0 : index
    %c0_64 = arith.constant 0 : index
    %c0_65 = arith.constant 0 : index
    %157 = vector.load %arg7[%c0_63, %c0_64, %c0_65] : memref<1x32x32xf32, #tpu.memory_space<vmem>>, vector<1x32x32xf32>
    %158 = vector.shape_cast %157 : vector<1x32x32xf32> to vector<32x32xf32>
    %cst_66 = arith.constant dense<0.000000e+00> : vector<16x32xf32>
    %159 = tpu.matmul %148, %158, %cst_66 {dimension_numbers = #tpu.dot_dimension_numbers<[1], [0], [0], [1], [0, 0, 1, 1], [], []>} : vector<16x32xf32>, vector<32x32xf32>, vector<16x32xf32> -> vector<16x32xf32>
    %c0_67 = arith.constant 0 : index
    %c0_68 = arith.constant 0 : index
    %c0_69 = arith.constant 0 : index
    %160 = vector.load %arg8[%c0_67, %c0_68, %c0_69] : memref<1x32x64xf32, #tpu.memory_space<vmem>>, vector<1x32x64xf32>
    %161 = vector.shape_cast %160 : vector<1x32x64xf32> to vector<32x64xf32>
    %cst_70 = arith.constant dense<0.000000e+00> : vector<16x64xf32>
    %162 = tpu.matmul %5, %161, %cst_70 {dimension_numbers = #tpu.dot_dimension_numbers<[1], [0], [0], [1], [0, 0, 1, 1], [], []>} : vector<16x32xf32>, vector<32x64xf32>, vector<16x64xf32> -> vector<16x64xf32>
    %163 = vector.extract_strided_slice %162 {offsets = [0, 0], sizes = [16, 32], strides = [1, 1]} : vector<16x64xf32> to vector<16x32xf32>
    %164 = vector.extract_strided_slice %162 {offsets = [0, 32], sizes = [16, 32], strides = [1, 1]} : vector<16x64xf32> to vector<16x32xf32>
    %c0_71 = arith.constant 0 : index
    %c0_72 = arith.constant 0 : index
    %c0_73 = arith.constant 0 : index
    %165 = vector.load %arg9[%c0_71, %c0_72, %c0_73] : memref<1x32x32xf32, #tpu.memory_space<vmem>>, vector<1x32x32xf32>
    %166 = vector.shape_cast %165 : vector<1x32x32xf32> to vector<32x32xf32>
    %167 = vector.shape_cast %159 : vector<16x32xf32> to vector<2x8x32xf32>
    %168 = vector.shape_cast %163 : vector<16x32xf32> to vector<2x8x32xf32>
    %169 = vector.shape_cast %164 : vector<16x32xf32> to vector<2x8x32xf32>
    %cst_74 = arith.constant 0.000000e+00 : f32
    %170 = vector.broadcast %cst_74 : f32 to vector<16x32xf32>
    %171 = vector.extract_strided_slice %167 {offsets = [0, 0, 0], sizes = [2, 8, 8], strides = [1, 1, 1]} : vector<2x8x32xf32> to vector<2x8x8xf32>
    %172 = vector.extract_strided_slice %168 {offsets = [0, 0, 0], sizes = [2, 8, 8], strides = [1, 1, 1]} : vector<2x8x32xf32> to vector<2x8x8xf32>
    %173 = vector.extract_strided_slice %169 {offsets = [0, 0, 0], sizes = [2, 8, 8], strides = [1, 1, 1]} : vector<2x8x32xf32> to vector<2x8x8xf32>
    "tpu.trace_start"() <{level = 10 : i32, message = "bqd,bkd->bqk"}> : () -> ()
    %cst_75 = arith.constant dense<0.000000e+00> : vector<2x8x8xf32>
    %174 = tpu.matmul %171, %172, %cst_75 {dimension_numbers = #tpu.dot_dimension_numbers<[2], [2], [1], [1], [0, 0, 0, 1, 1, 1], [0], [0]>} : vector<2x8x8xf32>, vector<2x8x8xf32>, vector<2x8x8xf32> -> vector<2x8x8xf32>
    "tpu.trace_stop"() : () -> ()
    %cst_76 = arith.constant 0.353553385 : f32
    %175 = vector.broadcast %cst_76 : f32 to vector<2x8x8xf32>
    %176 = arith.mulf %174, %175 : vector<2x8x8xf32>
    %cst_77 = arith.constant 0.000000e+00 : f32
    %177 = vector.broadcast %cst_77 : f32 to vector<2x8x8xf32>
    %178 = arith.cmpf ogt, %7, %177 : vector<2x8x8xf32>
    %cst_78 = arith.constant -1.000000e+09 : f32
    %179 = vector.broadcast %cst_78 : f32 to vector<2x8x8xf32>
    %180 = arith.select %178, %179, %176 : vector<2x8x8xi1>, vector<2x8x8xf32>
    %cst_79 = arith.constant dense<0xFF800000> : vector<2x8xf32>
    %181 = vector.multi_reduction <maximumf>, %180, %cst_79 [2] : vector<2x8x8xf32> to vector<2x8xf32>
    %182 = vector.shape_cast %181 : vector<2x8xf32> to vector<2x8x1xf32>
    %183 = vector.broadcast %182 : vector<2x8x1xf32> to vector<2x8x8xf32>
    %184 = arith.subf %180, %183 : vector<2x8x8xf32>
    %185 = math.exp %184 : vector<2x8x8xf32>
    %cst_80 = arith.constant dense<0.000000e+00> : vector<2x8xf32>
    %186 = vector.multi_reduction <add>, %185, %cst_80 [2] : vector<2x8x8xf32> to vector<2x8xf32>
    %187 = vector.shape_cast %186 : vector<2x8xf32> to vector<2x8x1xf32>
    %188 = tpu.reciprocal %187 {approx = true} : vector<2x8x1xf32> -> vector<2x8x1xf32>
    %189 = vector.broadcast %188 : vector<2x8x1xf32> to vector<2x8x8xf32>
    %190 = arith.mulf %185, %189 : vector<2x8x8xf32>
    "tpu.trace_start"() <{level = 10 : i32, message = "bqk,bkd->bqd"}> : () -> ()
    %cst_81 = arith.constant dense<0.000000e+00> : vector<2x8x8xf32>
    %191 = tpu.matmul %190, %173, %cst_81 {dimension_numbers = #tpu.dot_dimension_numbers<[2], [1], [1], [2], [0, 0, 0, 1, 1, 2], [0], [0]>} : vector<2x8x8xf32>, vector<2x8x8xf32>, vector<2x8x8xf32> -> vector<2x8x8xf32>
    "tpu.trace_stop"() : () -> ()
    %192 = vector.shape_cast %191 : vector<2x8x8xf32> to vector<16x8xf32>
    %193 = vector.extract_strided_slice %166 {offsets = [0, 0], sizes = [8, 32], strides = [1, 1]} : vector<32x32xf32> to vector<8x32xf32>
    %cst_82 = arith.constant dense<0.000000e+00> : vector<16x32xf32>
    %194 = tpu.matmul %192, %193, %cst_82 {dimension_numbers = #tpu.dot_dimension_numbers<[1], [0], [0], [1], [0, 0, 1, 1], [], []>} : vector<16x8xf32>, vector<8x32xf32>, vector<16x32xf32> -> vector<16x32xf32>
    %195 = arith.addf %170, %194 : vector<16x32xf32>
    %196 = vector.extract_strided_slice %167 {offsets = [0, 0, 8], sizes = [2, 8, 8], strides = [1, 1, 1]} : vector<2x8x32xf32> to vector<2x8x8xf32>
    %197 = vector.extract_strided_slice %168 {offsets = [0, 0, 8], sizes = [2, 8, 8], strides = [1, 1, 1]} : vector<2x8x32xf32> to vector<2x8x8xf32>
    %198 = vector.extract_strided_slice %169 {offsets = [0, 0, 8], sizes = [2, 8, 8], strides = [1, 1, 1]} : vector<2x8x32xf32> to vector<2x8x8xf32>
    "tpu.trace_start"() <{level = 10 : i32, message = "bqd,bkd->bqk"}> : () -> ()
    %cst_83 = arith.constant dense<0.000000e+00> : vector<2x8x8xf32>
    %199 = tpu.matmul %196, %197, %cst_83 {dimension_numbers = #tpu.dot_dimension_numbers<[2], [2], [1], [1], [0, 0, 0, 1, 1, 1], [0], [0]>} : vector<2x8x8xf32>, vector<2x8x8xf32>, vector<2x8x8xf32> -> vector<2x8x8xf32>
    "tpu.trace_stop"() : () -> ()
    %cst_84 = arith.constant 0.353553385 : f32
    %200 = vector.broadcast %cst_84 : f32 to vector<2x8x8xf32>
    %201 = arith.mulf %199, %200 : vector<2x8x8xf32>
    %cst_85 = arith.constant 0.000000e+00 : f32
    %202 = vector.broadcast %cst_85 : f32 to vector<2x8x8xf32>
    %203 = arith.cmpf ogt, %7, %202 : vector<2x8x8xf32>
    %cst_86 = arith.constant -1.000000e+09 : f32
    %204 = vector.broadcast %cst_86 : f32 to vector<2x8x8xf32>
    %205 = arith.select %203, %204, %201 : vector<2x8x8xi1>, vector<2x8x8xf32>
    %cst_87 = arith.constant dense<0xFF800000> : vector<2x8xf32>
    %206 = vector.multi_reduction <maximumf>, %205, %cst_87 [2] : vector<2x8x8xf32> to vector<2x8xf32>
    %207 = vector.shape_cast %206 : vector<2x8xf32> to vector<2x8x1xf32>
    %208 = vector.broadcast %207 : vector<2x8x1xf32> to vector<2x8x8xf32>
    %209 = arith.subf %205, %208 : vector<2x8x8xf32>
    %210 = math.exp %209 : vector<2x8x8xf32>
    %cst_88 = arith.constant dense<0.000000e+00> : vector<2x8xf32>
    %211 = vector.multi_reduction <add>, %210, %cst_88 [2] : vector<2x8x8xf32> to vector<2x8xf32>
    %212 = vector.shape_cast %211 : vector<2x8xf32> to vector<2x8x1xf32>
    %213 = tpu.reciprocal %212 {approx = true} : vector<2x8x1xf32> -> vector<2x8x1xf32>
    %214 = vector.broadcast %213 : vector<2x8x1xf32> to vector<2x8x8xf32>
    %215 = arith.mulf %210, %214 : vector<2x8x8xf32>
    "tpu.trace_start"() <{level = 10 : i32, message = "bqk,bkd->bqd"}> : () -> ()
    %cst_89 = arith.constant dense<0.000000e+00> : vector<2x8x8xf32>
    %216 = tpu.matmul %215, %198, %cst_89 {dimension_numbers = #tpu.dot_dimension_numbers<[2], [1], [1], [2], [0, 0, 0, 1, 1, 2], [0], [0]>} : vector<2x8x8xf32>, vector<2x8x8xf32>, vector<2x8x8xf32> -> vector<2x8x8xf32>
    "tpu.trace_stop"() : () -> ()
    %217 = vector.shape_cast %216 : vector<2x8x8xf32> to vector<16x8xf32>
    %218 = vector.extract_strided_slice %166 {offsets = [8, 0], sizes = [8, 32], strides = [1, 1]} : vector<32x32xf32> to vector<8x32xf32>
    %cst_90 = arith.constant dense<0.000000e+00> : vector<16x32xf32>
    %219 = tpu.matmul %217, %218, %cst_90 {dimension_numbers = #tpu.dot_dimension_numbers<[1], [0], [0], [1], [0, 0, 1, 1], [], []>} : vector<16x8xf32>, vector<8x32xf32>, vector<16x32xf32> -> vector<16x32xf32>
    %220 = arith.addf %195, %219 : vector<16x32xf32>
    %221 = vector.extract_strided_slice %167 {offsets = [0, 0, 16], sizes = [2, 8, 8], strides = [1, 1, 1]} : vector<2x8x32xf32> to vector<2x8x8xf32>
    %222 = vector.extract_strided_slice %168 {offsets = [0, 0, 16], sizes = [2, 8, 8], strides = [1, 1, 1]} : vector<2x8x32xf32> to vector<2x8x8xf32>
    %223 = vector.extract_strided_slice %169 {offsets = [0, 0, 16], sizes = [2, 8, 8], strides = [1, 1, 1]} : vector<2x8x32xf32> to vector<2x8x8xf32>
    "tpu.trace_start"() <{level = 10 : i32, message = "bqd,bkd->bqk"}> : () -> ()
    %cst_91 = arith.constant dense<0.000000e+00> : vector<2x8x8xf32>
    %224 = tpu.matmul %221, %222, %cst_91 {dimension_numbers = #tpu.dot_dimension_numbers<[2], [2], [1], [1], [0, 0, 0, 1, 1, 1], [0], [0]>} : vector<2x8x8xf32>, vector<2x8x8xf32>, vector<2x8x8xf32> -> vector<2x8x8xf32>
    "tpu.trace_stop"() : () -> ()
    %cst_92 = arith.constant 0.353553385 : f32
    %225 = vector.broadcast %cst_92 : f32 to vector<2x8x8xf32>
    %226 = arith.mulf %224, %225 : vector<2x8x8xf32>
    %cst_93 = arith.constant 0.000000e+00 : f32
    %227 = vector.broadcast %cst_93 : f32 to vector<2x8x8xf32>
    %228 = arith.cmpf ogt, %7, %227 : vector<2x8x8xf32>
    %cst_94 = arith.constant -1.000000e+09 : f32
    %229 = vector.broadcast %cst_94 : f32 to vector<2x8x8xf32>
    %230 = arith.select %228, %229, %226 : vector<2x8x8xi1>, vector<2x8x8xf32>
    %cst_95 = arith.constant dense<0xFF800000> : vector<2x8xf32>
    %231 = vector.multi_reduction <maximumf>, %230, %cst_95 [2] : vector<2x8x8xf32> to vector<2x8xf32>
    %232 = vector.shape_cast %231 : vector<2x8xf32> to vector<2x8x1xf32>
    %233 = vector.broadcast %232 : vector<2x8x1xf32> to vector<2x8x8xf32>
    %234 = arith.subf %230, %233 : vector<2x8x8xf32>
    %235 = math.exp %234 : vector<2x8x8xf32>
    %cst_96 = arith.constant dense<0.000000e+00> : vector<2x8xf32>
    %236 = vector.multi_reduction <add>, %235, %cst_96 [2] : vector<2x8x8xf32> to vector<2x8xf32>
    %237 = vector.shape_cast %236 : vector<2x8xf32> to vector<2x8x1xf32>
    %238 = tpu.reciprocal %237 {approx = true} : vector<2x8x1xf32> -> vector<2x8x1xf32>
    %239 = vector.broadcast %238 : vector<2x8x1xf32> to vector<2x8x8xf32>
    %240 = arith.mulf %235, %239 : vector<2x8x8xf32>
    "tpu.trace_start"() <{level = 10 : i32, message = "bqk,bkd->bqd"}> : () -> ()
    %cst_97 = arith.constant dense<0.000000e+00> : vector<2x8x8xf32>
    %241 = tpu.matmul %240, %223, %cst_97 {dimension_numbers = #tpu.dot_dimension_numbers<[2], [1], [1], [2], [0, 0, 0, 1, 1, 2], [0], [0]>} : vector<2x8x8xf32>, vector<2x8x8xf32>, vector<2x8x8xf32> -> vector<2x8x8xf32>
    "tpu.trace_stop"() : () -> ()
    %242 = vector.shape_cast %241 : vector<2x8x8xf32> to vector<16x8xf32>
    %243 = vector.extract_strided_slice %166 {offsets = [16, 0], sizes = [8, 32], strides = [1, 1]} : vector<32x32xf32> to vector<8x32xf32>
    %cst_98 = arith.constant dense<0.000000e+00> : vector<16x32xf32>
    %244 = tpu.matmul %242, %243, %cst_98 {dimension_numbers = #tpu.dot_dimension_numbers<[1], [0], [0], [1], [0, 0, 1, 1], [], []>} : vector<16x8xf32>, vector<8x32xf32>, vector<16x32xf32> -> vector<16x32xf32>
    %245 = arith.addf %220, %244 : vector<16x32xf32>
    %246 = vector.extract_strided_slice %167 {offsets = [0, 0, 24], sizes = [2, 8, 8], strides = [1, 1, 1]} : vector<2x8x32xf32> to vector<2x8x8xf32>
    %247 = vector.extract_strided_slice %168 {offsets = [0, 0, 24], sizes = [2, 8, 8], strides = [1, 1, 1]} : vector<2x8x32xf32> to vector<2x8x8xf32>
    %248 = vector.extract_strided_slice %169 {offsets = [0, 0, 24], sizes = [2, 8, 8], strides = [1, 1, 1]} : vector<2x8x32xf32> to vector<2x8x8xf32>
    "tpu.trace_start"() <{level = 10 : i32, message = "bqd,bkd->bqk"}> : () -> ()
    %cst_99 = arith.constant dense<0.000000e+00> : vector<2x8x8xf32>
    %249 = tpu.matmul %246, %247, %cst_99 {dimension_numbers = #tpu.dot_dimension_numbers<[2], [2], [1], [1], [0, 0, 0, 1, 1, 1], [0], [0]>} : vector<2x8x8xf32>, vector<2x8x8xf32>, vector<2x8x8xf32> -> vector<2x8x8xf32>
    "tpu.trace_stop"() : () -> ()
    %cst_100 = arith.constant 0.353553385 : f32
    %250 = vector.broadcast %cst_100 : f32 to vector<2x8x8xf32>
    %251 = arith.mulf %249, %250 : vector<2x8x8xf32>
    %cst_101 = arith.constant 0.000000e+00 : f32
    %252 = vector.broadcast %cst_101 : f32 to vector<2x8x8xf32>
    %253 = arith.cmpf ogt, %7, %252 : vector<2x8x8xf32>
    %cst_102 = arith.constant -1.000000e+09 : f32
    %254 = vector.broadcast %cst_102 : f32 to vector<2x8x8xf32>
    %255 = arith.select %253, %254, %251 : vector<2x8x8xi1>, vector<2x8x8xf32>
    %cst_103 = arith.constant dense<0xFF800000> : vector<2x8xf32>
    %256 = vector.multi_reduction <maximumf>, %255, %cst_103 [2] : vector<2x8x8xf32> to vector<2x8xf32>
    %257 = vector.shape_cast %256 : vector<2x8xf32> to vector<2x8x1xf32>
    %258 = vector.broadcast %257 : vector<2x8x1xf32> to vector<2x8x8xf32>
    %259 = arith.subf %255, %258 : vector<2x8x8xf32>
    %260 = math.exp %259 : vector<2x8x8xf32>
    %cst_104 = arith.constant dense<0.000000e+00> : vector<2x8xf32>
    %261 = vector.multi_reduction <add>, %260, %cst_104 [2] : vector<2x8x8xf32> to vector<2x8xf32>
    %262 = vector.shape_cast %261 : vector<2x8xf32> to vector<2x8x1xf32>
    %263 = tpu.reciprocal %262 {approx = true} : vector<2x8x1xf32> -> vector<2x8x1xf32>
    %264 = vector.broadcast %263 : vector<2x8x1xf32> to vector<2x8x8xf32>
    %265 = arith.mulf %260, %264 : vector<2x8x8xf32>
    "tpu.trace_start"() <{level = 10 : i32, message = "bqk,bkd->bqd"}> : () -> ()
    %cst_105 = arith.constant dense<0.000000e+00> : vector<2x8x8xf32>
    %266 = tpu.matmul %265, %248, %cst_105 {dimension_numbers = #tpu.dot_dimension_numbers<[2], [1], [1], [2], [0, 0, 0, 1, 1, 2], [0], [0]>} : vector<2x8x8xf32>, vector<2x8x8xf32>, vector<2x8x8xf32> -> vector<2x8x8xf32>
    "tpu.trace_stop"() : () -> ()
    %267 = vector.shape_cast %266 : vector<2x8x8xf32> to vector<16x8xf32>
    %268 = vector.extract_strided_slice %166 {offsets = [24, 0], sizes = [8, 32], strides = [1, 1]} : vector<32x32xf32> to vector<8x32xf32>
    %cst_106 = arith.constant dense<0.000000e+00> : vector<16x32xf32>
    %269 = tpu.matmul %267, %268, %cst_106 {dimension_numbers = #tpu.dot_dimension_numbers<[1], [0], [0], [1], [0, 0, 1, 1], [], []>} : vector<16x8xf32>, vector<8x32xf32>, vector<16x32xf32> -> vector<16x32xf32>
    %270 = arith.addf %245, %269 : vector<16x32xf32>
    %271 = arith.addf %270, %148 : vector<16x32xf32>
    %cst_107 = arith.constant dense<0.000000e+00> : vector<16xf32>
    %272 = vector.multi_reduction <add>, %271, %cst_107 [1] : vector<16x32xf32> to vector<16xf32>
    %273 = vector.shape_cast %272 : vector<16xf32> to vector<16x1xf32>
    %cst_108 = arith.constant 3.200000e+01 : f32
    %274 = vector.broadcast %cst_108 : f32 to vector<16x1xf32>
    %275 = arith.divf %273, %274 : vector<16x1xf32>
    %276 = vector.broadcast %275 : vector<16x1xf32> to vector<16x32xf32>
    %277 = arith.subf %271, %276 : vector<16x32xf32>
    %278 = arith.mulf %277, %277 : vector<16x32xf32>
    %cst_109 = arith.constant dense<0.000000e+00> : vector<16xf32>
    %279 = vector.multi_reduction <add>, %278, %cst_109 [1] : vector<16x32xf32> to vector<16xf32>
    %280 = vector.shape_cast %279 : vector<16xf32> to vector<16x1xf32>
    %cst_110 = arith.constant 3.200000e+01 : f32
    %281 = vector.broadcast %cst_110 : f32 to vector<16x1xf32>
    %282 = arith.divf %280, %281 : vector<16x1xf32>
    %cst_111 = arith.constant 9.99999974E-6 : f32
    %283 = vector.broadcast %cst_111 : f32 to vector<16x1xf32>
    %284 = arith.addf %282, %283 : vector<16x1xf32>
    %285 = math.rsqrt %284 : vector<16x1xf32>
    %286 = vector.broadcast %285 : vector<16x1xf32> to vector<16x32xf32>
    %287 = arith.mulf %277, %286 : vector<16x32xf32>
    %288 = vector.broadcast %12 : vector<1x32xf32> to vector<16x32xf32>
    %289 = arith.mulf %287, %288 : vector<16x32xf32>
    %290 = vector.broadcast %13 : vector<1x32xf32> to vector<16x32xf32>
    %291 = arith.addf %289, %290 : vector<16x32xf32>
    %292 = vector.shape_cast %190 : vector<2x8x8xf32> to vector<1x2x8x8xf32>
    %293 = vector.shape_cast %215 : vector<2x8x8xf32> to vector<1x2x8x8xf32>
    %294 = vector.shape_cast %240 : vector<2x8x8xf32> to vector<1x2x8x8xf32>
    %295 = vector.shape_cast %265 : vector<2x8x8xf32> to vector<1x2x8x8xf32>
    %296 = tpu.concatenate %292, %293, %294, %295 in 0 : vector<1x2x8x8xf32>, vector<1x2x8x8xf32>, vector<1x2x8x8xf32>, vector<1x2x8x8xf32> -> vector<4x2x8x8xf32>
    %c0_112 = arith.constant 0 : index
    %c0_113 = arith.constant 0 : index
    %c0_114 = arith.constant 0 : index
    %c0_115 = arith.constant 0 : index
    %c0_116 = arith.constant 0 : index
    %297 = vector.load %arg15[%c0_112, %c0_113, %c0_114, %c0_115, %c0_116] : memref<1x4x2x8x8xf32, #tpu.memory_space<vmem>>, vector<1x4x2x8x8xf32>
    %298 = vector.shape_cast %297 : vector<1x4x2x8x8xf32> to vector<4x2x8x8xf32>
    %299 = vector.shape_cast %296 : vector<4x2x8x8xf32> to vector<1x4x2x8x8xf32>
    tpu.vector_store %arg15[%c0_112, %c0_113, %c0_114, %c0_115, %c0_116], %299 {strides = array<i32>} : memref<1x4x2x8x8xf32, #tpu.memory_space<vmem>>, vector<1x4x2x8x8xf32>,
    %c0_117 = arith.constant 0 : index
    %c0_118 = arith.constant 0 : index
    %c0_119 = arith.constant 0 : index
    %300 = vector.load %arg10[%c0_117, %c0_118, %c0_119] : memref<1x32x64xf32, #tpu.memory_space<vmem>>, vector<1x32x64xf32>
    %301 = vector.shape_cast %300 : vector<1x32x64xf32> to vector<32x64xf32>
    %cst_120 = arith.constant dense<0.000000e+00> : vector<16x64xf32>
    %302 = tpu.matmul %291, %301, %cst_120 {dimension_numbers = #tpu.dot_dimension_numbers<[1], [0], [0], [1], [0, 0, 1, 1], [], []>} : vector<16x32xf32>, vector<32x64xf32>, vector<16x64xf32> -> vector<16x64xf32>
    %cst_121 = arith.constant 0.000000e+00 : f32
    %303 = vector.broadcast %cst_121 : f32 to vector<16x64xf32>
    %304 = arith.maximumf %302, %303 : vector<16x64xf32>
    %c0_122 = arith.constant 0 : index
    %c0_123 = arith.constant 0 : index
    %c0_124 = arith.constant 0 : index
    %305 = vector.load %arg11[%c0_122, %c0_123, %c0_124] : memref<1x64x32xf32, #tpu.memory_space<vmem>>, vector<1x64x32xf32>
    %306 = vector.shape_cast %305 : vector<1x64x32xf32> to vector<64x32xf32>
    %cst_125 = arith.constant dense<0.000000e+00> : vector<16x32xf32>
    %307 = tpu.matmul %304, %306, %cst_125 {dimension_numbers = #tpu.dot_dimension_numbers<[1], [0], [0], [1], [0, 0, 1, 1], [], []>} : vector<16x64xf32>, vector<64x32xf32>, vector<16x32xf32> -> vector<16x32xf32>
    %308 = arith.addf %307, %291 : vector<16x32xf32>
    %cst_126 = arith.constant dense<0.000000e+00> : vector<16xf32>
    %309 = vector.multi_reduction <add>, %308, %cst_126 [1] : vector<16x32xf32> to vector<16xf32>
    %310 = vector.shape_cast %309 : vector<16xf32> to vector<16x1xf32>
    %cst_127 = arith.constant 3.200000e+01 : f32
    %311 = vector.broadcast %cst_127 : f32 to vector<16x1xf32>
    %312 = arith.divf %310, %311 : vector<16x1xf32>
    %313 = vector.broadcast %312 : vector<16x1xf32> to vector<16x32xf32>
    %314 = arith.subf %308, %313 : vector<16x32xf32>
    %315 = arith.mulf %314, %314 : vector<16x32xf32>
    %cst_128 = arith.constant dense<0.000000e+00> : vector<16xf32>
    %316 = vector.multi_reduction <add>, %315, %cst_128 [1] : vector<16x32xf32> to vector<16xf32>
    %317 = vector.shape_cast %316 : vector<16xf32> to vector<16x1xf32>
    %cst_129 = arith.constant 3.200000e+01 : f32
    %318 = vector.broadcast %cst_129 : f32 to vector<16x1xf32>
    %319 = arith.divf %317, %318 : vector<16x1xf32>
    %cst_130 = arith.constant 9.99999974E-6 : f32
    %320 = vector.broadcast %cst_130 : f32 to vector<16x1xf32>
    %321 = arith.addf %319, %320 : vector<16x1xf32>
    %322 = math.rsqrt %321 : vector<16x1xf32>
    %323 = vector.broadcast %322 : vector<16x1xf32> to vector<16x32xf32>
    %324 = arith.mulf %314, %323 : vector<16x32xf32>
    %325 = vector.broadcast %14 : vector<1x32xf32> to vector<16x32xf32>
    %326 = arith.mulf %324, %325 : vector<16x32xf32>
    %327 = vector.broadcast %15 : vector<1x32xf32> to vector<16x32xf32>
    %328 = arith.addf %326, %327 : vector<16x32xf32>
    %c0_131 = arith.constant 0 : index
    %c0_132 = arith.constant 0 : index
    %329 = vector.load %arg16[%c0_131, %c0_132] : memref<16x32xf32, #tpu.memory_space<vmem>>, vector<16x32xf32>
    tpu.vector_store %arg16[%c0_131, %c0_132], %328 {strides = array<i32>} : memref<16x32xf32, #tpu.memory_space<vmem>>, vector<16x32xf32>,
    %330 = vector.shape_cast %328 : vector<16x32xf32> to vector<2x8x32xf32>
    %c0_133 = arith.constant 0 : index
    %c0_134 = arith.constant 0 : index
    %c0_135 = arith.constant 0 : index
    %331 = vector.load %arg13[%c0_133, %c0_134, %c0_135] : memref<2x8x32xf32, #tpu.memory_space<vmem>>, vector<2x8x32xf32>
    tpu.vector_store %arg13[%c0_133, %c0_134, %c0_135], %330 {strides = array<i32>} : memref<2x8x32xf32, #tpu.memory_space<vmem>>, vector<2x8x32xf32>,
    return
  }
  func.func @transform_0(%arg0: i32) -> (i32, i32, i32) {
    %c0_i32 = arith.constant 0 : i32
    %c0_i32_0 = arith.constant 0 : i32
    %c0_i32_1 = arith.constant 0 : i32
    %c0_i32_2 = arith.constant 0 : i32
    return %c0_i32, %c0_i32_0, %c0_i32_1 : i32, i32, i32
  }
  func.func @transform_1(%arg0: i32) -> (i32, i32, i32) {
    %c0_i32 = arith.constant 0 : i32
    %c0_i32_0 = arith.constant 0 : i32
    %c0_i32_1 = arith.constant 0 : i32
    %c0_i32_2 = arith.constant 0 : i32
    return %c0_i32, %c0_i32_0, %c0_i32_1 : i32, i32, i32
  }
  func.func @transform_2(%arg0: i32) -> (i32, i32, i32) {
    %c0_i32 = arith.constant 0 : i32
    %c0_i32_0 = arith.constant 0 : i32
    %c0_i32_1 = arith.constant 0 : i32
    %c0_i32_2 = arith.constant 0 : i32
    return %c0_i32, %c0_i32_0, %c0_i32_1 : i32, i32, i32
  }
  func.func @transform_3(%arg0: i32) -> (i32, i32, i32) {
    %c0_i32 = arith.constant 0 : i32
    %c0_i32_0 = arith.constant 0 : i32
    %c0_i32_1 = arith.constant 0 : i32
    %c0_i32_2 = arith.constant 0 : i32
    return %c0_i32, %c0_i32_0, %c0_i32_1 : i32, i32, i32
  }
  func.func @transform_4(%arg0: i32) -> (i32, i32, i32) {
    %c0_i32 = arith.constant 0 : i32
    %c0_i32_0 = arith.constant 0 : i32
    %c0_i32_1 = arith.constant 0 : i32
    return %arg0, %c0_i32, %c0_i32_0 : i32, i32, i32
  }
  func.func @transform_5(%arg0: i32) -> (i32, i32, i32) {
    %c0_i32 = arith.constant 0 : i32
    %c0_i32_0 = arith.constant 0 : i32
    %c0_i32_1 = arith.constant 0 : i32
    return %arg0, %c0_i32, %c0_i32_0 : i32, i32, i32
  }
  func.func @transform_6(%arg0: i32) -> (i32, i32, i32) {
    %c0_i32 = arith.constant 0 : i32
    %c0_i32_0 = arith.constant 0 : i32
    %c0_i32_1 = arith.constant 0 : i32
    return %arg0, %c0_i32, %c0_i32_0 : i32, i32, i32
  }
  func.func @transform_7(%arg0: i32) -> (i32, i32, i32) {
    %c0_i32 = arith.constant 0 : i32
    %c0_i32_0 = arith.constant 0 : i32
    %c0_i32_1 = arith.constant 0 : i32
    return %arg0, %c0_i32, %c0_i32_0 : i32, i32, i32
  }
  func.func @transform_8(%arg0: i32) -> (i32, i32, i32) {
    %c0_i32 = arith.constant 0 : i32
    %c0_i32_0 = arith.constant 0 : i32
    %c0_i32_1 = arith.constant 0 : i32
    return %arg0, %c0_i32, %c0_i32_0 : i32, i32, i32
  }
  func.func @transform_9(%arg0: i32) -> (i32, i32, i32) {
    %c0_i32 = arith.constant 0 : i32
    %c0_i32_0 = arith.constant 0 : i32
    %c0_i32_1 = arith.constant 0 : i32
    return %arg0, %c0_i32, %c0_i32_0 : i32, i32, i32
  }
  func.func @transform_10(%arg0: i32) -> (i32, i32, i32) {
    %c0_i32 = arith.constant 0 : i32
    %c0_i32_0 = arith.constant 0 : i32
    %c0_i32_1 = arith.constant 0 : i32
    return %arg0, %c0_i32, %c0_i32_0 : i32, i32, i32
  }
  func.func @transform_11(%arg0: i32) -> (i32, i32, i32) {
    %c0_i32 = arith.constant 0 : i32
    %c0_i32_0 = arith.constant 0 : i32
    %c0_i32_1 = arith.constant 0 : i32
    return %arg0, %c0_i32, %c0_i32_0 : i32, i32, i32
  }
  func.func @transform_12(%arg0: i32) -> (i32, i32, i32) {
    %c0_i32 = arith.constant 0 : i32
    %c0_i32_0 = arith.constant 0 : i32
    %c0_i32_1 = arith.constant 0 : i32
    %c0_i32_2 = arith.constant 0 : i32
    return %c0_i32, %c0_i32_0, %c0_i32_1 : i32, i32, i32
  }
  func.func @transform_13(%arg0: i32) -> (i32, i32, i32, i32, i32) {
    %c0_i32 = arith.constant 0 : i32
    %c0_i32_0 = arith.constant 0 : i32
    %c0_i32_1 = arith.constant 0 : i32
    %c0_i32_2 = arith.constant 0 : i32
    %c0_i32_3 = arith.constant 0 : i32
    return %arg0, %c0_i32, %c0_i32_0, %c0_i32_1, %c0_i32_2 : i32, i32, i32, i32, i32
  }
  func.func @transform_14(%arg0: i32) -> (i32, i32, i32, i32, i32) {
    %c0_i32 = arith.constant 0 : i32
    %c0_i32_0 = arith.constant 0 : i32
    %c0_i32_1 = arith.constant 0 : i32
    %c0_i32_2 = arith.constant 0 : i32
    %c0_i32_3 = arith.constant 0 : i32
    return %arg0, %c0_i32, %c0_i32_0, %c0_i32_1, %c0_i32_2 : i32, i32, i32, i32, i32
  }
}

</mosaic_0001>

<llo_original>
// kernel: tpu_custom_call.1
$region0: #{tpu_custom_call.1}
  #allocation0 [shape = 'u32[]', space=smem, size = 0x4, offset = 0x4, fixed_abs, tag = 'smem constant byte address 0x4 - core index']
  #allocation1 [shape = 'u32[144,128]{1,0:T(1,128)}', space=vmem, size = 0x12000, scoped, tag = 'internal scratch']
  #allocation2 [shape = 'f32[16,32]{1,0:T(8,128)}', space=vmem, size = 0x2000, scoped, tag = 'scratch operand']
  %s0 = inlined_call_operand.hbm [shape: f32[2,8,32], index: 0, kind: input, shape index: {}]
  %s1 = inlined_call_operand.hbm [shape: f32[2,8,32], index: 1, kind: input, shape index: {}]
  %s2 = inlined_call_operand.hbm [shape: f32[2,8,8], index: 2, kind: input, shape index: {}]
  %s3 = inlined_call_operand.hbm [shape: f32[2,8,8], index: 3, kind: input, shape index: {}]
  %s4 = inlined_call_operand.vmem [shape: f32[2,32,96], index: 4, kind: input, shape index: {}]
  %s5 = inlined_call_operand.vmem [shape: f32[2,32,32], index: 5, kind: input, shape index: {}]
  %s6 = inlined_call_operand.vmem [shape: f32[2,32,32], index: 6, kind: input, shape index: {}]
  %s7 = inlined_call_operand.hbm [shape: f32[2,32,64], index: 7, kind: input, shape index: {}]
  %s8 = inlined_call_operand.hbm [shape: f32[2,32,32], index: 8, kind: input, shape index: {}]
  %s9 = inlined_call_operand.hbm [shape: f32[2,32,64], index: 9, kind: input, shape index: {}]
  %s10 = inlined_call_operand.vmem [shape: f32[2,64,32], index: 10, kind: input, shape index: {}]
  %s11 = inlined_call_operand.vmem [shape: f32[2,6,32], index: 11, kind: input, shape index: {}]
  %s12 = inlined_call_operand.hbm [shape: f32[2,8,32], index: 12, kind: output, shape index: {0}]
  %s13 = inlined_call_operand.hbm [shape: f32[2,4,2,8,8], index: 13, kind: output, shape index: {1}]
  %s14 = inlined_call_operand.hbm [shape: f32[2,4,2,8,8], index: 14, kind: output, shape index: {2}]
  %15 = xla_tuple %s12, %s13, %s14
  %s16 = sld [smem:[#allocation0]]
  $region129: #{tpu_custom_call.1} parent=0
    _
  %s18 = ssub.s32 1, %s16
  %s19 = scalar_select 0, %s18, %s16
  $region1: #{tpu_custom_call.1} parent=0
    #allocation3 [shape = 'u8[8192]{0}', space=vmem, size = 0x2000, scoped, tag = 'input window, operand 0, single buffered']
    #allocation4 [shape = 's32[2]{0}', space=sflag, size = 0x8, scoped, tag = 'scoped memory for tpu_custom_call.1']
    #allocation5 [shape = 's32[2]{0}', space=sflag, size = 0x8, scoped, tag = 'scoped memory for tpu_custom_call.1']
    #allocation6 [shape = 'u8[8192]{0}', space=vmem, size = 0x2000, scoped, tag = 'input window, operand 1, single buffered']
    #allocation7 [shape = 's32[1]{0}', space=sflag, size = 0x4, scoped, tag = 'scoped memory for tpu_custom_call.1']
    #allocation8 [shape = 'u8[8192]{0}', space=vmem, size = 0x2000, scoped, tag = 'input window, operand 2, single buffered']
    #allocation9 [shape = 'u8[8192]{0}', space=vmem, size = 0x2000, scoped, tag = 'input window, operand 3, single buffered']
    #allocation10 [shape = 's32[1]{0}', space=sflag, size = 0x4, scoped, tag = 'scoped memory for tpu_custom_call.1']
    #allocation11 [shape = 'u8[32768]{0}', space=vmem, size = 0x8000, scoped, tag = 'input window, operand 7']
    #allocation12 [shape = 'u8[32768]{0}', space=vmem, size = 0x8000, scoped, tag = 'input window, operand 8']
    #allocation13 [shape = 'u8[32768]{0}', space=vmem, size = 0x8000, scoped, tag = 'input window, operand 9']
    #allocation14 [shape = 'u8[8192]{0}', space=vmem, size = 0x2000, scoped, tag = 'output window, operand 0, single buffered']
    #allocation15 [shape = 'u8[65536]{0}', space=vmem, size = 0x10000, scoped, tag = 'output window, operand 1']
    #allocation16 [shape = 's32[2]{0}', space=sflag, size = 0x8, scoped, tag = 'scoped memory for tpu_custom_call.1']
    #allocation17 [shape = 'u8[65536]{0}', space=vmem, size = 0x10000, scoped, tag = 'output window, operand 2']
    %20 = vsyncpa [#allocation4], 0
    %21 = vsyncpa [#allocation7], 0
    %22 = vsyncpa [#allocation10], 0
    %23 = vsyncpa [#allocation5], 0
    %24 = vsyncpa [#allocation16], 0
    %s25 = scalar_lea.sflag [#allocation16], 1
    %26 = vsyncpa %s25, 0
    loop: start=0, step=1, limit=4
    $region2: #{tpu_custom_call.1} parent=1 // loop_pre_header
      _
    $region3: #{tpu_custom_call.1} parent=1 // loop_header
      %s28 = sphi 0, %s32
      %p29 = scmp.ge.s32.totalorder %s28, 4
      %s36 = sphi 0, %s36
      %s38 = sphi 0, %s36
      %s39 = sphi 0, %s38
      %s53 = sphi 0, %s39
      %s57 = sphi 0, %s57
      %s59 = sphi 0, %s57
      %s60 = sphi 0, %s59
      %s74 = sphi 0, %s60
      %s78 = sphi 0, %s78
      %s80 = sphi 0, %s78
      %s81 = sphi 0, %s80
      %s95 = sphi 0, %s81
      %s99 = sphi 0, %s99
      %s101 = sphi 0, %s99
      %s102 = sphi 0, %s101
      %s116 = sphi 0, %s102
      %s122 = sphi 0, %s124
      %s125 = sphi 0, %s122
      %s126 = sphi 0, %s125
      %s142 = sphi 0, %s126
      %s148 = sphi 0, %s150
      %s151 = sphi 0, %s148
      %s152 = sphi 0, %s151
      %s168 = sphi 0, %s152
      %s174 = sphi 0, %s176
      %s177 = sphi 0, %s174
      %s178 = sphi 0, %s177
      %s194 = sphi 0, %s178
      %s200 = sphi 0, %s202
      %s203 = sphi 0, %s200
      %s204 = sphi 0, %s203
      %s220 = sphi 0, %s204
      %s226 = sphi 0, %s228
      %s229 = sphi 0, %s226
      %s230 = sphi 0, %s229
      %s246 = sphi 0, %s230
      %s252 = sphi 0, %s254
      %s255 = sphi 0, %s252
      %s256 = sphi 0, %s255
      %s272 = sphi 0, %s256
      %s278 = sphi 0, %s280
      %s281 = sphi 0, %s278
      %s282 = sphi 0, %s281
      %s298 = sphi 0, %s282
      %s304 = sphi 0, %s306
      %s307 = sphi 0, %s304
      %s308 = sphi 0, %s307
      %s324 = sphi 0, %s308
      %s328 = sphi 0, %s328
      %s330 = sphi 0, %s328
      %s331 = sphi 0, %s330
      %s345 = sphi 0, %s331
      %s351 = sphi 0, %s353
      %s354 = sphi 0, %s351
      %s355 = sphi 0, %s354
      %s371 = sphi 0, %s355
      %s377 = sphi 0, %s379
      %s380 = sphi 0, %s377
      %s381 = sphi 0, %s380
      %s397 = sphi 0, %s381
    $region4: #{tpu_custom_call.1} parent=1 // loop_header_branch
      %31 = sbr.rel (%p29) target = $region8
    $region5: #{tpu_custom_call.1} parent=1 // loop_body
      %s33 = ssub.s32 %s28, 1
      %s34 = ssub.s32 %s28, 2
      %s35 = sadd.s32 %s28, 1
      %s37 = sadd.s32 %s36, 1
      %p40 = scmp.eq.s32.totalorder %s28, 1
      %p41 = scmp.ne.s32.totalorder %s36, %s38
      %p42 = scmp.eq.s32.totalorder %s28, 0
      %p43 = por %p41, %p42
      %p44 = scmp.ne.s32.totalorder %s36, %s38
      %p45 = scmp.eq.s32.totalorder %s33, 1
      %p46 = por %p44, %p45
      %p47 = scmp.ne.s32.totalorder %s38, %s39
      %p48 = scmp.eq.s32.totalorder %s33, 0
      %p49 = por %p47, %p48
      %p50 = scmp.ne.s32.totalorder %s38, %s39
      %p51 = scmp.eq.s32.totalorder %s34, 1
      %p52 = por %p50, %p51
      %p54 = scmp.ne.s32.totalorder %s39, %s53
      %p55 = scmp.eq.s32.totalorder %s34, 0
      %p56 = por %p54, %p55
      %s58 = sadd.s32 %s57, 1
      %p61 = scmp.eq.s32.totalorder %s28, 1
      %p62 = scmp.ne.s32.totalorder %s57, %s59
      %p63 = scmp.eq.s32.totalorder %s28, 0
      %p64 = por %p62, %p63
      %p65 = scmp.ne.s32.totalorder %s57, %s59
      %p66 = scmp.eq.s32.totalorder %s33, 1
      %p67 = por %p65, %p66
      %p68 = scmp.ne.s32.totalorder %s59, %s60
      %p69 = scmp.eq.s32.totalorder %s33, 0
      %p70 = por %p68, %p69
      %p71 = scmp.ne.s32.totalorder %s59, %s60
      %p72 = scmp.eq.s32.totalorder %s34, 1
      %p73 = por %p71, %p72
      %p75 = scmp.ne.s32.totalorder %s60, %s74
      %p76 = scmp.eq.s32.totalorder %s34, 0
      %p77 = por %p75, %p76
      %s79 = sadd.s32 %s78, 1
      %p82 = scmp.eq.s32.totalorder %s28, 1
      %p83 = scmp.ne.s32.totalorder %s78, %s80
      %p84 = scmp.eq.s32.totalorder %s28, 0
      %p85 = por %p83, %p84
      %p86 = scmp.ne.s32.totalorder %s78, %s80
      %p87 = scmp.eq.s32.totalorder %s33, 1
      %p88 = por %p86, %p87
      %p89 = scmp.ne.s32.totalorder %s80, %s81
      %p90 = scmp.eq.s32.totalorder %s33, 0
      %p91 = por %p89, %p90
      %p92 = scmp.ne.s32.totalorder %s80, %s81
      %p93 = scmp.eq.s32.totalorder %s34, 1
      %p94 = por %p92, %p93
      %p96 = scmp.ne.s32.totalorder %s81, %s95
      %p97 = scmp.eq.s32.totalorder %s34, 0
      %p98 = por %p96, %p97
      %s100 = sadd.s32 %s99, 1
      %p103 = scmp.eq.s32.totalorder %s28, 1
      %p104 = scmp.ne.s32.totalorder %s99, %s101
      %p105 = scmp.eq.s32.totalorder %s28, 0
      %p106 = por %p104, %p105
      %p107 = scmp.ne.s32.totalorder %s99, %s101
      %p108 = scmp.eq.s32.totalorder %s33, 1
      %p109 = por %p107, %p108
      %p110 = scmp.ne.s32.totalorder %s101, %s102
      %p111 = scmp.eq.s32.totalorder %s33, 0
      %p112 = por %p110, %p111
      %p113 = scmp.ne.s32.totalorder %s101, %s102
      %p114 = scmp.eq.s32.totalorder %s34, 1
      %p115 = por %p113, %p114
      %p117 = scmp.ne.s32.totalorder %s102, %s116
      %p118 = scmp.eq.s32.totalorder %s34, 0
      %p119 = por %p117, %p118
      %s120 = ssub.s32 %s28, %s35
      %p121 = scmp.eq.s32.totalorder %s120, 0
      %s123 = sadd.s32 %s122, 1
      %s124 = scalar_select %p121, %s122, %s123
      %p127 = pneg %p121
      %p128 = scmp.eq.s32.totalorder %s28, 1
      %p129 = por %p127, %p128
      %p130 = scmp.ne.s32.totalorder %s122, %s125
      %p131 = scmp.eq.s32.totalorder %s28, 0
      %p132 = por %p130, %p131
      %p133 = scmp.ne.s32.totalorder %s122, %s125
      %p134 = scmp.eq.s32.totalorder %s33, 1
      %p135 = por %p133, %p134
      %p136 = scmp.ne.s32.totalorder %s125, %s126
      %p137 = scmp.eq.s32.totalorder %s33, 0
      %p138 = por %p136, %p137
      %p139 = scmp.ne.s32.totalorder %s125, %s126
      %p140 = scmp.eq.s32.totalorder %s34, 1
      %p141 = por %p139, %p140
      %p143 = scmp.ne.s32.totalorder %s126, %s142
      %p144 = scmp.eq.s32.totalorder %s34, 0
      %p145 = por %p143, %p144
      %s146 = ssub.s32 %s28, %s35
      %p147 = scmp.eq.s32.totalorder %s146, 0
      %s149 = sadd.s32 %s148, 1
      %s150 = scalar_select %p147, %s148, %s149
      %p153 = pneg %p147
      %p154 = scmp.eq.s32.totalorder %s28, 1
      %p155 = por %p153, %p154
      %p156 = scmp.ne.s32.totalorder %s148, %s151
      %p157 = scmp.eq.s32.totalorder %s28, 0
      %p158 = por %p156, %p157
      %p159 = scmp.ne.s32.totalorder %s148, %s151
      %p160 = scmp.eq.s32.totalorder %s33, 1
      %p161 = por %p159, %p160
      %p162 = scmp.ne.s32.totalorder %s151, %s152
      %p163 = scmp.eq.s32.totalorder %s33, 0
      %p164 = por %p162, %p163
      %p165 = scmp.ne.s32.totalorder %s151, %s152
      %p166 = scmp.eq.s32.totalorder %s34, 1
      %p167 = por %p165, %p166
      %p169 = scmp.ne.s32.totalorder %s152, %s168
      %p170 = scmp.eq.s32.totalorder %s34, 0
      %p171 = por %p169, %p170
      %s172 = ssub.s32 %s28, %s35
      %p173 = scmp.eq.s32.totalorder %s172, 0
      %s175 = sadd.s32 %s174, 1
      %s176 = scalar_select %p173, %s174, %s175
      %p179 = pneg %p173
      %p180 = scmp.eq.s32.totalorder %s28, 1
      %p181 = por %p179, %p180
      %p182 = scmp.ne.s32.totalorder %s174, %s177
      %p183 = scmp.eq.s32.totalorder %s28, 0
      %p184 = por %p182, %p183
      %p185 = scmp.ne.s32.totalorder %s174, %s177
      %p186 = scmp.eq.s32.totalorder %s33, 1
      %p187 = por %p185, %p186
      %p188 = scmp.ne.s32.totalorder %s177, %s178
      %p189 = scmp.eq.s32.totalorder %s33, 0
      %p190 = por %p188, %p189
      %p191 = scmp.ne.s32.totalorder %s177, %s178
      %p192 = scmp.eq.s32.totalorder %s34, 1
      %p193 = por %p191, %p192
      %p195 = scmp.ne.s32.totalorder %s178, %s194
      %p196 = scmp.eq.s32.totalorder %s34, 0
      %p197 = por %p195, %p196
      %s198 = ssub.s32 %s28, %s35
      %p199 = scmp.eq.s32.totalorder %s198, 0
      %s201 = sadd.s32 %s200, 1
      %s202 = scalar_select %p199, %s200, %s201
      %p205 = pneg %p199
      %p206 = scmp.eq.s32.totalorder %s28, 1
      %p207 = por %p205, %p206
      %p208 = scmp.ne.s32.totalorder %s200, %s203
      %p209 = scmp.eq.s32.totalorder %s28, 0
      %p210 = por %p208, %p209
      %p211 = scmp.ne.s32.totalorder %s200, %s203
      %p212 = scmp.eq.s32.totalorder %s33, 1
      %p213 = por %p211, %p212
      %p214 = scmp.ne.s32.totalorder %s203, %s204
      %p215 = scmp.eq.s32.totalorder %s33, 0
      %p216 = por %p214, %p215
      %p217 = scmp.ne.s32.totalorder %s203, %s204
      %p218 = scmp.eq.s32.totalorder %s34, 1
      %p219 = por %p217, %p218
      %p221 = scmp.ne.s32.totalorder %s204, %s220
      %p222 = scmp.eq.s32.totalorder %s34, 0
      %p223 = por %p221, %p222
      %s224 = ssub.s32 %s28, %s35
      %p225 = scmp.eq.s32.totalorder %s224, 0
      %s227 = sadd.s32 %s226, 1
      %s228 = scalar_select %p225, %s226, %s227
      %p231 = pneg %p225
      %p232 = scmp.eq.s32.totalorder %s28, 1
      %p233 = por %p231, %p232
      %p234 = scmp.ne.s32.totalorder %s226, %s229
      %p235 = scmp.eq.s32.totalorder %s28, 0
      %p236 = por %p234, %p235
      %p237 = scmp.ne.s32.totalorder %s226, %s229
      %p238 = scmp.eq.s32.totalorder %s33, 1
      %p239 = por %p237, %p238
      %p240 = scmp.ne.s32.totalorder %s229, %s230
      %p241 = scmp.eq.s32.totalorder %s33, 0
      %p242 = por %p240, %p241
      %p243 = scmp.ne.s32.totalorder %s229, %s230
      %p244 = scmp.eq.s32.totalorder %s34, 1
      %p245 = por %p243, %p244
      %p247 = scmp.ne.s32.totalorder %s230, %s246
      %p248 = scmp.eq.s32.totalorder %s34, 0
      %p249 = por %p247, %p248
      %s250 = ssub.s32 %s28, %s35
      %p251 = scmp.eq.s32.totalorder %s250, 0
      %s253 = sadd.s32 %s252, 1
      %s254 = scalar_select %p251, %s252, %s253
      %p257 = pneg %p251
      %p258 = scmp.eq.s32.totalorder %s28, 1
      %p259 = por %p257, %p258
      %p260 = scmp.ne.s32.totalorder %s252, %s255
      %p261 = scmp.eq.s32.totalorder %s28, 0
      %p262 = por %p260, %p261
      %p263 = scmp.ne.s32.totalorder %s252, %s255
      %p264 = scmp.eq.s32.totalorder %s33, 1
      %p265 = por %p263, %p264
      %p266 = scmp.ne.s32.totalorder %s255, %s256
      %p267 = scmp.eq.s32.totalorder %s33, 0
      %p268 = por %p266, %p267
      %p269 = scmp.ne.s32.totalorder %s255, %s256
      %p270 = scmp.eq.s32.totalorder %s34, 1
      %p271 = por %p269, %p270
      %p273 = scmp.ne.s32.totalorder %s256, %s272
      %p274 = scmp.eq.s32.totalorder %s34, 0
      %p275 = por %p273, %p274
      %s276 = ssub.s32 %s28, %s35
      %p277 = scmp.eq.s32.totalorder %s276, 0
      %s279 = sadd.s32 %s278, 1
      %s280 = scalar_select %p277, %s278, %s279
      %p283 = pneg %p277
      %p284 = scmp.eq.s32.totalorder %s28, 1
      %p285 = por %p283, %p284
      %p286 = scmp.ne.s32.totalorder %s278, %s281
      %p287 = scmp.eq.s32.totalorder %s28, 0
      %p288 = por %p286, %p287
      %p289 = scmp.ne.s32.totalorder %s278, %s281
      %p290 = scmp.eq.s32.totalorder %s33, 1
      %p291 = por %p289, %p290
      %p292 = scmp.ne.s32.totalorder %s281, %s282
      %p293 = scmp.eq.s32.totalorder %s33, 0
      %p294 = por %p292, %p293
      %p295 = scmp.ne.s32.totalorder %s281, %s282
      %p296 = scmp.eq.s32.totalorder %s34, 1
      %p297 = por %p295, %p296
      %p299 = scmp.ne.s32.totalorder %s282, %s298
      %p300 = scmp.eq.s32.totalorder %s34, 0
      %p301 = por %p299, %p300
      %s302 = ssub.s32 %s28, %s35
      %p303 = scmp.eq.s32.totalorder %s302, 0
      %s305 = sadd.s32 %s304, 1
      %s306 = scalar_select %p303, %s304, %s305
      %p309 = pneg %p303
      %p310 = scmp.eq.s32.totalorder %s28, 1
      %p311 = por %p309, %p310
      %p312 = scmp.ne.s32.totalorder %s304, %s307
      %p313 = scmp.eq.s32.totalorder %s28, 0
      %p314 = por %p312, %p313
      %p315 = scmp.ne.s32.totalorder %s304, %s307
      %p316 = scmp.eq.s32.totalorder %s33, 1
      %p317 = por %p315, %p316
      %p318 = scmp.ne.s32.totalorder %s307, %s308
      %p319 = scmp.eq.s32.totalorder %s33, 0
      %p320 = por %p318, %p319
      %p321 = scmp.ne.s32.totalorder %s307, %s308
      %p322 = scmp.eq.s32.totalorder %s34, 1
      %p323 = por %p321, %p322
      %p325 = scmp.ne.s32.totalorder %s308, %s324
      %p326 = scmp.eq.s32.totalorder %s34, 0
      %p327 = por %p325, %p326
      %s329 = sadd.s32 %s328, 1
      %p332 = scmp.eq.s32.totalorder %s28, 1
      %p333 = scmp.ne.s32.totalorder %s328, %s330
      %p334 = scmp.eq.s32.totalorder %s28, 0
      %p335 = por %p333, %p334
      %p336 = scmp.ne.s32.totalorder %s328, %s330
      %p337 = scmp.eq.s32.totalorder %s33, 1
      %p338 = por %p336, %p337
      %p339 = scmp.ne.s32.totalorder %s330, %s331
      %p340 = scmp.eq.s32.totalorder %s33, 0
      %p341 = por %p339, %p340
      %p342 = scmp.ne.s32.totalorder %s330, %s331
      %p343 = scmp.eq.s32.totalorder %s34, 1
      %p344 = por %p342, %p343
      %p346 = scmp.ne.s32.totalorder %s331, %s345
      %p347 = scmp.eq.s32.totalorder %s34, 0
      %p348 = por %p346, %p347
      %s349 = ssub.s32 %s28, %s35
      %p350 = scmp.eq.s32.totalorder %s349, 0
      %s352 = sadd.s32 %s351, 1
      %s353 = scalar_select %p350, %s351, %s352
      %p356 = pneg %p350
      %p357 = scmp.eq.s32.totalorder %s28, 1
      %p358 = por %p356, %p357
      %p359 = scmp.ne.s32.totalorder %s351, %s354
      %p360 = scmp.eq.s32.totalorder %s28, 0
      %p361 = por %p359, %p360
      %p362 = scmp.ne.s32.totalorder %s351, %s354
      %p363 = scmp.eq.s32.totalorder %s33, 1
      %p364 = por %p362, %p363
      %p365 = scmp.ne.s32.totalorder %s354, %s355
      %p366 = scmp.eq.s32.totalorder %s33, 0
      %p367 = por %p365, %p366
      %p368 = scmp.ne.s32.totalorder %s354, %s355
      %p369 = scmp.eq.s32.totalorder %s34, 1
      %p370 = por %p368, %p369
      %p372 = scmp.ne.s32.totalorder %s355, %s371
      %p373 = scmp.eq.s32.totalorder %s34, 0
      %p374 = por %p372, %p373
      %s375 = ssub.s32 %s28, %s35
      %p376 = scmp.eq.s32.totalorder %s375, 0
      %s378 = sadd.s32 %s377, 1
      %s379 = scalar_select %p376, %s377, %s378
      %p382 = pneg %p376
      %p383 = scmp.eq.s32.totalorder %s28, 1
      %p384 = por %p382, %p383
      %p385 = scmp.ne.s32.totalorder %s377, %s380
      %p386 = scmp.eq.s32.totalorder %s28, 0
      %p387 = por %p385, %p386
      %p388 = scmp.ne.s32.totalorder %s377, %s380
      %p389 = scmp.eq.s32.totalorder %s33, 1
      %p390 = por %p388, %p389
      %p391 = scmp.ne.s32.totalorder %s380, %s381
      %p392 = scmp.eq.s32.totalorder %s33, 0
      %p393 = por %p391, %p392
      %p394 = scmp.ne.s32.totalorder %s380, %s381
      %p395 = scmp.eq.s32.totalorder %s34, 1
      %p396 = por %p394, %p395
      %p398 = scmp.ne.s32.totalorder %s381, %s397
      %p399 = scmp.eq.s32.totalorder %s34, 0
      %p400 = por %p398, %p399
      %p401 = scmp.le.s32.totalorder 1, %s28
      %p402 = scmp.lt.s32.totalorder %s28, 3
      %p403 = pnand %p401, %p402
      %p404 = pneg %p403
      // Predicated region
      $region9: #{tpu_custom_call.1} parent=5 // pred_check
        _
      $region10: #{tpu_custom_call.1} parent=5 // pred_check_branch
        %406 = sbr.rel (%p403) target = $region12
      $region11: #{tpu_custom_call.1} parent=5 // pred_region
        %s407 = ssub.s32 %s28, 1
        // Predicated region
        $region13: #{tpu_custom_call.1} parent=11 // pred_check
          %p408 = pneg %p49
        $region14: #{tpu_custom_call.1} parent=11 // pred_check_branch
          %410 = sbr.rel (%p408) target = $region16
        $region15: #{tpu_custom_call.1} parent=11 // pred_region
          %s412 = ssub.s32 256, 256
          %413 = vsyncadd [#allocation4], %s412
          %s414 = sshll.u32 [#allocation3], 4
          %s415 = int_to_ptr.vmem [resolvable:$true] %s414
          %420 = dma.hbm_to_vmem [thread:$0]  %s0, 256, %s415, [#allocation4], 128, 128, 8
        $region16: #{tpu_custom_call.1} parent=11 // pred_fallthru
          _
        // Predicated region
        $region17: #{tpu_custom_call.1} parent=11 // pred_check
          %p421 = pneg %p70
        $region18: #{tpu_custom_call.1} parent=11 // pred_check_branch
          %423 = sbr.rel (%p421) target = $region20
        $region19: #{tpu_custom_call.1} parent=11 // pred_region
          %s425 = ssub.s32 256, 256
          %426 = vsyncadd [#allocation7], %s425
          %s427 = sshll.u32 [#allocation6], 4
          %s428 = int_to_ptr.vmem [resolvable:$true] %s427
          %433 = dma.hbm_to_vmem [thread:$0]  %s1, 256, %s428, [#allocation7], 128, 128, 8
        $region20: #{tpu_custom_call.1} parent=11 // pred_fallthru
          _
        // Predicated region
        $region21: #{tpu_custom_call.1} parent=11 // pred_check
          %p434 = pneg %p91
        $region22: #{tpu_custom_call.1} parent=11 // pred_check_branch
          %436 = sbr.rel (%p434) target = $region24
        $region23: #{tpu_custom_call.1} parent=11 // pred_region
          %s438 = ssub.s32 256, 256
          %439 = vsyncadd [#allocation7], %s438
          %s440 = sshll.u32 [#allocation8], 4
          %s441 = int_to_ptr.vmem [resolvable:$true] %s440
          %446 = dma.hbm_to_vmem [thread:$0]  %s2, 256, %s441, [#allocation7], 128, 128, 8
        $region24: #{tpu_custom_call.1} parent=11 // pred_fallthru
          _
        // Predicated region
        $region25: #{tpu_custom_call.1} parent=11 // pred_check
          %p447 = pneg %p112
        $region26: #{tpu_custom_call.1} parent=11 // pred_check_branch
          %449 = sbr.rel (%p447) target = $region28
        $region27: #{tpu_custom_call.1} parent=11 // pred_region
          %s451 = ssub.s32 256, 256
          %452 = vsyncadd [#allocation10], %s451
          %s453 = sshll.u32 [#allocation9], 4
          %s454 = int_to_ptr.vmem [resolvable:$true] %s453
          %459 = dma.hbm_to_vmem [thread:$0]  %s3, 256, %s454, [#allocation10], 128, 128, 8
        $region28: #{tpu_custom_call.1} parent=11 // pred_fallthru
          _
      $region12: #{tpu_custom_call.1} parent=5 // pred_fallthru
        _
      %p460 = scmp.lt.s32.totalorder %s28, 2
      // Predicated region
      $region29: #{tpu_custom_call.1} parent=5 // pred_check
        %p461 = pneg %p460
      $region30: #{tpu_custom_call.1} parent=5 // pred_check_branch
        %463 = sbr.rel (%p461) target = $region32
      $region31: #{tpu_custom_call.1} parent=5 // pred_region
        // Predicated region
        $region33: #{tpu_custom_call.1} parent=31 // pred_check
          %p464 = pneg %p132
        $region34: #{tpu_custom_call.1} parent=31 // pred_check_branch
          %466 = sbr.rel (%p464) target = $region36
        $region35: #{tpu_custom_call.1} parent=31 // pred_region
          %p467 = scmp.lt.s32.totalorder %s28, 1
          %s468 = scalar_select %p467, %s28, 1
          %s469 = smul.addr %s468, 4
          %s470 = smul.addr %s469, 8
          %s471 = scalar_lea.vmem %s4, %s470
        $region36: #{tpu_custom_call.1} parent=31 // pred_fallthru
          _
        // Predicated region
        $region37: #{tpu_custom_call.1} parent=31 // pred_check
          %p472 = pneg %p158
        $region38: #{tpu_custom_call.1} parent=31 // pred_check_branch
          %474 = sbr.rel (%p472) target = $region40
        $region39: #{tpu_custom_call.1} parent=31 // pred_region
          %p475 = scmp.lt.s32.totalorder %s28, 1
          %s476 = scalar_select %p475, %s28, 1
          %s477 = smul.addr %s476, 4
          %s478 = smul.addr %s477, 8
          %s479 = scalar_lea.vmem %s5, %s478
        $region40: #{tpu_custom_call.1} parent=31 // pred_fallthru
          _
        // Predicated region
        $region41: #{tpu_custom_call.1} parent=31 // pred_check
          %p480 = pneg %p184
        $region42: #{tpu_custom_call.1} parent=31 // pred_check_branch
          %482 = sbr.rel (%p480) target = $region44
        $region43: #{tpu_custom_call.1} parent=31 // pred_region
          %p483 = scmp.lt.s32.totalorder %s28, 1
          %s484 = scalar_select %p483, %s28, 1
          %s485 = smul.addr %s484, 4
          %s486 = smul.addr %s485, 8
          %s487 = scalar_lea.vmem %s6, %s486
        $region44: #{tpu_custom_call.1} parent=31 // pred_fallthru
          _
        // Predicated region
        $region45: #{tpu_custom_call.1} parent=31 // pred_check
          %p488 = pneg %p210
        $region46: #{tpu_custom_call.1} parent=31 // pred_check_branch
          %490 = sbr.rel (%p488) target = $region48
        $region47: #{tpu_custom_call.1} parent=31 // pred_region
          %s491 = sand.u32 %s28, 1
          %s492 = scalar_lea.sflag [#allocation4], %s491
          %s493 = sand.u32 %s200, 1
          %s494 = smul.addr %s493, 32
          %s495 = scalar_lea.vmem [#allocation11], %s494
          %s497 = ssub.s32 512, 512
          %498 = vsyncadd %s492, %s497
          %s499 = smul.addr %s28, 4
          %s500 = smul.addr %s499, 128
          %s501 = scalar_lea.hbm %s7, %s500
          %s502 = sshll.u32 %s495, 4
          %s503 = int_to_ptr.vmem [resolvable:$true] %s502
          %508 = dma.hbm_to_vmem [thread:$0]  %s501, 512, %s503, %s492, 128, 128, 8
        $region48: #{tpu_custom_call.1} parent=31 // pred_fallthru
          _
        // Predicated region
        $region49: #{tpu_custom_call.1} parent=31 // pred_check
          %p509 = pneg %p236
        $region50: #{tpu_custom_call.1} parent=31 // pred_check_branch
          %511 = sbr.rel (%p509) target = $region52
        $region51: #{tpu_custom_call.1} parent=31 // pred_region
          %s512 = sand.u32 %s28, 1
          %s513 = scalar_lea.sflag [#allocation4], %s512
          %s514 = sand.u32 %s226, 1
          %s515 = smul.addr %s514, 32
          %s516 = scalar_lea.vmem [#allocation12], %s515
          %s518 = ssub.s32 512, 512
          %519 = vsyncadd %s513, %s518
          %s520 = smul.addr %s28, 4
          %s521 = smul.addr %s520, 128
          %s522 = scalar_lea.hbm %s8, %s521
          %s523 = sshll.u32 %s516, 4
          %s524 = int_to_ptr.vmem [resolvable:$true] %s523
          %529 = dma.hbm_to_vmem [thread:$0]  %s522, 512, %s524, %s513, 128, 128, 8
        $region52: #{tpu_custom_call.1} parent=31 // pred_fallthru
          _
        // Predicated region
        $region53: #{tpu_custom_call.1} parent=31 // pred_check
          %p530 = pneg %p262
        $region54: #{tpu_custom_call.1} parent=31 // pred_check_branch
          %532 = sbr.rel (%p530) target = $region56
        $region55: #{tpu_custom_call.1} parent=31 // pred_region
          %s533 = sand.u32 %s28, 1
          %s534 = scalar_lea.sflag [#allocation4], %s533
          %s535 = sand.u32 %s252, 1
          %s536 = smul.addr %s535, 32
          %s537 = scalar_lea.vmem [#allocation13], %s536
          %s539 = ssub.s32 512, 512
          %540 = vsyncadd %s534, %s539
          %s541 = smul.addr %s28, 4
          %s542 = smul.addr %s541, 128
          %s543 = scalar_lea.hbm %s9, %s542
          %s544 = sshll.u32 %s537, 4
          %s545 = int_to_ptr.vmem [resolvable:$true] %s544
          %550 = dma.hbm_to_vmem [thread:$0]  %s543, 512, %s545, %s534, 128, 128, 8
        $region56: #{tpu_custom_call.1} parent=31 // pred_fallthru
          _
        // Predicated region
        $region57: #{tpu_custom_call.1} parent=31 // pred_check
          %p551 = pneg %p288
        $region58: #{tpu_custom_call.1} parent=31 // pred_check_branch
          %553 = sbr.rel (%p551) target = $region60
        $region59: #{tpu_custom_call.1} parent=31 // pred_region
          %p554 = scmp.lt.s32.totalorder %s28, 1
          %s555 = scalar_select %p554, %s28, 1
          %s556 = smul.addr %s555, 8
          %s557 = smul.addr %s556, 8
          %s558 = scalar_lea.vmem %s10, %s557
        $region60: #{tpu_custom_call.1} parent=31 // pred_fallthru
          _
        // Predicated region
        $region61: #{tpu_custom_call.1} parent=31 // pred_check
          %p559 = pneg %p314
        $region62: #{tpu_custom_call.1} parent=31 // pred_check_branch
          %561 = sbr.rel (%p559) target = $region64
        $region63: #{tpu_custom_call.1} parent=31 // pred_region
          %p562 = scmp.lt.s32.totalorder %s28, 1
          %s563 = scalar_select %p562, %s28, 1
          %s564 = smul.addr %s563, 8
          %s565 = scalar_lea.vmem %s11, %s564
        $region64: #{tpu_custom_call.1} parent=31 // pred_fallthru
          _
      $region32: #{tpu_custom_call.1} parent=5 // pred_fallthru
        _
      %p566 = scmp.le.s32.totalorder 1, %s28
      %p567 = scmp.lt.s32.totalorder %s28, 3
      %p568 = pnand %p566, %p567
      %p569 = pneg %p568
      // Predicated region
      $region65: #{tpu_custom_call.1} parent=5 // pred_check
        _
      $region66: #{tpu_custom_call.1} parent=5 // pred_check_branch
        %571 = sbr.rel (%p568) target = $region68
      $region67: #{tpu_custom_call.1} parent=5 // pred_region
        %s572 = ssub.s32 %s28, 1
        // Predicated region
        $region69: #{tpu_custom_call.1} parent=67 // pred_check
          %p573 = pneg %p49
        $region70: #{tpu_custom_call.1} parent=67 // pred_check_branch
          %575 = sbr.rel (%p573) target = $region72
        $region71: #{tpu_custom_call.1} parent=67 // pred_region
          %576 = dma.done [#allocation4], 256
        $region72: #{tpu_custom_call.1} parent=67 // pred_fallthru
          _
        // Predicated region
        $region73: #{tpu_custom_call.1} parent=67 // pred_check
          %p577 = pneg %p70
        $region74: #{tpu_custom_call.1} parent=67 // pred_check_branch
          %579 = sbr.rel (%p577) target = $region76
        $region75: #{tpu_custom_call.1} parent=67 // pred_region
          %580 = dma.done [#allocation7], 256
        $region76: #{tpu_custom_call.1} parent=67 // pred_fallthru
          _
        // Predicated region
        $region77: #{tpu_custom_call.1} parent=67 // pred_check
          %p581 = pneg %p91
        $region78: #{tpu_custom_call.1} parent=67 // pred_check_branch
          %583 = sbr.rel (%p581) target = $region80
        $region79: #{tpu_custom_call.1} parent=67 // pred_region
          %584 = dma.done [#allocation7], 256
        $region80: #{tpu_custom_call.1} parent=67 // pred_fallthru
          _
        // Predicated region
        $region81: #{tpu_custom_call.1} parent=67 // pred_check
          %p585 = pneg %p112
        $region82: #{tpu_custom_call.1} parent=67 // pred_check_branch
          %587 = sbr.rel (%p585) target = $region84
        $region83: #{tpu_custom_call.1} parent=67 // pred_region
          %588 = dma.done [#allocation10], 256
        $region84: #{tpu_custom_call.1} parent=67 // pred_fallthru
          _
        %s589 = sand.u32 %s33, 1
        %s590 = scalar_lea.sflag [#allocation4], %s589
        %s591 = sand.u32 %s203, 1
        %s592 = smul.addr %s591, 32
        %s593 = scalar_lea.vmem [#allocation11], %s592
        // Predicated region
        $region85: #{tpu_custom_call.1} parent=67 // pred_check
          %p594 = pneg %p216
        $region86: #{tpu_custom_call.1} parent=67 // pred_check_branch
          %596 = sbr.rel (%p594) target = $region88
        $region87: #{tpu_custom_call.1} parent=67 // pred_region
          %597 = dma.done %s590, 512
        $region88: #{tpu_custom_call.1} parent=67 // pred_fallthru
          _
        %s598 = sand.u32 %s33, 1
        %s599 = scalar_lea.sflag [#allocation4], %s598
        %s600 = sand.u32 %s229, 1
        %s601 = smul.addr %s600, 32
        %s602 = scalar_lea.vmem [#allocation12], %s601
        // Predicated region
        $region89: #{tpu_custom_call.1} parent=67 // pred_check
          %p603 = pneg %p242
        $region90: #{tpu_custom_call.1} parent=67 // pred_check_branch
          %605 = sbr.rel (%p603) target = $region92
        $region91: #{tpu_custom_call.1} parent=67 // pred_region
          %606 = dma.done %s599, 512
        $region92: #{tpu_custom_call.1} parent=67 // pred_fallthru
          _
        %s607 = sand.u32 %s33, 1
        %s608 = scalar_lea.sflag [#allocation4], %s607
        %s609 = sand.u32 %s255, 1
        %s610 = smul.addr %s609, 32
        %s611 = scalar_lea.vmem [#allocation13], %s610
        // Predicated region
        $region93: #{tpu_custom_call.1} parent=67 // pred_check
          %p612 = pneg %p268
        $region94: #{tpu_custom_call.1} parent=67 // pred_check_branch
          %614 = sbr.rel (%p612) target = $region96
        $region95: #{tpu_custom_call.1} parent=67 // pred_region
          %615 = dma.done %s608, 512
        $region96: #{tpu_custom_call.1} parent=67 // pred_fallthru
          _
        %p616 = pneg %p49
        %p617 = pneg %p46
        %p618 = pneg %p70
        %p619 = pneg %p67
        %p620 = pneg %p91
        %p621 = pneg %p88
        %p622 = pneg %p112
        %p623 = pneg %p109
        %p624 = scmp.lt.s32.totalorder %s33, 1
        %s625 = scalar_select %p624, %s33, 1
        %s626 = smul.addr %s625, 4
        %s627 = smul.addr %s626, 8
        %s628 = scalar_lea.vmem %s4, %s627
        %p629 = pneg %p138
        %p630 = pneg %p135
        %p631 = scmp.lt.s32.totalorder %s33, 1
        %s632 = scalar_select %p631, %s33, 1
        %s633 = smul.addr %s632, 4
        %s634 = smul.addr %s633, 8
        %s635 = scalar_lea.vmem %s5, %s634
        %p636 = pneg %p164
        %p637 = pneg %p161
        %p638 = scmp.lt.s32.totalorder %s33, 1
        %s639 = scalar_select %p638, %s33, 1
        %s640 = smul.addr %s639, 4
        %s641 = smul.addr %s640, 8
        %s642 = scalar_lea.vmem %s6, %s641
        %p643 = pneg %p190
        %p644 = pneg %p187
        %s645 = sand.u32 %s33, 1
        %s646 = scalar_lea.sflag [#allocation4], %s645
        %s647 = sand.u32 %s203, 1
        %s648 = smul.addr %s647, 32
        %s649 = scalar_lea.vmem [#allocation11], %s648
        %p650 = pneg %p216
        %p651 = pneg %p213
        %s652 = sand.u32 %s33, 1
        %s653 = scalar_lea.sflag [#allocation4], %s652
        %s654 = sand.u32 %s229, 1
        %s655 = smul.addr %s654, 32
        %s656 = scalar_lea.vmem [#allocation12], %s655
        %p657 = pneg %p242
        %p658 = pneg %p239
        %s659 = sand.u32 %s33, 1
        %s660 = scalar_lea.sflag [#allocation4], %s659
        %s661 = sand.u32 %s255, 1
        %s662 = smul.addr %s661, 32
        %s663 = scalar_lea.vmem [#allocation13], %s662
        %p664 = pneg %p268
        %p665 = pneg %p265
        %p666 = scmp.lt.s32.totalorder %s33, 1
        %s667 = scalar_select %p666, %s33, 1
        %s668 = smul.addr %s667, 8
        %s669 = smul.addr %s668, 8
        %s670 = scalar_lea.vmem %s10, %s669
        %p671 = pneg %p294
        %p672 = pneg %p291
        %p673 = scmp.lt.s32.totalorder %s33, 1
        %s674 = scalar_select %p673, %s33, 1
        %s675 = smul.addr %s674, 8
        %s676 = scalar_lea.vmem %s11, %s675
        %p677 = pneg %p320
        %p678 = pneg %p317
        %p679 = pneg %p341
        %p680 = pneg %p338
        %p681 = pneg %p367
        %p682 = pneg %p364
        %s683 = sand.u32 %s33, 1
        %s684 = scalar_lea.sflag [#allocation16], %s683
        %s685 = sand.u32 %s354, 1
        %s686 = smul.addr %s685, 64
        %s687 = scalar_lea.vmem [#allocation15], %s686
        %p688 = pneg %p393
        %p689 = pneg %p390
        %s690 = sand.u32 %s33, 1
        %s691 = scalar_lea.sflag [#allocation16], %s690
        %s692 = sand.u32 %s380, 1
        %s693 = smul.addr %s692, 64
        %s694 = scalar_lea.vmem [#allocation17], %s693
        %p695 = scmp.lt.s32.totalorder %s33, 1
        %s696 = scalar_select %p695, %s33, 1
        %s697 = smul.addr %s696, 4
        %s698 = smul.addr %s697, 8
        %s699 = scalar_lea.vmem %s4, %s698
        %p700 = scmp.lt.s32.totalorder %s33, 1
        %s701 = scalar_select %p700, %s33, 1
        %s702 = smul.addr %s701, 4
        %s703 = smul.addr %s702, 8
        %s704 = scalar_lea.vmem %s5, %s703
        %p705 = scmp.lt.s32.totalorder %s33, 1
        %s706 = scalar_select %p705, %s33, 1
        %s707 = smul.addr %s706, 4
        %s708 = smul.addr %s707, 8
        %s709 = scalar_lea.vmem %s6, %s708
        %p710 = scmp.lt.s32.totalorder %s33, 1
        %s711 = scalar_select %p710, %s33, 1
        %s712 = smul.addr %s711, 8
        %s713 = smul.addr %s712, 8
        %s714 = scalar_lea.vmem %s10, %s713
        %p715 = scmp.lt.s32.totalorder %s33, 1
        %s716 = scalar_select %p715, %s33, 1
        %s717 = smul.addr %s716, 8
        %s718 = scalar_lea.vmem %s11, %s717
        %p719 = scmp.eq.s32.totalorder %s33, 0
        // Predicated region
        $region97: #{tpu_custom_call.1} parent=67 // pred_check
          %p720 = pneg %p719
        $region98: #{tpu_custom_call.1} parent=67 // pred_check_branch
          %722 = sbr.rel (%p720) target = $region100
        $region99: #{tpu_custom_call.1} parent=67 // pred_region
          %v723 = vld [vmem:[#allocation3] sm:$0xff]
          %v724 = vld [vmem:[#allocation3 + $0x8] sm:$0xff]
          %vm725 = vcmask 261120
          %726 = vst.msk [vmem:[#allocation2] sm:$0xff] %vm725, %v723
          %727 = vst.msk [vmem:[#allocation2 + $0x8] sm:$0xff] %vm725, %v724
        $region100: #{tpu_custom_call.1} parent=67 // pred_fallthru
          _
        %v728 = vld [vmem:[#allocation2] sm:$0xff]
        %v729 = vld [vmem:[#allocation2 + $0x8] sm:$0xff]
        %v730 = vld [vmem:[#allocation6] sm:$0xff]
        %v731 = vld [vmem:[#allocation6 + $0x8] sm:$0xff]
        %v732 = vld [vmem:[#allocation8] sm:$0xff]
        %v733 = vld [vmem:[#allocation8 + $0x8] sm:$0xff]
        %v734 = vld [vmem:[#allocation9] sm:$0xff]
        %v735 = vld [vmem:[#allocation9 + $0x8] sm:$0xff]
        %v736 = vld [vmem:[%s718] sm:$0x3f]
        %v737 = vld [vmem:[%s699] sm:$0xff]
        %v738 = vld [vmem:[%s699 + $0x8] sm:$0xff]
        %v739 = vld [vmem:[%s699 + $0x10] sm:$0xff]
        %v740 = vld [vmem:[%s699 + $0x18] sm:$0xff]
        %vm741 = vcmask 261120
        %v743 = vsel %vm741, %v728, 0
        %v746 = vsel %vm741, %v729, 0
        %748 = vmatprep.subr.mxu0 0.0
        %749 = vmatpush1.msra.mxu0 %v737
        %750 = vmatprep.subr.mxu0 0.0
        %751 = vmatpush1.msra.mxu0 %v738
        %752 = vmatprep.subr.mxu0 0.0
        %753 = vmatpush1.msra.mxu0 %v739
        %754 = vmatprep.subr.mxu0 0.0
        %755 = vmatpush1.msra.mxu0 %v740
        %756 = vmatprep.subr.mxu0 0.0
        %757 = vmatpush1.msra.mxu0 0.0
        %758 = vmatprep.subr.mxu0 0.0
        %759 = vmatpush1.msra.mxu0 0.0
        %760 = vmatprep.subr.mxu0 0.0
        %761 = vmatpush1.msra.mxu0 0.0
        %762 = vmatprep.subr.mxu0 0.0
        %763 = vmatpush1.msra.mxu0 0.0
        %764 = vmatprep.subr.mxu0 0.0
        %765 = vmatpush1.msra.mxu0 0.0
        %766 = vmatprep.subr.mxu0 0.0
        %767 = vmatpush1.msra.mxu0 0.0
        %768 = vmatprep.subr.mxu0 0.0
        %769 = vmatpush1.msra.mxu0 0.0
        %770 = vmatprep.subr.mxu0 0.0
        %771 = vmatpush1.msra.mxu0 0.0
        %772 = vmatprep.subr.mxu0 0.0
        %773 = vmatpush1.msra.mxu0 0.0
        %774 = vmatprep.subr.mxu0 0.0
        %775 = vmatpush1.msra.mxu0 0.0
        %776 = vmatprep.subr.mxu0 0.0
        %777 = vmatpush1.msra.mxu0 0.0
        %778 = vmatprep.subr.mxu0 0.0
        %779 = vmatpush1.msra.mxu0 0.0
        %780 = vmatprep.subr.mxu0 0.0
        %781 = vmatpush1.msra.mxu0 0.0
        %782 = vmatprep.subr.mxu0 0.0
        %783 = vmatpush1.msra.mxu0 0.0
        %784 = vmatprep.subr.mxu0 0.0
        %785 = vmatpush1.msra.mxu0 0.0
        %786 = vmatprep.subr.mxu0 0.0
        %787 = vmatpush1.msra.mxu0 0.0
        %788 = vmatprep.subr.mxu0 0.0
        %789 = vmatpush1.msra.mxu0 0.0
        %790 = vmatprep.subr.mxu0 0.0
        %791 = vmatpush1.msra.mxu0 0.0
        %792 = vmatprep.subr.mxu0 0.0
        %793 = vmatpush1.msra.mxu0 0.0
        %794 = vmatprep.subr.mxu0 0.0
        %795 = vmatpush1.msra.mxu0 0.0
        %796 = vmatprep.subr.mxu0 0.0
        %797 = vmatpush1.msra.mxu0 0.0
        %798 = vmatprep.subr.mxu0 0.0
        %799 = vmatpush1.msra.mxu0 0.0
        %800 = vmatprep.subr.mxu0 0.0
        %801 = vmatpush1.msra.mxu0 0.0
        %802 = vmatprep.subr.mxu0 0.0
        %803 = vmatpush1.msra.mxu0 0.0
        %804 = vmatprep.subr.mxu0 0.0
        %805 = vmatpush1.msra.mxu0 0.0
        %806 = vmatprep.subr.mxu0 0.0
        %807 = vmatpush1.msra.mxu0 0.0
        %808 = vmatprep.subr.mxu0 0.0
        %809 = vmatpush1.msra.mxu0 0.0
        %810 = vmatprep.subr.mxu0 0.0
        %811 = vmatpush1.msra.mxu0 0.0
        %812 = vmatprep.mubr.f32.mxu0 0.0
        %813 = vmatmul.mubr.f32.gmra.mrb[0].mxu0 %v743
        %v814 = vpop.f32.mrb[0].mxu0
        %v815 = vadd.f32 0.0, %v814
        %v816 = vpop.f32.mrb[0].mxu0
        %817 = vmatprep.mubr.f32.mxu0 0.0
        %818 = vmatmul.mubr.f32.gmra.mrb[0].mxu0 %v746
        %v819 = vpop.f32.mrb[0].mxu0
        %v820 = vadd.f32 0.0, %v819
        %v821 = vpop.f32.mrb[0].mxu0
        %822 = vdwg.mxu0
        %v823 = vld [vmem:[%s704] sm:$0xff]
        %v824 = vld [vmem:[%s704 + $0x8] sm:$0xff]
        %v825 = vld [vmem:[%s704 + $0x10] sm:$0xff]
        %v826 = vld [vmem:[%s704 + $0x18] sm:$0xff]
        %828 = vrot.lane.b32.xlu0 %v815, 96
        %v829 = vpop.permute.xlu0 %828
        %vm830 = vcmask 64512
        %v831 = vsel %vm830, %v815, 0
        %v833 = vsel %vm830, %v829, 0
        %835 = vmatprep.subr.mxu0 0.0
        %836 = vmatpush1.xpose.msra.mxu0 %v833
        %837 = vmatprep.subr.mxu0 0.0
        %838 = vmatpush1.xpose.msra.mxu0 0.0
        %839 = vmatprep.subr.mxu0 0.0
        %840 = vmatpush1.xpose.msra.mxu0 0.0
        %841 = vmatprep.subr.mxu0 0.0
        %842 = vmatpush1.xpose.msra.mxu0 0.0
        %843 = vmatprep.subr.mxu0 0.0
        %844 = vmatpush1.xpose.msra.mxu0 0.0
        %845 = vmatprep.subr.mxu0 0.0
        %846 = vmatpush1.xpose.msra.mxu0 0.0
        %847 = vmatprep.subr.mxu0 0.0
        %848 = vmatpush1.xpose.msra.mxu0 0.0
        %849 = vmatprep.subr.mxu0 0.0
        %850 = vmatpush1.xpose.msra.mxu0 0.0
        %851 = vmatprep.subr.mxu0 0.0
        %852 = vmatpush1.xpose.msra.mxu0 0.0
        %853 = vmatprep.subr.mxu0 0.0
        %854 = vmatpush1.xpose.msra.mxu0 0.0
        %855 = vmatprep.subr.mxu0 0.0
        %856 = vmatpush1.xpose.msra.mxu0 0.0
        %857 = vmatprep.subr.mxu0 0.0
        %858 = vmatpush1.xpose.msra.mxu0 0.0
        %859 = vmatprep.subr.mxu0 0.0
        %860 = vmatpush1.xpose.msra.mxu0 0.0
        %861 = vmatprep.subr.mxu0 0.0
        %862 = vmatpush1.xpose.msra.mxu0 0.0
        %863 = vmatprep.subr.mxu0 0.0
        %864 = vmatpush1.xpose.msra.mxu0 0.0
        %865 = vmatprep.subr.mxu0 0.0
        %866 = vmatpush1.xpose.msra.mxu0 0.0
        %867 = vmatprep.subr.mxu0 0.0
        %868 = vmatpush1.xpose.msra.mxu0 0.0
        %869 = vmatprep.subr.mxu0 0.0
        %870 = vmatpush1.xpose.msra.mxu0 0.0
        %871 = vmatprep.subr.mxu0 0.0
        %872 = vmatpush1.xpose.msra.mxu0 0.0
        %873 = vmatprep.subr.mxu0 0.0
        %874 = vmatpush1.xpose.msra.mxu0 0.0
        %875 = vmatprep.subr.mxu0 0.0
        %876 = vmatpush1.xpose.msra.mxu0 0.0
        %877 = vmatprep.subr.mxu0 0.0
        %878 = vmatpush1.xpose.msra.mxu0 0.0
        %879 = vmatprep.subr.mxu0 0.0
        %880 = vmatpush1.xpose.msra.mxu0 0.0
        %881 = vmatprep.subr.mxu0 0.0
        %882 = vmatpush1.xpose.msra.mxu0 0.0
        %883 = vmatprep.subr.mxu0 0.0
        %884 = vmatpush1.xpose.msra.mxu0 0.0
        %885 = vmatprep.subr.mxu0 0.0
        %886 = vmatpush1.xpose.msra.mxu0 0.0
        %887 = vmatprep.subr.mxu0 0.0
        %888 = vmatpush1.xpose.msra.mxu0 0.0
        %889 = vmatprep.subr.mxu0 0.0
        %890 = vmatpush1.xpose.msra.mxu0 0.0
        %891 = vmatprep.subr.mxu0 0.0
        %892 = vmatpush1.xpose.msra.mxu0 0.0
        %893 = vmatprep.subr.mxu0 0.0
        %894 = vmatpush1.xpose.msra.mxu0 0.0
        %895 = vmatprep.subr.mxu0 0.0
        %896 = vmatpush1.xpose.msra.mxu0 0.0
        %897 = vmatprep.subr.mxu0 0.0
        %898 = vmatpush1.xpose.msra.mxu0 0.0
        %899 = vmatprep.mubr.f32.mxu0 0.0
        %900 = vmatmul.mubr.f32.gmra.mrb[0].mxu0 %v831
        %v901 = vpop.f32.mrb[0].mxu0
        %v902 = vadd.f32 0.0, %v901
        %v903 = vpop.f32.mrb[0].mxu0
        %904 = vdwg.mxu0
        %906 = vrot.lane.b32.xlu0 %v820, 96
        %v907 = vpop.permute.xlu0 %906
        %v908 = vsel %vm830, %v820, 0
        %v910 = vsel %vm830, %v907, 0
        %912 = vmatprep.subr.mxu0 0.0
        %913 = vmatpush1.xpose.msra.mxu0 %v910
        %914 = vmatprep.subr.mxu0 0.0
        %915 = vmatpush1.xpose.msra.mxu0 0.0
        %916 = vmatprep.subr.mxu0 0.0
        %917 = vmatpush1.xpose.msra.mxu0 0.0
        %918 = vmatprep.subr.mxu0 0.0
        %919 = vmatpush1.xpose.msra.mxu0 0.0
        %920 = vmatprep.subr.mxu0 0.0
        %921 = vmatpush1.xpose.msra.mxu0 0.0
        %922 = vmatprep.subr.mxu0 0.0
        %923 = vmatpush1.xpose.msra.mxu0 0.0
        %924 = vmatprep.subr.mxu0 0.0
        %925 = vmatpush1.xpose.msra.mxu0 0.0
        %926 = vmatprep.subr.mxu0 0.0
        %927 = vmatpush1.xpose.msra.mxu0 0.0
        %928 = vmatprep.subr.mxu0 0.0
        %929 = vmatpush1.xpose.msra.mxu0 0.0
        %930 = vmatprep.subr.mxu0 0.0
        %931 = vmatpush1.xpose.msra.mxu0 0.0
        %932 = vmatprep.subr.mxu0 0.0
        %933 = vmatpush1.xpose.msra.mxu0 0.0
        %934 = vmatprep.subr.mxu0 0.0
        %935 = vmatpush1.xpose.msra.mxu0 0.0
        %936 = vmatprep.subr.mxu0 0.0
        %937 = vmatpush1.xpose.msra.mxu0 0.0
        %938 = vmatprep.subr.mxu0 0.0
        %939 = vmatpush1.xpose.msra.mxu0 0.0
        %940 = vmatprep.subr.mxu0 0.0
        %941 = vmatpush1.xpose.msra.mxu0 0.0
        %942 = vmatprep.subr.mxu0 0.0
        %943 = vmatpush1.xpose.msra.mxu0 0.0
        %944 = vmatprep.subr.mxu0 0.0
        %945 = vmatpush1.xpose.msra.mxu0 0.0
        %946 = vmatprep.subr.mxu0 0.0
        %947 = vmatpush1.xpose.msra.mxu0 0.0
        %948 = vmatprep.subr.mxu0 0.0
        %949 = vmatpush1.xpose.msra.mxu0 0.0
        %950 = vmatprep.subr.mxu0 0.0
        %951 = vmatpush1.xpose.msra.mxu0 0.0
        %952 = vmatprep.subr.mxu0 0.0
        %953 = vmatpush1.xpose.msra.mxu0 0.0
        %954 = vmatprep.subr.mxu0 0.0
        %955 = vmatpush1.xpose.msra.mxu0 0.0
        %956 = vmatprep.subr.mxu0 0.0
        %957 = vmatpush1.xpose.msra.mxu0 0.0
        %958 = vmatprep.subr.mxu0 0.0
        %959 = vmatpush1.xpose.msra.mxu0 0.0
        %960 = vmatprep.subr.mxu0 0.0
        %961 = vmatpush1.xpose.msra.mxu0 0.0
        %962 = vmatprep.subr.mxu0 0.0
        %963 = vmatpush1.xpose.msra.mxu0 0.0
        %964 = vmatprep.subr.mxu0 0.0
        %965 = vmatpush1.xpose.msra.mxu0 0.0
        %966 = vmatprep.subr.mxu0 0.0
        %967 = vmatpush1.xpose.msra.mxu0 0.0
        %968 = vmatprep.subr.mxu0 0.0
        %969 = vmatpush1.xpose.msra.mxu0 0.0
        %970 = vmatprep.subr.mxu0 0.0
        %971 = vmatpush1.xpose.msra.mxu0 0.0
        %972 = vmatprep.subr.mxu0 0.0
        %973 = vmatpush1.xpose.msra.mxu0 0.0
        %974 = vmatprep.subr.mxu0 0.0
        %975 = vmatpush1.xpose.msra.mxu0 0.0
        %976 = vmatprep.mubr.f32.mxu0 0.0
        %977 = vmatmul.mubr.f32.gmra.mrb[0].mxu0 %v908
        %v978 = vpop.f32.mrb[0].mxu0
        %v979 = vadd.f32 0.0, %v978
        %v980 = vpop.f32.mrb[0].mxu0
        %981 = vdwg.mxu0
        %v982 = vmul.f32 %v902, 0.35355338
        %v983 = vmul.f32 %v979, 0.35355338
        %vm984 = vcmp.gt.f32.partialorder %v732, 0.0
        %vm985 = vcmp.gt.f32.partialorder %v733, 0.0
        %v986 = vsel %vm984, -1e+09, %v982
        %v987 = vsel %vm985, -1e+09, %v983
        %v988 = vsel %vm830, %v986, -inf
        %989 = vmax.xlane.f32.xlu0 %v988
        %v990 = vpop.xlane.xlu0 %989
        %v991 = vsel %vm830, %v987, -inf
        %992 = vmax.xlane.f32.xlu0 %v991
        %v993 = vpop.xlane.xlu0 %992
        %v994 = vsub.f32 %v986, %v990
        %v995 = vsub.f32 %v987, %v993
        %v996 = vmul.f32 %v994, 1.442695
        %v997 = vpow.pop %v996
        %v998 = vmul.f32 %v995, 1.442695
        %v999 = vpow.pop %v998
        %v1000 = vsel %vm830, %v997, 0.0
        %1001 = vadd.xlane.f32.xlu0 %v1000
        %v1002 = vpop.xlane.xlu0 %1001
        %v1003 = vsel %vm830, %v999, 0.0
        %1004 = vadd.xlane.f32.xlu0 %v1003
        %v1005 = vpop.xlane.xlu0 %1004
        %v1006 = vrcp.pop %v1002
        %v1007 = vrcp.pop %v1005
        %v1008 = vmul.f32 %v997, %v1006
        %v1009 = vmul.f32 %v999, %v1007
        %1010 = vrot.lane.b32.xlu0 %v815, 64
        %v1011 = vpop.permute.xlu0 %1010
        %v1014 = vsel %vm830, %v1008, 0
        %1016 = vmatprep.subr.mxu0 0.0
        %1017 = vmatpush1.msra.mxu0 %v1011
        %1018 = vmatprep.subr.mxu0 0.0
        %1019 = vmatpush1.msra.mxu0 0.0
        %1020 = vmatprep.subr.mxu0 0.0
        %1021 = vmatpush1.msra.mxu0 0.0
        %1022 = vmatprep.subr.mxu0 0.0
        %1023 = vmatpush1.msra.mxu0 0.0
        %1024 = vmatprep.subr.mxu0 0.0
        %1025 = vmatpush1.msra.mxu0 0.0
        %1026 = vmatprep.subr.mxu0 0.0
        %1027 = vmatpush1.msra.mxu0 0.0
        %1028 = vmatprep.subr.mxu0 0.0
        %1029 = vmatpush1.msra.mxu0 0.0
        %1030 = vmatprep.subr.mxu0 0.0
        %1031 = vmatpush1.msra.mxu0 0.0
        %1032 = vmatprep.subr.mxu0 0.0
        %1033 = vmatpush1.msra.mxu0 0.0
        %1034 = vmatprep.subr.mxu0 0.0
        %1035 = vmatpush1.msra.mxu0 0.0
        %1036 = vmatprep.subr.mxu0 0.0
        %1037 = vmatpush1.msra.mxu0 0.0
        %1038 = vmatprep.subr.mxu0 0.0
        %1039 = vmatpush1.msra.mxu0 0.0
        %1040 = vmatprep.subr.mxu0 0.0
        %1041 = vmatpush1.msra.mxu0 0.0
        %1042 = vmatprep.subr.mxu0 0.0
        %1043 = vmatpush1.msra.mxu0 0.0
        %1044 = vmatprep.subr.mxu0 0.0
        %1045 = vmatpush1.msra.mxu0 0.0
        %1046 = vmatprep.subr.mxu0 0.0
        %1047 = vmatpush1.msra.mxu0 0.0
        %1048 = vmatprep.subr.mxu0 0.0
        %1049 = vmatpush1.msra.mxu0 0.0
        %1050 = vmatprep.subr.mxu0 0.0
        %1051 = vmatpush1.msra.mxu0 0.0
        %1052 = vmatprep.subr.mxu0 0.0
        %1053 = vmatpush1.msra.mxu0 0.0
        %1054 = vmatprep.subr.mxu0 0.0
        %1055 = vmatpush1.msra.mxu0 0.0
        %1056 = vmatprep.subr.mxu0 0.0
        %1057 = vmatpush1.msra.mxu0 0.0
        %1058 = vmatprep.subr.mxu0 0.0
        %1059 = vmatpush1.msra.mxu0 0.0
        %1060 = vmatprep.subr.mxu0 0.0
        %1061 = vmatpush1.msra.mxu0 0.0
        %1062 = vmatprep.subr.mxu0 0.0
        %1063 = vmatpush1.msra.mxu0 0.0
        %1064 = vmatprep.subr.mxu0 0.0
        %1065 = vmatpush1.msra.mxu0 0.0
        %1066 = vmatprep.subr.mxu0 0.0
        %1067 = vmatpush1.msra.mxu0 0.0
        %1068 = vmatprep.subr.mxu0 0.0
        %1069 = vmatpush1.msra.mxu0 0.0
        %1070 = vmatprep.subr.mxu0 0.0
        %1071 = vmatpush1.msra.mxu0 0.0
        %1072 = vmatprep.subr.mxu0 0.0
        %1073 = vmatpush1.msra.mxu0 0.0
        %1074 = vmatprep.subr.mxu0 0.0
        %1075 = vmatpush1.msra.mxu0 0.0
        %1076 = vmatprep.subr.mxu0 0.0
        %1077 = vmatpush1.msra.mxu0 0.0
        %1078 = vmatprep.subr.mxu0 0.0
        %1079 = vmatpush1.msra.mxu0 0.0
        %1080 = vmatprep.mubr.f32.mxu0 0.0
        %1081 = vmatmul.mubr.f32.gmra.mrb[0].mxu0 %v1014
        %v1082 = vpop.f32.mrb[0].mxu0
        %v1083 = vadd.f32 0.0, %v1082
        %v1084 = vpop.f32.mrb[0].mxu0
        %1085 = vdwg.mxu0
        %1086 = vrot.lane.b32.xlu0 %v820, 64
        %v1087 = vpop.permute.xlu0 %1086
        %v1090 = vsel %vm830, %v1009, 0
        %1092 = vmatprep.subr.mxu0 0.0
        %1093 = vmatpush1.msra.mxu0 %v1087
        %1094 = vmatprep.subr.mxu0 0.0
        %1095 = vmatpush1.msra.mxu0 0.0
        %1096 = vmatprep.subr.mxu0 0.0
        %1097 = vmatpush1.msra.mxu0 0.0
        %1098 = vmatprep.subr.mxu0 0.0
        %1099 = vmatpush1.msra.mxu0 0.0
        %1100 = vmatprep.subr.mxu0 0.0
        %1101 = vmatpush1.msra.mxu0 0.0
        %1102 = vmatprep.subr.mxu0 0.0
        %1103 = vmatpush1.msra.mxu0 0.0
        %1104 = vmatprep.subr.mxu0 0.0
        %1105 = vmatpush1.msra.mxu0 0.0
        %1106 = vmatprep.subr.mxu0 0.0
        %1107 = vmatpush1.msra.mxu0 0.0
        %1108 = vmatprep.subr.mxu0 0.0
        %1109 = vmatpush1.msra.mxu0 0.0
        %1110 = vmatprep.subr.mxu0 0.0
        %1111 = vmatpush1.msra.mxu0 0.0
        %1112 = vmatprep.subr.mxu0 0.0
        %1113 = vmatpush1.msra.mxu0 0.0
        %1114 = vmatprep.subr.mxu0 0.0
        %1115 = vmatpush1.msra.mxu0 0.0
        %1116 = vmatprep.subr.mxu0 0.0
        %1117 = vmatpush1.msra.mxu0 0.0
        %1118 = vmatprep.subr.mxu0 0.0
        %1119 = vmatpush1.msra.mxu0 0.0
        %1120 = vmatprep.subr.mxu0 0.0
        %1121 = vmatpush1.msra.mxu0 0.0
        %1122 = vmatprep.subr.mxu0 0.0
        %1123 = vmatpush1.msra.mxu0 0.0
        %1124 = vmatprep.subr.mxu0 0.0
        %1125 = vmatpush1.msra.mxu0 0.0
        %1126 = vmatprep.subr.mxu0 0.0
        %1127 = vmatpush1.msra.mxu0 0.0
        %1128 = vmatprep.subr.mxu0 0.0
        %1129 = vmatpush1.msra.mxu0 0.0
        %1130 = vmatprep.subr.mxu0 0.0
        %1131 = vmatpush1.msra.mxu0 0.0
        %1132 = vmatprep.subr.mxu0 0.0
        %1133 = vmatpush1.msra.mxu0 0.0
        %1134 = vmatprep.subr.mxu0 0.0
        %1135 = vmatpush1.msra.mxu0 0.0
        %1136 = vmatprep.subr.mxu0 0.0
        %1137 = vmatpush1.msra.mxu0 0.0
        %1138 = vmatprep.subr.mxu0 0.0
        %1139 = vmatpush1.msra.mxu0 0.0
        %1140 = vmatprep.subr.mxu0 0.0
        %1141 = vmatpush1.msra.mxu0 0.0
        %1142 = vmatprep.subr.mxu0 0.0
        %1143 = vmatpush1.msra.mxu0 0.0
        %1144 = vmatprep.subr.mxu0 0.0
        %1145 = vmatpush1.msra.mxu0 0.0
        %1146 = vmatprep.subr.mxu0 0.0
        %1147 = vmatpush1.msra.mxu0 0.0
        %1148 = vmatprep.subr.mxu0 0.0
        %1149 = vmatpush1.msra.mxu0 0.0
        %1150 = vmatprep.subr.mxu0 0.0
        %1151 = vmatpush1.msra.mxu0 0.0
        %1152 = vmatprep.subr.mxu0 0.0
        %1153 = vmatpush1.msra.mxu0 0.0
        %1154 = vmatprep.subr.mxu0 0.0
        %1155 = vmatpush1.msra.mxu0 0.0
        %1156 = vmatprep.mubr.f32.mxu0 0.0
        %1157 = vmatmul.mubr.f32.gmra.mrb[0].mxu0 %v1090
        %v1158 = vpop.f32.mrb[0].mxu0
        %v1159 = vadd.f32 0.0, %v1158
        %v1160 = vpop.f32.mrb[0].mxu0
        %1161 = vdwg.mxu0
        %1162 = vrot.lane.b32.xlu0 %v815, 120
        %v1163 = vpop.permute.xlu0 %1162
        %1164 = vrot.lane.b32.xlu0 %v815, 88
        %v1165 = vpop.permute.xlu0 %1164
        %v1166 = vsel %vm830, %v1163, 0
        %v1168 = vsel %vm830, %v1165, 0
        %1170 = vmatprep.subr.mxu0 0.0
        %1171 = vmatpush1.xpose.msra.mxu0 %v1168
        %1172 = vmatprep.subr.mxu0 0.0
        %1173 = vmatpush1.xpose.msra.mxu0 0.0
        %1174 = vmatprep.subr.mxu0 0.0
        %1175 = vmatpush1.xpose.msra.mxu0 0.0
        %1176 = vmatprep.subr.mxu0 0.0
        %1177 = vmatpush1.xpose.msra.mxu0 0.0
        %1178 = vmatprep.subr.mxu0 0.0
        %1179 = vmatpush1.xpose.msra.mxu0 0.0
        %1180 = vmatprep.subr.mxu0 0.0
        %1181 = vmatpush1.xpose.msra.mxu0 0.0
        %1182 = vmatprep.subr.mxu0 0.0
        %1183 = vmatpush1.xpose.msra.mxu0 0.0
        %1184 = vmatprep.subr.mxu0 0.0
        %1185 = vmatpush1.xpose.msra.mxu0 0.0
        %1186 = vmatprep.subr.mxu0 0.0
        %1187 = vmatpush1.xpose.msra.mxu0 0.0
        %1188 = vmatprep.subr.mxu0 0.0
        %1189 = vmatpush1.xpose.msra.mxu0 0.0
        %1190 = vmatprep.subr.mxu0 0.0
        %1191 = vmatpush1.xpose.msra.mxu0 0.0
        %1192 = vmatprep.subr.mxu0 0.0
        %1193 = vmatpush1.xpose.msra.mxu0 0.0
        %1194 = vmatprep.subr.mxu0 0.0
        %1195 = vmatpush1.xpose.msra.mxu0 0.0
        %1196 = vmatprep.subr.mxu0 0.0
        %1197 = vmatpush1.xpose.msra.mxu0 0.0
        %1198 = vmatprep.subr.mxu0 0.0
        %1199 = vmatpush1.xpose.msra.mxu0 0.0
        %1200 = vmatprep.subr.mxu0 0.0
        %1201 = vmatpush1.xpose.msra.mxu0 0.0
        %1202 = vmatprep.subr.mxu0 0.0
        %1203 = vmatpush1.xpose.msra.mxu0 0.0
        %1204 = vmatprep.subr.mxu0 0.0
        %1205 = vmatpush1.xpose.msra.mxu0 0.0
        %1206 = vmatprep.subr.mxu0 0.0
        %1207 = vmatpush1.xpose.msra.mxu0 0.0
        %1208 = vmatprep.subr.mxu0 0.0
        %1209 = vmatpush1.xpose.msra.mxu0 0.0
        %1210 = vmatprep.subr.mxu0 0.0
        %1211 = vmatpush1.xpose.msra.mxu0 0.0
        %1212 = vmatprep.subr.mxu0 0.0
        %1213 = vmatpush1.xpose.msra.mxu0 0.0
        %1214 = vmatprep.subr.mxu0 0.0
        %1215 = vmatpush1.xpose.msra.mxu0 0.0
        %1216 = vmatprep.subr.mxu0 0.0
        %1217 = vmatpush1.xpose.msra.mxu0 0.0
        %1218 = vmatprep.subr.mxu0 0.0
        %1219 = vmatpush1.xpose.msra.mxu0 0.0
        %1220 = vmatprep.subr.mxu0 0.0
        %1221 = vmatpush1.xpose.msra.mxu0 0.0
        %1222 = vmatprep.subr.mxu0 0.0
        %1223 = vmatpush1.xpose.msra.mxu0 0.0
        %1224 = vmatprep.subr.mxu0 0.0
        %1225 = vmatpush1.xpose.msra.mxu0 0.0
        %1226 = vmatprep.subr.mxu0 0.0
        %1227 = vmatpush1.xpose.msra.mxu0 0.0
        %1228 = vmatprep.subr.mxu0 0.0
        %1229 = vmatpush1.xpose.msra.mxu0 0.0
        %1230 = vmatprep.subr.mxu0 0.0
        %1231 = vmatpush1.xpose.msra.mxu0 0.0
        %1232 = vmatprep.subr.mxu0 0.0
        %1233 = vmatpush1.xpose.msra.mxu0 0.0
        %1234 = vmatprep.mubr.f32.mxu0 0.0
        %1235 = vmatmul.mubr.f32.gmra.mrb[0].mxu0 %v1166
        %v1236 = vpop.f32.mrb[0].mxu0
        %v1237 = vadd.f32 0.0, %v1236
        %v1238 = vpop.f32.mrb[0].mxu0
        %1239 = vdwg.mxu0
        %1240 = vrot.lane.b32.xlu0 %v820, 120
        %v1241 = vpop.permute.xlu0 %1240
        %1242 = vrot.lane.b32.xlu0 %v820, 88
        %v1243 = vpop.permute.xlu0 %1242
        %v1244 = vsel %vm830, %v1241, 0
        %v1246 = vsel %vm830, %v1243, 0
        %1248 = vmatprep.subr.mxu0 0.0
        %1249 = vmatpush1.xpose.msra.mxu0 %v1246
        %1250 = vmatprep.subr.mxu0 0.0
        %1251 = vmatpush1.xpose.msra.mxu0 0.0
        %1252 = vmatprep.subr.mxu0 0.0
        %1253 = vmatpush1.xpose.msra.mxu0 0.0
        %1254 = vmatprep.subr.mxu0 0.0
        %1255 = vmatpush1.xpose.msra.mxu0 0.0
        %1256 = vmatprep.subr.mxu0 0.0
        %1257 = vmatpush1.xpose.msra.mxu0 0.0
        %1258 = vmatprep.subr.mxu0 0.0
        %1259 = vmatpush1.xpose.msra.mxu0 0.0
        %1260 = vmatprep.subr.mxu0 0.0
        %1261 = vmatpush1.xpose.msra.mxu0 0.0
        %1262 = vmatprep.subr.mxu0 0.0
        %1263 = vmatpush1.xpose.msra.mxu0 0.0
        %1264 = vmatprep.subr.mxu0 0.0
        %1265 = vmatpush1.xpose.msra.mxu0 0.0
        %1266 = vmatprep.subr.mxu0 0.0
        %1267 = vmatpush1.xpose.msra.mxu0 0.0
        %1268 = vmatprep.subr.mxu0 0.0
        %1269 = vmatpush1.xpose.msra.mxu0 0.0
        %1270 = vmatprep.subr.mxu0 0.0
        %1271 = vmatpush1.xpose.msra.mxu0 0.0
        %1272 = vmatprep.subr.mxu0 0.0
        %1273 = vmatpush1.xpose.msra.mxu0 0.0
        %1274 = vmatprep.subr.mxu0 0.0
        %1275 = vmatpush1.xpose.msra.mxu0 0.0
        %1276 = vmatprep.subr.mxu0 0.0
        %1277 = vmatpush1.xpose.msra.mxu0 0.0
        %1278 = vmatprep.subr.mxu0 0.0
        %1279 = vmatpush1.xpose.msra.mxu0 0.0
        %1280 = vmatprep.subr.mxu0 0.0
        %1281 = vmatpush1.xpose.msra.mxu0 0.0
        %1282 = vmatprep.subr.mxu0 0.0
        %1283 = vmatpush1.xpose.msra.mxu0 0.0
        %1284 = vmatprep.subr.mxu0 0.0
        %1285 = vmatpush1.xpose.msra.mxu0 0.0
        %1286 = vmatprep.subr.mxu0 0.0
        %1287 = vmatpush1.xpose.msra.mxu0 0.0
        %1288 = vmatprep.subr.mxu0 0.0
        %1289 = vmatpush1.xpose.msra.mxu0 0.0
        %1290 = vmatprep.subr.mxu0 0.0
        %1291 = vmatpush1.xpose.msra.mxu0 0.0
        %1292 = vmatprep.subr.mxu0 0.0
        %1293 = vmatpush1.xpose.msra.mxu0 0.0
        %1294 = vmatprep.subr.mxu0 0.0
        %1295 = vmatpush1.xpose.msra.mxu0 0.0
        %1296 = vmatprep.subr.mxu0 0.0
        %1297 = vmatpush1.xpose.msra.mxu0 0.0
        %1298 = vmatprep.subr.mxu0 0.0
        %1299 = vmatpush1.xpose.msra.mxu0 0.0
        %1300 = vmatprep.subr.mxu0 0.0
        %1301 = vmatpush1.xpose.msra.mxu0 0.0
        %1302 = vmatprep.subr.mxu0 0.0
        %1303 = vmatpush1.xpose.msra.mxu0 0.0
        %1304 = vmatprep.subr.mxu0 0.0
        %1305 = vmatpush1.xpose.msra.mxu0 0.0
        %1306 = vmatprep.subr.mxu0 0.0
        %1307 = vmatpush1.xpose.msra.mxu0 0.0
        %1308 = vmatprep.subr.mxu0 0.0
        %1309 = vmatpush1.xpose.msra.mxu0 0.0
        %1310 = vmatprep.subr.mxu0 0.0
        %1311 = vmatpush1.xpose.msra.mxu0 0.0
        %1312 = vmatprep.mubr.f32.mxu0 0.0
        %1313 = vmatmul.mubr.f32.gmra.mrb[0].mxu0 %v1244
        %v1314 = vpop.f32.mrb[0].mxu0
        %v1315 = vadd.f32 0.0, %v1314
        %v1316 = vpop.f32.mrb[0].mxu0
        %1317 = vdwg.mxu0
        %v1318 = vmul.f32 %v1237, 0.35355338
        %v1319 = vmul.f32 %v1315, 0.35355338
        %v1320 = vsel %vm984, -1e+09, %v1318
        %v1321 = vsel %vm985, -1e+09, %v1319
        %v1322 = vsel %vm830, %v1320, -inf
        %1323 = vmax.xlane.f32.xlu0 %v1322
        %v1324 = vpop.xlane.xlu0 %1323
        %v1325 = vsel %vm830, %v1321, -inf
        %1326 = vmax.xlane.f32.xlu0 %v1325
        %v1327 = vpop.xlane.xlu0 %1326
        %v1328 = vsub.f32 %v1320, %v1324
        %v1329 = vsub.f32 %v1321, %v1327
        %v1330 = vmul.f32 %v1328, 1.442695
        %v1331 = vpow.pop %v1330
        %v1332 = vmul.f32 %v1329, 1.442695
        %v1333 = vpow.pop %v1332
        %v1334 = vsel %vm830, %v1331, 0.0
        %1335 = vadd.xlane.f32.xlu0 %v1334
        %v1336 = vpop.xlane.xlu0 %1335
        %v1337 = vsel %vm830, %v1333, 0.0
        %1338 = vadd.xlane.f32.xlu0 %v1337
        %v1339 = vpop.xlane.xlu0 %1338
        %v1340 = vrcp.pop %v1336
        %v1341 = vrcp.pop %v1339
        %v1342 = vmul.f32 %v1331, %v1340
        %v1343 = vmul.f32 %v1333, %v1341
        %1344 = vrot.lane.b32.xlu0 %v815, 56
        %v1345 = vpop.permute.xlu0 %1344
        %v1348 = vsel %vm830, %v1342, 0
        %1350 = vmatprep.subr.mxu0 0.0
        %1351 = vmatpush1.msra.mxu0 %v1345
        %1352 = vmatprep.subr.mxu0 0.0
        %1353 = vmatpush1.msra.mxu0 0.0
        %1354 = vmatprep.subr.mxu0 0.0
        %1355 = vmatpush1.msra.mxu0 0.0
        %1356 = vmatprep.subr.mxu0 0.0
        %1357 = vmatpush1.msra.mxu0 0.0
        %1358 = vmatprep.subr.mxu0 0.0
        %1359 = vmatpush1.msra.mxu0 0.0
        %1360 = vmatprep.subr.mxu0 0.0
        %1361 = vmatpush1.msra.mxu0 0.0
        %1362 = vmatprep.subr.mxu0 0.0
        %1363 = vmatpush1.msra.mxu0 0.0
        %1364 = vmatprep.subr.mxu0 0.0
        %1365 = vmatpush1.msra.mxu0 0.0
        %1366 = vmatprep.subr.mxu0 0.0
        %1367 = vmatpush1.msra.mxu0 0.0
        %1368 = vmatprep.subr.mxu0 0.0
        %1369 = vmatpush1.msra.mxu0 0.0
        %1370 = vmatprep.subr.mxu0 0.0
        %1371 = vmatpush1.msra.mxu0 0.0
        %1372 = vmatprep.subr.mxu0 0.0
        %1373 = vmatpush1.msra.mxu0 0.0
        %1374 = vmatprep.subr.mxu0 0.0
        %1375 = vmatpush1.msra.mxu0 0.0
        %1376 = vmatprep.subr.mxu0 0.0
        %1377 = vmatpush1.msra.mxu0 0.0
        %1378 = vmatprep.subr.mxu0 0.0
        %1379 = vmatpush1.msra.mxu0 0.0
        %1380 = vmatprep.subr.mxu0 0.0
        %1381 = vmatpush1.msra.mxu0 0.0
        %1382 = vmatprep.subr.mxu0 0.0
        %1383 = vmatpush1.msra.mxu0 0.0
        %1384 = vmatprep.subr.mxu0 0.0
        %1385 = vmatpush1.msra.mxu0 0.0
        %1386 = vmatprep.subr.mxu0 0.0
        %1387 = vmatpush1.msra.mxu0 0.0
        %1388 = vmatprep.subr.mxu0 0.0
        %1389 = vmatpush1.msra.mxu0 0.0
        %1390 = vmatprep.subr.mxu0 0.0
        %1391 = vmatpush1.msra.mxu0 0.0
        %1392 = vmatprep.subr.mxu0 0.0
        %1393 = vmatpush1.msra.mxu0 0.0
        %1394 = vmatprep.subr.mxu0 0.0
        %1395 = vmatpush1.msra.mxu0 0.0
        %1396 = vmatprep.subr.mxu0 0.0
        %1397 = vmatpush1.msra.mxu0 0.0
        %1398 = vmatprep.subr.mxu0 0.0
        %1399 = vmatpush1.msra.mxu0 0.0
        %1400 = vmatprep.subr.mxu0 0.0
        %1401 = vmatpush1.msra.mxu0 0.0
        %1402 = vmatprep.subr.mxu0 0.0
        %1403 = vmatpush1.msra.mxu0 0.0
        %1404 = vmatprep.subr.mxu0 0.0
        %1405 = vmatpush1.msra.mxu0 0.0
        %1406 = vmatprep.subr.mxu0 0.0
        %1407 = vmatpush1.msra.mxu0 0.0
        %1408 = vmatprep.subr.mxu0 0.0
        %1409 = vmatpush1.msra.mxu0 0.0
        %1410 = vmatprep.subr.mxu0 0.0
        %1411 = vmatpush1.msra.mxu0 0.0
        %1412 = vmatprep.subr.mxu0 0.0
        %1413 = vmatpush1.msra.mxu0 0.0
        %1414 = vmatprep.mubr.f32.mxu0 0.0
        %1415 = vmatmul.mubr.f32.gmra.mrb[0].mxu0 %v1348
        %v1416 = vpop.f32.mrb[0].mxu0
        %v1417 = vadd.f32 0.0, %v1416
        %v1418 = vpop.f32.mrb[0].mxu0
        %1419 = vdwg.mxu0
        %1420 = vrot.lane.b32.xlu0 %v820, 56
        %v1421 = vpop.permute.xlu0 %1420
        %v1424 = vsel %vm830, %v1343, 0
        %1426 = vmatprep.subr.mxu0 0.0
        %1427 = vmatpush1.msra.mxu0 %v1421
        %1428 = vmatprep.subr.mxu0 0.0
        %1429 = vmatpush1.msra.mxu0 0.0
        %1430 = vmatprep.subr.mxu0 0.0
        %1431 = vmatpush1.msra.mxu0 0.0
        %1432 = vmatprep.subr.mxu0 0.0
        %1433 = vmatpush1.msra.mxu0 0.0
        %1434 = vmatprep.subr.mxu0 0.0
        %1435 = vmatpush1.msra.mxu0 0.0
        %1436 = vmatprep.subr.mxu0 0.0
        %1437 = vmatpush1.msra.mxu0 0.0
        %1438 = vmatprep.subr.mxu0 0.0
        %1439 = vmatpush1.msra.mxu0 0.0
        %1440 = vmatprep.subr.mxu0 0.0
        %1441 = vmatpush1.msra.mxu0 0.0
        %1442 = vmatprep.subr.mxu0 0.0
        %1443 = vmatpush1.msra.mxu0 0.0
        %1444 = vmatprep.subr.mxu0 0.0
        %1445 = vmatpush1.msra.mxu0 0.0
        %1446 = vmatprep.subr.mxu0 0.0
        %1447 = vmatpush1.msra.mxu0 0.0
        %1448 = vmatprep.subr.mxu0 0.0
        %1449 = vmatpush1.msra.mxu0 0.0
        %1450 = vmatprep.subr.mxu0 0.0
        %1451 = vmatpush1.msra.mxu0 0.0
        %1452 = vmatprep.subr.mxu0 0.0
        %1453 = vmatpush1.msra.mxu0 0.0
        %1454 = vmatprep.subr.mxu0 0.0
        %1455 = vmatpush1.msra.mxu0 0.0
        %1456 = vmatprep.subr.mxu0 0.0
        %1457 = vmatpush1.msra.mxu0 0.0
        %1458 = vmatprep.subr.mxu0 0.0
        %1459 = vmatpush1.msra.mxu0 0.0
        %1460 = vmatprep.subr.mxu0 0.0
        %1461 = vmatpush1.msra.mxu0 0.0
        %1462 = vmatprep.subr.mxu0 0.0
        %1463 = vmatpush1.msra.mxu0 0.0
        %1464 = vmatprep.subr.mxu0 0.0
        %1465 = vmatpush1.msra.mxu0 0.0
        %1466 = vmatprep.subr.mxu0 0.0
        %1467 = vmatpush1.msra.mxu0 0.0
        %1468 = vmatprep.subr.mxu0 0.0
        %1469 = vmatpush1.msra.mxu0 0.0
        %1470 = vmatprep.subr.mxu0 0.0
        %1471 = vmatpush1.msra.mxu0 0.0
        %1472 = vmatprep.subr.mxu0 0.0
        %1473 = vmatpush1.msra.mxu0 0.0
        %1474 = vmatprep.subr.mxu0 0.0
        %1475 = vmatpush1.msra.mxu0 0.0
        %1476 = vmatprep.subr.mxu0 0.0
        %1477 = vmatpush1.msra.mxu0 0.0
        %1478 = vmatprep.subr.mxu0 0.0
        %1479 = vmatpush1.msra.mxu0 0.0
        %1480 = vmatprep.subr.mxu0 0.0
        %1481 = vmatpush1.msra.mxu0 0.0
        %1482 = vmatprep.subr.mxu0 0.0
        %1483 = vmatpush1.msra.mxu0 0.0
        %1484 = vmatprep.subr.mxu0 0.0
        %1485 = vmatpush1.msra.mxu0 0.0
        %1486 = vmatprep.subr.mxu0 0.0
        %1487 = vmatpush1.msra.mxu0 0.0
        %1488 = vmatprep.subr.mxu0 0.0
        %1489 = vmatpush1.msra.mxu0 0.0
        %1490 = vmatprep.mubr.f32.mxu0 0.0
        %1491 = vmatmul.mubr.f32.gmra.mrb[0].mxu0 %v1424
        %v1492 = vpop.f32.mrb[0].mxu0
        %v1493 = vadd.f32 0.0, %v1492
        %v1494 = vpop.f32.mrb[0].mxu0
        %1495 = vdwg.mxu0
        %v1497 = vsel %vm830, %v1417, 0
        %v1500 = vsel %vm830, %v1493, 0
        %1502 = vmatprep.subr.mxu0 0.0
        %1503 = vmatpush1.msra.mxu0 %v824
        %1504 = vmatprep.subr.mxu0 0.0
        %1505 = vmatpush1.msra.mxu0 0.0
        %1506 = vmatprep.subr.mxu0 0.0
        %1507 = vmatpush1.msra.mxu0 0.0
        %1508 = vmatprep.subr.mxu0 0.0
        %1509 = vmatpush1.msra.mxu0 0.0
        %1510 = vmatprep.subr.mxu0 0.0
        %1511 = vmatpush1.msra.mxu0 0.0
        %1512 = vmatprep.subr.mxu0 0.0
        %1513 = vmatpush1.msra.mxu0 0.0
        %1514 = vmatprep.subr.mxu0 0.0
        %1515 = vmatpush1.msra.mxu0 0.0
        %1516 = vmatprep.subr.mxu0 0.0
        %1517 = vmatpush1.msra.mxu0 0.0
        %1518 = vmatprep.subr.mxu0 0.0
        %1519 = vmatpush1.msra.mxu0 0.0
        %1520 = vmatprep.subr.mxu0 0.0
        %1521 = vmatpush1.msra.mxu0 0.0
        %1522 = vmatprep.subr.mxu0 0.0
        %1523 = vmatpush1.msra.mxu0 0.0
        %1524 = vmatprep.subr.mxu0 0.0
        %1525 = vmatpush1.msra.mxu0 0.0
        %1526 = vmatprep.subr.mxu0 0.0
        %1527 = vmatpush1.msra.mxu0 0.0
        %1528 = vmatprep.subr.mxu0 0.0
        %1529 = vmatpush1.msra.mxu0 0.0
        %1530 = vmatprep.subr.mxu0 0.0
        %1531 = vmatpush1.msra.mxu0 0.0
        %1532 = vmatprep.subr.mxu0 0.0
        %1533 = vmatpush1.msra.mxu0 0.0
        %1534 = vmatprep.subr.mxu0 0.0
        %1535 = vmatpush1.msra.mxu0 0.0
        %1536 = vmatprep.subr.mxu0 0.0
        %1537 = vmatpush1.msra.mxu0 0.0
        %1538 = vmatprep.subr.mxu0 0.0
        %1539 = vmatpush1.msra.mxu0 0.0
        %1540 = vmatprep.subr.mxu0 0.0
        %1541 = vmatpush1.msra.mxu0 0.0
        %1542 = vmatprep.subr.mxu0 0.0
        %1543 = vmatpush1.msra.mxu0 0.0
        %1544 = vmatprep.subr.mxu0 0.0
        %1545 = vmatpush1.msra.mxu0 0.0
        %1546 = vmatprep.subr.mxu0 0.0
        %1547 = vmatpush1.msra.mxu0 0.0
        %1548 = vmatprep.subr.mxu0 0.0
        %1549 = vmatpush1.msra.mxu0 0.0
        %1550 = vmatprep.subr.mxu0 0.0
        %1551 = vmatpush1.msra.mxu0 0.0
        %1552 = vmatprep.subr.mxu0 0.0
        %1553 = vmatpush1.msra.mxu0 0.0
        %1554 = vmatprep.subr.mxu0 0.0
        %1555 = vmatpush1.msra.mxu0 0.0
        %1556 = vmatprep.subr.mxu0 0.0
        %1557 = vmatpush1.msra.mxu0 0.0
        %1558 = vmatprep.subr.mxu0 0.0
        %1559 = vmatpush1.msra.mxu0 0.0
        %1560 = vmatprep.subr.mxu0 0.0
        %1561 = vmatpush1.msra.mxu0 0.0
        %1562 = vmatprep.subr.mxu0 0.0
        %1563 = vmatpush1.msra.mxu0 0.0
        %1564 = vmatprep.subr.mxu0 0.0
        %1565 = vmatpush1.msra.mxu0 0.0
        %1566 = vmatprep.mubr.f32.mxu0 0.0
        %1567 = vmatmul.mubr.f32.gmra.mrb[0].mxu0 %v1497
        %v1568 = vpop.f32.mrb[0].mxu0
        %v1569 = vadd.f32 0.0, %v1568
        %v1570 = vpop.f32.mrb[0].mxu0
        %1571 = vmatprep.mubr.f32.mxu0 0.0
        %1572 = vmatmul.mubr.f32.gmra.mrb[0].mxu0 %v1500
        %v1573 = vpop.f32.mrb[0].mxu0
        %v1574 = vadd.f32 0.0, %v1573
        %v1575 = vpop.f32.mrb[0].mxu0
        %1576 = vdwg.mxu0
        %v1578 = vsel %vm830, %v1083, 0
        %v1581 = vsel %vm830, %v1159, 0
        %1583 = vmatprep.subr.mxu0 0.0
        %1584 = vmatpush1.msra.mxu0 %v823
        %1585 = vmatprep.subr.mxu0 0.0
        %1586 = vmatpush1.msra.mxu0 0.0
        %1587 = vmatprep.subr.mxu0 0.0
        %1588 = vmatpush1.msra.mxu0 0.0
        %1589 = vmatprep.subr.mxu0 0.0
        %1590 = vmatpush1.msra.mxu0 0.0
        %1591 = vmatprep.subr.mxu0 0.0
        %1592 = vmatpush1.msra.mxu0 0.0
        %1593 = vmatprep.subr.mxu0 0.0
        %1594 = vmatpush1.msra.mxu0 0.0
        %1595 = vmatprep.subr.mxu0 0.0
        %1596 = vmatpush1.msra.mxu0 0.0
        %1597 = vmatprep.subr.mxu0 0.0
        %1598 = vmatpush1.msra.mxu0 0.0
        %1599 = vmatprep.subr.mxu0 0.0
        %1600 = vmatpush1.msra.mxu0 0.0
        %1601 = vmatprep.subr.mxu0 0.0
        %1602 = vmatpush1.msra.mxu0 0.0
        %1603 = vmatprep.subr.mxu0 0.0
        %1604 = vmatpush1.msra.mxu0 0.0
        %1605 = vmatprep.subr.mxu0 0.0
        %1606 = vmatpush1.msra.mxu0 0.0
        %1607 = vmatprep.subr.mxu0 0.0
        %1608 = vmatpush1.msra.mxu0 0.0
        %1609 = vmatprep.subr.mxu0 0.0
        %1610 = vmatpush1.msra.mxu0 0.0
        %1611 = vmatprep.subr.mxu0 0.0
        %1612 = vmatpush1.msra.mxu0 0.0
        %1613 = vmatprep.subr.mxu0 0.0
        %1614 = vmatpush1.msra.mxu0 0.0
        %1615 = vmatprep.subr.mxu0 0.0
        %1616 = vmatpush1.msra.mxu0 0.0
        %1617 = vmatprep.subr.mxu0 0.0
        %1618 = vmatpush1.msra.mxu0 0.0
        %1619 = vmatprep.subr.mxu0 0.0
        %1620 = vmatpush1.msra.mxu0 0.0
        %1621 = vmatprep.subr.mxu0 0.0
        %1622 = vmatpush1.msra.mxu0 0.0
        %1623 = vmatprep.subr.mxu0 0.0
        %1624 = vmatpush1.msra.mxu0 0.0
        %1625 = vmatprep.subr.mxu0 0.0
        %1626 = vmatpush1.msra.mxu0 0.0
        %1627 = vmatprep.subr.mxu0 0.0
        %1628 = vmatpush1.msra.mxu0 0.0
        %1629 = vmatprep.subr.mxu0 0.0
        %1630 = vmatpush1.msra.mxu0 0.0
        %1631 = vmatprep.subr.mxu0 0.0
        %1632 = vmatpush1.msra.mxu0 0.0
        %1633 = vmatprep.subr.mxu0 0.0
        %1634 = vmatpush1.msra.mxu0 0.0
        %1635 = vmatprep.subr.mxu0 0.0
        %1636 = vmatpush1.msra.mxu0 0.0
        %1637 = vmatprep.subr.mxu0 0.0
        %1638 = vmatpush1.msra.mxu0 0.0
        %1639 = vmatprep.subr.mxu0 0.0
        %1640 = vmatpush1.msra.mxu0 0.0
        %1641 = vmatprep.subr.mxu0 0.0
        %1642 = vmatpush1.msra.mxu0 0.0
        %1643 = vmatprep.subr.mxu0 0.0
        %1644 = vmatpush1.msra.mxu0 0.0
        %1645 = vmatprep.subr.mxu0 0.0
        %1646 = vmatpush1.msra.mxu0 0.0
        %1647 = vmatprep.mubr.f32.mxu0 0.0
        %1648 = vmatmul.mubr.f32.gmra.mrb[0].mxu0 %v1578
        %v1649 = vpop.f32.mrb[0].mxu0
        %v1650 = vadd.f32 %v1569, %v1649
        %v1651 = vpop.f32.mrb[0].mxu0
        %1652 = vmatprep.mubr.f32.mxu0 0.0
        %1653 = vmatmul.mubr.f32.gmra.mrb[0].mxu0 %v1581
        %v1654 = vpop.f32.mrb[0].mxu0
        %v1655 = vadd.f32 %v1574, %v1654
        %v1656 = vpop.f32.mrb[0].mxu0
        %1657 = vdwg.mxu0
        %1658 = vrot.lane.b32.xlu0 %v815, 112
        %v1659 = vpop.permute.xlu0 %1658
        %1660 = vrot.lane.b32.xlu0 %v815, 80
        %v1661 = vpop.permute.xlu0 %1660
        %v1662 = vsel %vm830, %v1659, 0
        %v1664 = vsel %vm830, %v1661, 0
        %1666 = vmatprep.subr.mxu0 0.0
        %1667 = vmatpush1.xpose.msra.mxu0 %v1664
        %1668 = vmatprep.subr.mxu0 0.0
        %1669 = vmatpush1.xpose.msra.mxu0 0.0
        %1670 = vmatprep.subr.mxu0 0.0
        %1671 = vmatpush1.xpose.msra.mxu0 0.0
        %1672 = vmatprep.subr.mxu0 0.0
        %1673 = vmatpush1.xpose.msra.mxu0 0.0
        %1674 = vmatprep.subr.mxu0 0.0
        %1675 = vmatpush1.xpose.msra.mxu0 0.0
        %1676 = vmatprep.subr.mxu0 0.0
        %1677 = vmatpush1.xpose.msra.mxu0 0.0
        %1678 = vmatprep.subr.mxu0 0.0
        %1679 = vmatpush1.xpose.msra.mxu0 0.0
        %1680 = vmatprep.subr.mxu0 0.0
        %1681 = vmatpush1.xpose.msra.mxu0 0.0
        %1682 = vmatprep.subr.mxu0 0.0
        %1683 = vmatpush1.xpose.msra.mxu0 0.0
        %1684 = vmatprep.subr.mxu0 0.0
        %1685 = vmatpush1.xpose.msra.mxu0 0.0
        %1686 = vmatprep.subr.mxu0 0.0
        %1687 = vmatpush1.xpose.msra.mxu0 0.0
        %1688 = vmatprep.subr.mxu0 0.0
        %1689 = vmatpush1.xpose.msra.mxu0 0.0
        %1690 = vmatprep.subr.mxu0 0.0
        %1691 = vmatpush1.xpose.msra.mxu0 0.0
        %1692 = vmatprep.subr.mxu0 0.0
        %1693 = vmatpush1.xpose.msra.mxu0 0.0
        %1694 = vmatprep.subr.mxu0 0.0
        %1695 = vmatpush1.xpose.msra.mxu0 0.0
        %1696 = vmatprep.subr.mxu0 0.0
        %1697 = vmatpush1.xpose.msra.mxu0 0.0
        %1698 = vmatprep.subr.mxu0 0.0
        %1699 = vmatpush1.xpose.msra.mxu0 0.0
        %1700 = vmatprep.subr.mxu0 0.0
        %1701 = vmatpush1.xpose.msra.mxu0 0.0
        %1702 = vmatprep.subr.mxu0 0.0
        %1703 = vmatpush1.xpose.msra.mxu0 0.0
        %1704 = vmatprep.subr.mxu0 0.0
        %1705 = vmatpush1.xpose.msra.mxu0 0.0
        %1706 = vmatprep.subr.mxu0 0.0
        %1707 = vmatpush1.xpose.msra.mxu0 0.0
        %1708 = vmatprep.subr.mxu0 0.0
        %1709 = vmatpush1.xpose.msra.mxu0 0.0
        %1710 = vmatprep.subr.mxu0 0.0
        %1711 = vmatpush1.xpose.msra.mxu0 0.0
        %1712 = vmatprep.subr.mxu0 0.0
        %1713 = vmatpush1.xpose.msra.mxu0 0.0
        %1714 = vmatprep.subr.mxu0 0.0
        %1715 = vmatpush1.xpose.msra.mxu0 0.0
        %1716 = vmatprep.subr.mxu0 0.0
        %1717 = vmatpush1.xpose.msra.mxu0 0.0
        %1718 = vmatprep.subr.mxu0 0.0
        %1719 = vmatpush1.xpose.msra.mxu0 0.0
        %1720 = vmatprep.subr.mxu0 0.0
        %1721 = vmatpush1.xpose.msra.mxu0 0.0
        %1722 = vmatprep.subr.mxu0 0.0
        %1723 = vmatpush1.xpose.msra.mxu0 0.0
        %1724 = vmatprep.subr.mxu0 0.0
        %1725 = vmatpush1.xpose.msra.mxu0 0.0
        %1726 = vmatprep.subr.mxu0 0.0
        %1727 = vmatpush1.xpose.msra.mxu0 0.0
        %1728 = vmatprep.subr.mxu0 0.0
        %1729 = vmatpush1.xpose.msra.mxu0 0.0
        %1730 = vmatprep.mubr.f32.mxu0 0.0
        %1731 = vmatmul.mubr.f32.gmra.mrb[0].mxu0 %v1662
        %v1732 = vpop.f32.mrb[0].mxu0
        %v1733 = vadd.f32 0.0, %v1732
        %v1734 = vpop.f32.mrb[0].mxu0
        %1735 = vdwg.mxu0
        %1736 = vrot.lane.b32.xlu0 %v820, 112
        %v1737 = vpop.permute.xlu0 %1736
        %1738 = vrot.lane.b32.xlu0 %v820, 80
        %v1739 = vpop.permute.xlu0 %1738
        %v1740 = vsel %vm830, %v1737, 0
        %v1742 = vsel %vm830, %v1739, 0
        %1744 = vmatprep.subr.mxu0 0.0
        %1745 = vmatpush1.xpose.msra.mxu0 %v1742
        %1746 = vmatprep.subr.mxu0 0.0
        %1747 = vmatpush1.xpose.msra.mxu0 0.0
        %1748 = vmatprep.subr.mxu0 0.0
        %1749 = vmatpush1.xpose.msra.mxu0 0.0
        %1750 = vmatprep.subr.mxu0 0.0
        %1751 = vmatpush1.xpose.msra.mxu0 0.0
        %1752 = vmatprep.subr.mxu0 0.0
        %1753 = vmatpush1.xpose.msra.mxu0 0.0
        %1754 = vmatprep.subr.mxu0 0.0
        %1755 = vmatpush1.xpose.msra.mxu0 0.0
        %1756 = vmatprep.subr.mxu0 0.0
        %1757 = vmatpush1.xpose.msra.mxu0 0.0
        %1758 = vmatprep.subr.mxu0 0.0
        %1759 = vmatpush1.xpose.msra.mxu0 0.0
        %1760 = vmatprep.subr.mxu0 0.0
        %1761 = vmatpush1.xpose.msra.mxu0 0.0
        %1762 = vmatprep.subr.mxu0 0.0
        %1763 = vmatpush1.xpose.msra.mxu0 0.0
        %1764 = vmatprep.subr.mxu0 0.0
        %1765 = vmatpush1.xpose.msra.mxu0 0.0
        %1766 = vmatprep.subr.mxu0 0.0
        %1767 = vmatpush1.xpose.msra.mxu0 0.0
        %1768 = vmatprep.subr.mxu0 0.0
        %1769 = vmatpush1.xpose.msra.mxu0 0.0
        %1770 = vmatprep.subr.mxu0 0.0
        %1771 = vmatpush1.xpose.msra.mxu0 0.0
        %1772 = vmatprep.subr.mxu0 0.0
        %1773 = vmatpush1.xpose.msra.mxu0 0.0
        %1774 = vmatprep.subr.mxu0 0.0
        %1775 = vmatpush1.xpose.msra.mxu0 0.0
        %1776 = vmatprep.subr.mxu0 0.0
        %1777 = vmatpush1.xpose.msra.mxu0 0.0
        %1778 = vmatprep.subr.mxu0 0.0
        %1779 = vmatpush1.xpose.msra.mxu0 0.0
        %1780 = vmatprep.subr.mxu0 0.0
        %1781 = vmatpush1.xpose.msra.mxu0 0.0
        %1782 = vmatprep.subr.mxu0 0.0
        %1783 = vmatpush1.xpose.msra.mxu0 0.0
        %1784 = vmatprep.subr.mxu0 0.0
        %1785 = vmatpush1.xpose.msra.mxu0 0.0
        %1786 = vmatprep.subr.mxu0 0.0
        %1787 = vmatpush1.xpose.msra.mxu0 0.0
        %1788 = vmatprep.subr.mxu0 0.0
        %1789 = vmatpush1.xpose.msra.mxu0 0.0
        %1790 = vmatprep.subr.mxu0 0.0
        %1791 = vmatpush1.xpose.msra.mxu0 0.0
        %1792 = vmatprep.subr.mxu0 0.0
        %1793 = vmatpush1.xpose.msra.mxu0 0.0
        %1794 = vmatprep.subr.mxu0 0.0
        %1795 = vmatpush1.xpose.msra.mxu0 0.0
        %1796 = vmatprep.subr.mxu0 0.0
        %1797 = vmatpush1.xpose.msra.mxu0 0.0
        %1798 = vmatprep.subr.mxu0 0.0
        %1799 = vmatpush1.xpose.msra.mxu0 0.0
        %1800 = vmatprep.subr.mxu0 0.0
        %1801 = vmatpush1.xpose.msra.mxu0 0.0
        %1802 = vmatprep.subr.mxu0 0.0
        %1803 = vmatpush1.xpose.msra.mxu0 0.0
        %1804 = vmatprep.subr.mxu0 0.0
        %1805 = vmatpush1.xpose.msra.mxu0 0.0
        %1806 = vmatprep.subr.mxu0 0.0
        %1807 = vmatpush1.xpose.msra.mxu0 0.0
        %1808 = vmatprep.mubr.f32.mxu0 0.0
        %1809 = vmatmul.mubr.f32.gmra.mrb[0].mxu0 %v1740
        %v1810 = vpop.f32.mrb[0].mxu0
        %v1811 = vadd.f32 0.0, %v1810
        %v1812 = vpop.f32.mrb[0].mxu0
        %1813 = vdwg.mxu0
        %v1814 = vmul.f32 %v1733, 0.35355338
        %v1815 = vmul.f32 %v1811, 0.35355338
        %v1816 = vsel %vm984, -1e+09, %v1814
        %v1817 = vsel %vm985, -1e+09, %v1815
        %v1818 = vsel %vm830, %v1816, -inf
        %1819 = vmax.xlane.f32.xlu0 %v1818
        %v1820 = vpop.xlane.xlu0 %1819
        %v1821 = vsel %vm830, %v1817, -inf
        %1822 = vmax.xlane.f32.xlu0 %v1821
        %v1823 = vpop.xlane.xlu0 %1822
        %v1824 = vsub.f32 %v1816, %v1820
        %v1825 = vsub.f32 %v1817, %v1823
        %v1826 = vmul.f32 %v1824, 1.442695
        %v1827 = vpow.pop %v1826
        %v1828 = vmul.f32 %v1825, 1.442695
        %v1829 = vpow.pop %v1828
        %v1830 = vsel %vm830, %v1827, 0.0
        %1831 = vadd.xlane.f32.xlu0 %v1830
        %v1832 = vpop.xlane.xlu0 %1831
        %v1833 = vsel %vm830, %v1829, 0.0
        %1834 = vadd.xlane.f32.xlu0 %v1833
        %v1835 = vpop.xlane.xlu0 %1834
        %v1836 = vrcp.pop %v1832
        %v1837 = vrcp.pop %v1835
        %v1838 = vmul.f32 %v1827, %v1836
        %v1839 = vmul.f32 %v1829, %v1837
        %1840 = vrot.lane.b32.xlu0 %v815, 48
        %v1841 = vpop.permute.xlu0 %1840
        %v1844 = vsel %vm830, %v1838, 0
        %1846 = vmatprep.subr.mxu0 0.0
        %1847 = vmatpush1.msra.mxu0 %v1841
        %1848 = vmatprep.subr.mxu0 0.0
        %1849 = vmatpush1.msra.mxu0 0.0
        %1850 = vmatprep.subr.mxu0 0.0
        %1851 = vmatpush1.msra.mxu0 0.0
        %1852 = vmatprep.subr.mxu0 0.0
        %1853 = vmatpush1.msra.mxu0 0.0
        %1854 = vmatprep.subr.mxu0 0.0
        %1855 = vmatpush1.msra.mxu0 0.0
        %1856 = vmatprep.subr.mxu0 0.0
        %1857 = vmatpush1.msra.mxu0 0.0
        %1858 = vmatprep.subr.mxu0 0.0
        %1859 = vmatpush1.msra.mxu0 0.0
        %1860 = vmatprep.subr.mxu0 0.0
        %1861 = vmatpush1.msra.mxu0 0.0
        %1862 = vmatprep.subr.mxu0 0.0
        %1863 = vmatpush1.msra.mxu0 0.0
        %1864 = vmatprep.subr.mxu0 0.0
        %1865 = vmatpush1.msra.mxu0 0.0
        %1866 = vmatprep.subr.mxu0 0.0
        %1867 = vmatpush1.msra.mxu0 0.0
        %1868 = vmatprep.subr.mxu0 0.0
        %1869 = vmatpush1.msra.mxu0 0.0
        %1870 = vmatprep.subr.mxu0 0.0
        %1871 = vmatpush1.msra.mxu0 0.0
        %1872 = vmatprep.subr.mxu0 0.0
        %1873 = vmatpush1.msra.mxu0 0.0
        %1874 = vmatprep.subr.mxu0 0.0
        %1875 = vmatpush1.msra.mxu0 0.0
        %1876 = vmatprep.subr.mxu0 0.0
        %1877 = vmatpush1.msra.mxu0 0.0
        %1878 = vmatprep.subr.mxu0 0.0
        %1879 = vmatpush1.msra.mxu0 0.0
        %1880 = vmatprep.subr.mxu0 0.0
        %1881 = vmatpush1.msra.mxu0 0.0
        %1882 = vmatprep.subr.mxu0 0.0
        %1883 = vmatpush1.msra.mxu0 0.0
        %1884 = vmatprep.subr.mxu0 0.0
        %1885 = vmatpush1.msra.mxu0 0.0
        %1886 = vmatprep.subr.mxu0 0.0
        %1887 = vmatpush1.msra.mxu0 0.0
        %1888 = vmatprep.subr.mxu0 0.0
        %1889 = vmatpush1.msra.mxu0 0.0
        %1890 = vmatprep.subr.mxu0 0.0
        %1891 = vmatpush1.msra.mxu0 0.0
        %1892 = vmatprep.subr.mxu0 0.0
        %1893 = vmatpush1.msra.mxu0 0.0
        %1894 = vmatprep.subr.mxu0 0.0
        %1895 = vmatpush1.msra.mxu0 0.0
        %1896 = vmatprep.subr.mxu0 0.0
        %1897 = vmatpush1.msra.mxu0 0.0
        %1898 = vmatprep.subr.mxu0 0.0
        %1899 = vmatpush1.msra.mxu0 0.0
        %1900 = vmatprep.subr.mxu0 0.0
        %1901 = vmatpush1.msra.mxu0 0.0
        %1902 = vmatprep.subr.mxu0 0.0
        %1903 = vmatpush1.msra.mxu0 0.0
        %1904 = vmatprep.subr.mxu0 0.0
        %1905 = vmatpush1.msra.mxu0 0.0
        %1906 = vmatprep.subr.mxu0 0.0
        %1907 = vmatpush1.msra.mxu0 0.0
        %1908 = vmatprep.subr.mxu0 0.0
        %1909 = vmatpush1.msra.mxu0 0.0
        %1910 = vmatprep.mubr.f32.mxu0 0.0
        %1911 = vmatmul.mubr.f32.gmra.mrb[0].mxu0 %v1844
        %v1912 = vpop.f32.mrb[0].mxu0
        %v1913 = vadd.f32 0.0, %v1912
        %v1914 = vpop.f32.mrb[0].mxu0
        %1915 = vdwg.mxu0
        %1916 = vrot.lane.b32.xlu0 %v820, 48
        %v1917 = vpop.permute.xlu0 %1916
        %v1920 = vsel %vm830, %v1839, 0
        %1922 = vmatprep.subr.mxu0 0.0
        %1923 = vmatpush1.msra.mxu0 %v1917
        %1924 = vmatprep.subr.mxu0 0.0
        %1925 = vmatpush1.msra.mxu0 0.0
        %1926 = vmatprep.subr.mxu0 0.0
        %1927 = vmatpush1.msra.mxu0 0.0
        %1928 = vmatprep.subr.mxu0 0.0
        %1929 = vmatpush1.msra.mxu0 0.0
        %1930 = vmatprep.subr.mxu0 0.0
        %1931 = vmatpush1.msra.mxu0 0.0
        %1932 = vmatprep.subr.mxu0 0.0
        %1933 = vmatpush1.msra.mxu0 0.0
        %1934 = vmatprep.subr.mxu0 0.0
        %1935 = vmatpush1.msra.mxu0 0.0
        %1936 = vmatprep.subr.mxu0 0.0
        %1937 = vmatpush1.msra.mxu0 0.0
        %1938 = vmatprep.subr.mxu0 0.0
        %1939 = vmatpush1.msra.mxu0 0.0
        %1940 = vmatprep.subr.mxu0 0.0
        %1941 = vmatpush1.msra.mxu0 0.0
        %1942 = vmatprep.subr.mxu0 0.0
        %1943 = vmatpush1.msra.mxu0 0.0
        %1944 = vmatprep.subr.mxu0 0.0
        %1945 = vmatpush1.msra.mxu0 0.0
        %1946 = vmatprep.subr.mxu0 0.0
        %1947 = vmatpush1.msra.mxu0 0.0
        %1948 = vmatprep.subr.mxu0 0.0
        %1949 = vmatpush1.msra.mxu0 0.0
        %1950 = vmatprep.subr.mxu0 0.0
        %1951 = vmatpush1.msra.mxu0 0.0
        %1952 = vmatprep.subr.mxu0 0.0
        %1953 = vmatpush1.msra.mxu0 0.0
        %1954 = vmatprep.subr.mxu0 0.0
        %1955 = vmatpush1.msra.mxu0 0.0
        %1956 = vmatprep.subr.mxu0 0.0
        %1957 = vmatpush1.msra.mxu0 0.0
        %1958 = vmatprep.subr.mxu0 0.0
        %1959 = vmatpush1.msra.mxu0 0.0
        %1960 = vmatprep.subr.mxu0 0.0
        %1961 = vmatpush1.msra.mxu0 0.0
        %1962 = vmatprep.subr.mxu0 0.0
        %1963 = vmatpush1.msra.mxu0 0.0
        %1964 = vmatprep.subr.mxu0 0.0
        %1965 = vmatpush1.msra.mxu0 0.0
        %1966 = vmatprep.subr.mxu0 0.0
        %1967 = vmatpush1.msra.mxu0 0.0
        %1968 = vmatprep.subr.mxu0 0.0
        %1969 = vmatpush1.msra.mxu0 0.0
        %1970 = vmatprep.subr.mxu0 0.0
        %1971 = vmatpush1.msra.mxu0 0.0
        %1972 = vmatprep.subr.mxu0 0.0
        %1973 = vmatpush1.msra.mxu0 0.0
        %1974 = vmatprep.subr.mxu0 0.0
        %1975 = vmatpush1.msra.mxu0 0.0
        %1976 = vmatprep.subr.mxu0 0.0
        %1977 = vmatpush1.msra.mxu0 0.0
        %1978 = vmatprep.subr.mxu0 0.0
        %1979 = vmatpush1.msra.mxu0 0.0
        %1980 = vmatprep.subr.mxu0 0.0
        %1981 = vmatpush1.msra.mxu0 0.0
        %1982 = vmatprep.subr.mxu0 0.0
        %1983 = vmatpush1.msra.mxu0 0.0
        %1984 = vmatprep.subr.mxu0 0.0
        %1985 = vmatpush1.msra.mxu0 0.0
        %1986 = vmatprep.mubr.f32.mxu0 0.0
        %1987 = vmatmul.mubr.f32.gmra.mrb[0].mxu0 %v1920
        %v1988 = vpop.f32.mrb[0].mxu0
        %v1989 = vadd.f32 0.0, %v1988
        %v1990 = vpop.f32.mrb[0].mxu0
        %1991 = vdwg.mxu0
        %v1993 = vsel %vm830, %v1913, 0
        %v1996 = vsel %vm830, %v1989, 0
        %1998 = vmatprep.subr.mxu0 0.0
        %1999 = vmatpush1.msra.mxu0 %v825
        %2000 = vmatprep.subr.mxu0 0.0
        %2001 = vmatpush1.msra.mxu0 0.0
        %2002 = vmatprep.subr.mxu0 0.0
        %2003 = vmatpush1.msra.mxu0 0.0
        %2004 = vmatprep.subr.mxu0 0.0
        %2005 = vmatpush1.msra.mxu0 0.0
        %2006 = vmatprep.subr.mxu0 0.0
        %2007 = vmatpush1.msra.mxu0 0.0
        %2008 = vmatprep.subr.mxu0 0.0
        %2009 = vmatpush1.msra.mxu0 0.0
        %2010 = vmatprep.subr.mxu0 0.0
        %2011 = vmatpush1.msra.mxu0 0.0
        %2012 = vmatprep.subr.mxu0 0.0
        %2013 = vmatpush1.msra.mxu0 0.0
        %2014 = vmatprep.subr.mxu0 0.0
        %2015 = vmatpush1.msra.mxu0 0.0
        %2016 = vmatprep.subr.mxu0 0.0
        %2017 = vmatpush1.msra.mxu0 0.0
        %2018 = vmatprep.subr.mxu0 0.0
        %2019 = vmatpush1.msra.mxu0 0.0
        %2020 = vmatprep.subr.mxu0 0.0
        %2021 = vmatpush1.msra.mxu0 0.0
        %2022 = vmatprep.subr.mxu0 0.0
        %2023 = vmatpush1.msra.mxu0 0.0
        %2024 = vmatprep.subr.mxu0 0.0
        %2025 = vmatpush1.msra.mxu0 0.0
        %2026 = vmatprep.subr.mxu0 0.0
        %2027 = vmatpush1.msra.mxu0 0.0
        %2028 = vmatprep.subr.mxu0 0.0
        %2029 = vmatpush1.msra.mxu0 0.0
        %2030 = vmatprep.subr.mxu0 0.0
        %2031 = vmatpush1.msra.mxu0 0.0
        %2032 = vmatprep.subr.mxu0 0.0
        %2033 = vmatpush1.msra.mxu0 0.0
        %2034 = vmatprep.subr.mxu0 0.0
        %2035 = vmatpush1.msra.mxu0 0.0
        %2036 = vmatprep.subr.mxu0 0.0
        %2037 = vmatpush1.msra.mxu0 0.0
        %2038 = vmatprep.subr.mxu0 0.0
        %2039 = vmatpush1.msra.mxu0 0.0
        %2040 = vmatprep.subr.mxu0 0.0
        %2041 = vmatpush1.msra.mxu0 0.0
        %2042 = vmatprep.subr.mxu0 0.0
        %2043 = vmatpush1.msra.mxu0 0.0
        %2044 = vmatprep.subr.mxu0 0.0
        %2045 = vmatpush1.msra.mxu0 0.0
        %2046 = vmatprep.subr.mxu0 0.0
        %2047 = vmatpush1.msra.mxu0 0.0
        %2048 = vmatprep.subr.mxu0 0.0
        %2049 = vmatpush1.msra.mxu0 0.0
        %2050 = vmatprep.subr.mxu0 0.0
        %2051 = vmatpush1.msra.mxu0 0.0
        %2052 = vmatprep.subr.mxu0 0.0
        %2053 = vmatpush1.msra.mxu0 0.0
        %2054 = vmatprep.subr.mxu0 0.0
        %2055 = vmatpush1.msra.mxu0 0.0
        %2056 = vmatprep.subr.mxu0 0.0
        %2057 = vmatpush1.msra.mxu0 0.0
        %2058 = vmatprep.subr.mxu0 0.0
        %2059 = vmatpush1.msra.mxu0 0.0
        %2060 = vmatprep.subr.mxu0 0.0
        %2061 = vmatpush1.msra.mxu0 0.0
        %2062 = vmatprep.mubr.f32.mxu0 0.0
        %2063 = vmatmul.mubr.f32.gmra.mrb[0].mxu0 %v1993
        %v2064 = vpop.f32.mrb[0].mxu0
        %v2065 = vadd.f32 0.0, %v2064
        %v2066 = vpop.f32.mrb[0].mxu0
        %2067 = vmatprep.mubr.f32.mxu0 0.0
        %2068 = vmatmul.mubr.f32.gmra.mrb[0].mxu0 %v1996
        %v2069 = vpop.f32.mrb[0].mxu0
        %v2070 = vadd.f32 0.0, %v2069
        %v2071 = vpop.f32.mrb[0].mxu0
        %2072 = vdwg.mxu0
        %v2073 = vadd.f32 %v1650, %v2065
        %v2074 = vadd.f32 %v1655, %v2070
        %2075 = vrot.lane.b32.xlu0 %v815, 104
        %v2076 = vpop.permute.xlu0 %2075
        %2077 = vrot.lane.b32.xlu0 %v815, 72
        %v2078 = vpop.permute.xlu0 %2077
        %v2079 = vsel %vm830, %v2076, 0
        %v2081 = vsel %vm830, %v2078, 0
        %2083 = vmatprep.subr.mxu0 0.0
        %2084 = vmatpush1.xpose.msra.mxu0 %v2081
        %2085 = vmatprep.subr.mxu0 0.0
        %2086 = vmatpush1.xpose.msra.mxu0 0.0
        %2087 = vmatprep.subr.mxu0 0.0
        %2088 = vmatpush1.xpose.msra.mxu0 0.0
        %2089 = vmatprep.subr.mxu0 0.0
        %2090 = vmatpush1.xpose.msra.mxu0 0.0
        %2091 = vmatprep.subr.mxu0 0.0
        %2092 = vmatpush1.xpose.msra.mxu0 0.0
        %2093 = vmatprep.subr.mxu0 0.0
        %2094 = vmatpush1.xpose.msra.mxu0 0.0
        %2095 = vmatprep.subr.mxu0 0.0
        %2096 = vmatpush1.xpose.msra.mxu0 0.0
        %2097 = vmatprep.subr.mxu0 0.0
        %2098 = vmatpush1.xpose.msra.mxu0 0.0
        %2099 = vmatprep.subr.mxu0 0.0
        %2100 = vmatpush1.xpose.msra.mxu0 0.0
        %2101 = vmatprep.subr.mxu0 0.0
        %2102 = vmatpush1.xpose.msra.mxu0 0.0
        %2103 = vmatprep.subr.mxu0 0.0
        %2104 = vmatpush1.xpose.msra.mxu0 0.0
        %2105 = vmatprep.subr.mxu0 0.0
        %2106 = vmatpush1.xpose.msra.mxu0 0.0
        %2107 = vmatprep.subr.mxu0 0.0
        %2108 = vmatpush1.xpose.msra.mxu0 0.0
        %2109 = vmatprep.subr.mxu0 0.0
        %2110 = vmatpush1.xpose.msra.mxu0 0.0
        %2111 = vmatprep.subr.mxu0 0.0
        %2112 = vmatpush1.xpose.msra.mxu0 0.0
        %2113 = vmatprep.subr.mxu0 0.0
        %2114 = vmatpush1.xpose.msra.mxu0 0.0
        %2115 = vmatprep.subr.mxu0 0.0
        %2116 = vmatpush1.xpose.msra.mxu0 0.0
        %2117 = vmatprep.subr.mxu0 0.0
        %2118 = vmatpush1.xpose.msra.mxu0 0.0
        %2119 = vmatprep.subr.mxu0 0.0
        %2120 = vmatpush1.xpose.msra.mxu0 0.0
        %2121 = vmatprep.subr.mxu0 0.0
        %2122 = vmatpush1.xpose.msra.mxu0 0.0
        %2123 = vmatprep.subr.mxu0 0.0
        %2124 = vmatpush1.xpose.msra.mxu0 0.0
        %2125 = vmatprep.subr.mxu0 0.0
        %2126 = vmatpush1.xpose.msra.mxu0 0.0
        %2127 = vmatprep.subr.mxu0 0.0
        %2128 = vmatpush1.xpose.msra.mxu0 0.0
        %2129 = vmatprep.subr.mxu0 0.0
        %2130 = vmatpush1.xpose.msra.mxu0 0.0
        %2131 = vmatprep.subr.mxu0 0.0
        %2132 = vmatpush1.xpose.msra.mxu0 0.0
        %2133 = vmatprep.subr.mxu0 0.0
        %2134 = vmatpush1.xpose.msra.mxu0 0.0
        %2135 = vmatprep.subr.mxu0 0.0
        %2136 = vmatpush1.xpose.msra.mxu0 0.0
        %2137 = vmatprep.subr.mxu0 0.0
        %2138 = vmatpush1.xpose.msra.mxu0 0.0
        %2139 = vmatprep.subr.mxu0 0.0
        %2140 = vmatpush1.xpose.msra.mxu0 0.0
        %2141 = vmatprep.subr.mxu0 0.0
        %2142 = vmatpush1.xpose.msra.mxu0 0.0
        %2143 = vmatprep.subr.mxu0 0.0
        %2144 = vmatpush1.xpose.msra.mxu0 0.0
        %2145 = vmatprep.subr.mxu0 0.0
        %2146 = vmatpush1.xpose.msra.mxu0 0.0
        %2147 = vmatprep.mubr.f32.mxu0 0.0
        %2148 = vmatmul.mubr.f32.gmra.mrb[0].mxu0 %v2079
        %v2149 = vpop.f32.mrb[0].mxu0
        %v2150 = vadd.f32 0.0, %v2149
        %v2151 = vpop.f32.mrb[0].mxu0
        %2152 = vdwg.mxu0
        %2153 = vrot.lane.b32.xlu0 %v820, 104
        %v2154 = vpop.permute.xlu0 %2153
        %2155 = vrot.lane.b32.xlu0 %v820, 72
        %v2156 = vpop.permute.xlu0 %2155
        %v2157 = vsel %vm830, %v2154, 0
        %v2159 = vsel %vm830, %v2156, 0
        %2161 = vmatprep.subr.mxu0 0.0
        %2162 = vmatpush1.xpose.msra.mxu0 %v2159
        %2163 = vmatprep.subr.mxu0 0.0
        %2164 = vmatpush1.xpose.msra.mxu0 0.0
        %2165 = vmatprep.subr.mxu0 0.0
        %2166 = vmatpush1.xpose.msra.mxu0 0.0
        %2167 = vmatprep.subr.mxu0 0.0
        %2168 = vmatpush1.xpose.msra.mxu0 0.0
        %2169 = vmatprep.subr.mxu0 0.0
        %2170 = vmatpush1.xpose.msra.mxu0 0.0
        %2171 = vmatprep.subr.mxu0 0.0
        %2172 = vmatpush1.xpose.msra.mxu0 0.0
        %2173 = vmatprep.subr.mxu0 0.0
        %2174 = vmatpush1.xpose.msra.mxu0 0.0
        %2175 = vmatprep.subr.mxu0 0.0
        %2176 = vmatpush1.xpose.msra.mxu0 0.0
        %2177 = vmatprep.subr.mxu0 0.0
        %2178 = vmatpush1.xpose.msra.mxu0 0.0
        %2179 = vmatprep.subr.mxu0 0.0
        %2180 = vmatpush1.xpose.msra.mxu0 0.0
        %2181 = vmatprep.subr.mxu0 0.0
        %2182 = vmatpush1.xpose.msra.mxu0 0.0
        %2183 = vmatprep.subr.mxu0 0.0
        %2184 = vmatpush1.xpose.msra.mxu0 0.0
        %2185 = vmatprep.subr.mxu0 0.0
        %2186 = vmatpush1.xpose.msra.mxu0 0.0
        %2187 = vmatprep.subr.mxu0 0.0
        %2188 = vmatpush1.xpose.msra.mxu0 0.0
        %2189 = vmatprep.subr.mxu0 0.0
        %2190 = vmatpush1.xpose.msra.mxu0 0.0
        %2191 = vmatprep.subr.mxu0 0.0
        %2192 = vmatpush1.xpose.msra.mxu0 0.0
        %2193 = vmatprep.subr.mxu0 0.0
        %2194 = vmatpush1.xpose.msra.mxu0 0.0
        %2195 = vmatprep.subr.mxu0 0.0
        %2196 = vmatpush1.xpose.msra.mxu0 0.0
        %2197 = vmatprep.subr.mxu0 0.0
        %2198 = vmatpush1.xpose.msra.mxu0 0.0
        %2199 = vmatprep.subr.mxu0 0.0
        %2200 = vmatpush1.xpose.msra.mxu0 0.0
        %2201 = vmatprep.subr.mxu0 0.0
        %2202 = vmatpush1.xpose.msra.mxu0 0.0
        %2203 = vmatprep.subr.mxu0 0.0
        %2204 = vmatpush1.xpose.msra.mxu0 0.0
        %2205 = vmatprep.subr.mxu0 0.0
        %2206 = vmatpush1.xpose.msra.mxu0 0.0
        %2207 = vmatprep.subr.mxu0 0.0
        %2208 = vmatpush1.xpose.msra.mxu0 0.0
        %2209 = vmatprep.subr.mxu0 0.0
        %2210 = vmatpush1.xpose.msra.mxu0 0.0
        %2211 = vmatprep.subr.mxu0 0.0
        %2212 = vmatpush1.xpose.msra.mxu0 0.0
        %2213 = vmatprep.subr.mxu0 0.0
        %2214 = vmatpush1.xpose.msra.mxu0 0.0
        %2215 = vmatprep.subr.mxu0 0.0
        %2216 = vmatpush1.xpose.msra.mxu0 0.0
        %2217 = vmatprep.subr.mxu0 0.0
        %2218 = vmatpush1.xpose.msra.mxu0 0.0
        %2219 = vmatprep.subr.mxu0 0.0
        %2220 = vmatpush1.xpose.msra.mxu0 0.0
        %2221 = vmatprep.subr.mxu0 0.0
        %2222 = vmatpush1.xpose.msra.mxu0 0.0
        %2223 = vmatprep.subr.mxu0 0.0
        %2224 = vmatpush1.xpose.msra.mxu0 0.0
        %2225 = vmatprep.mubr.f32.mxu0 0.0
        %2226 = vmatmul.mubr.f32.gmra.mrb[0].mxu0 %v2157
        %v2227 = vpop.f32.mrb[0].mxu0
        %v2228 = vadd.f32 0.0, %v2227
        %v2229 = vpop.f32.mrb[0].mxu0
        %2230 = vdwg.mxu0
        %v2231 = vmul.f32 %v2150, 0.35355338
        %v2232 = vmul.f32 %v2228, 0.35355338
        %v2233 = vsel %vm984, -1e+09, %v2231
        %v2234 = vsel %vm985, -1e+09, %v2232
        %v2235 = vsel %vm830, %v2233, -inf
        %2236 = vmax.xlane.f32.xlu0 %v2235
        %v2237 = vpop.xlane.xlu0 %2236
        %v2238 = vsel %vm830, %v2234, -inf
        %2239 = vmax.xlane.f32.xlu0 %v2238
        %v2240 = vpop.xlane.xlu0 %2239
        %v2241 = vsub.f32 %v2233, %v2237
        %v2242 = vsub.f32 %v2234, %v2240
        %v2243 = vmul.f32 %v2241, 1.442695
        %v2244 = vpow.pop %v2243
        %v2245 = vmul.f32 %v2242, 1.442695
        %v2246 = vpow.pop %v2245
        %v2247 = vsel %vm830, %v2244, 0.0
        %2248 = vadd.xlane.f32.xlu0 %v2247
        %v2249 = vpop.xlane.xlu0 %2248
        %v2250 = vsel %vm830, %v2246, 0.0
        %2251 = vadd.xlane.f32.xlu0 %v2250
        %v2252 = vpop.xlane.xlu0 %2251
        %v2253 = vrcp.pop %v2249
        %v2254 = vrcp.pop %v2252
        %v2255 = vmul.f32 %v2244, %v2253
        %v2256 = vmul.f32 %v2246, %v2254
        %2257 = vrot.lane.b32.xlu0 %v815, 40
        %v2258 = vpop.permute.xlu0 %2257
        %v2261 = vsel %vm830, %v2255, 0
        %2263 = vmatprep.subr.mxu0 0.0
        %2264 = vmatpush1.msra.mxu0 %v2258
        %2265 = vmatprep.subr.mxu0 0.0
        %2266 = vmatpush1.msra.mxu0 0.0
        %2267 = vmatprep.subr.mxu0 0.0
        %2268 = vmatpush1.msra.mxu0 0.0
        %2269 = vmatprep.subr.mxu0 0.0
        %2270 = vmatpush1.msra.mxu0 0.0
        %2271 = vmatprep.subr.mxu0 0.0
        %2272 = vmatpush1.msra.mxu0 0.0
        %2273 = vmatprep.subr.mxu0 0.0
        %2274 = vmatpush1.msra.mxu0 0.0
        %2275 = vmatprep.subr.mxu0 0.0
        %2276 = vmatpush1.msra.mxu0 0.0
        %2277 = vmatprep.subr.mxu0 0.0
        %2278 = vmatpush1.msra.mxu0 0.0
        %2279 = vmatprep.subr.mxu0 0.0
        %2280 = vmatpush1.msra.mxu0 0.0
        %2281 = vmatprep.subr.mxu0 0.0
        %2282 = vmatpush1.msra.mxu0 0.0
        %2283 = vmatprep.subr.mxu0 0.0
        %2284 = vmatpush1.msra.mxu0 0.0
        %2285 = vmatprep.subr.mxu0 0.0
        %2286 = vmatpush1.msra.mxu0 0.0
        %2287 = vmatprep.subr.mxu0 0.0
        %2288 = vmatpush1.msra.mxu0 0.0
        %2289 = vmatprep.subr.mxu0 0.0
        %2290 = vmatpush1.msra.mxu0 0.0
        %2291 = vmatprep.subr.mxu0 0.0
        %2292 = vmatpush1.msra.mxu0 0.0
        %2293 = vmatprep.subr.mxu0 0.0
        %2294 = vmatpush1.msra.mxu0 0.0
        %2295 = vmatprep.subr.mxu0 0.0
        %2296 = vmatpush1.msra.mxu0 0.0
        %2297 = vmatprep.subr.mxu0 0.0
        %2298 = vmatpush1.msra.mxu0 0.0
        %2299 = vmatprep.subr.mxu0 0.0
        %2300 = vmatpush1.msra.mxu0 0.0
        %2301 = vmatprep.subr.mxu0 0.0
        %2302 = vmatpush1.msra.mxu0 0.0
        %2303 = vmatprep.subr.mxu0 0.0
        %2304 = vmatpush1.msra.mxu0 0.0
        %2305 = vmatprep.subr.mxu0 0.0
        %2306 = vmatpush1.msra.mxu0 0.0
        %2307 = vmatprep.subr.mxu0 0.0
        %2308 = vmatpush1.msra.mxu0 0.0
        %2309 = vmatprep.subr.mxu0 0.0
        %2310 = vmatpush1.msra.mxu0 0.0
        %2311 = vmatprep.subr.mxu0 0.0
        %2312 = vmatpush1.msra.mxu0 0.0
        %2313 = vmatprep.subr.mxu0 0.0
        %2314 = vmatpush1.msra.mxu0 0.0
        %2315 = vmatprep.subr.mxu0 0.0
        %2316 = vmatpush1.msra.mxu0 0.0
        %2317 = vmatprep.subr.mxu0 0.0
        %2318 = vmatpush1.msra.mxu0 0.0
        %2319 = vmatprep.subr.mxu0 0.0
        %2320 = vmatpush1.msra.mxu0 0.0
        %2321 = vmatprep.subr.mxu0 0.0
        %2322 = vmatpush1.msra.mxu0 0.0
        %2323 = vmatprep.subr.mxu0 0.0
        %2324 = vmatpush1.msra.mxu0 0.0
        %2325 = vmatprep.subr.mxu0 0.0
        %2326 = vmatpush1.msra.mxu0 0.0
        %2327 = vmatprep.mubr.f32.mxu0 0.0
        %2328 = vmatmul.mubr.f32.gmra.mrb[0].mxu0 %v2261
        %v2329 = vpop.f32.mrb[0].mxu0
        %v2330 = vadd.f32 0.0, %v2329
        %v2331 = vpop.f32.mrb[0].mxu0
        %2332 = vdwg.mxu0
        %2333 = vrot.lane.b32.xlu0 %v820, 40
        %v2334 = vpop.permute.xlu0 %2333
        %v2337 = vsel %vm830, %v2256, 0
        %2339 = vmatprep.subr.mxu0 0.0
        %2340 = vmatpush1.msra.mxu0 %v2334
        %2341 = vmatprep.subr.mxu0 0.0
        %2342 = vmatpush1.msra.mxu0 0.0
        %2343 = vmatprep.subr.mxu0 0.0
        %2344 = vmatpush1.msra.mxu0 0.0
        %2345 = vmatprep.subr.mxu0 0.0
        %2346 = vmatpush1.msra.mxu0 0.0
        %2347 = vmatprep.subr.mxu0 0.0
        %2348 = vmatpush1.msra.mxu0 0.0
        %2349 = vmatprep.subr.mxu0 0.0
        %2350 = vmatpush1.msra.mxu0 0.0
        %2351 = vmatprep.subr.mxu0 0.0
        %2352 = vmatpush1.msra.mxu0 0.0
        %2353 = vmatprep.subr.mxu0 0.0
        %2354 = vmatpush1.msra.mxu0 0.0
        %2355 = vmatprep.subr.mxu0 0.0
        %2356 = vmatpush1.msra.mxu0 0.0
        %2357 = vmatprep.subr.mxu0 0.0
        %2358 = vmatpush1.msra.mxu0 0.0
        %2359 = vmatprep.subr.mxu0 0.0
        %2360 = vmatpush1.msra.mxu0 0.0
        %2361 = vmatprep.subr.mxu0 0.0
        %2362 = vmatpush1.msra.mxu0 0.0
        %2363 = vmatprep.subr.mxu0 0.0
        %2364 = vmatpush1.msra.mxu0 0.0
        %2365 = vmatprep.subr.mxu0 0.0
        %2366 = vmatpush1.msra.mxu0 0.0
        %2367 = vmatprep.subr.mxu0 0.0
        %2368 = vmatpush1.msra.mxu0 0.0
        %2369 = vmatprep.subr.mxu0 0.0
        %2370 = vmatpush1.msra.mxu0 0.0
        %2371 = vmatprep.subr.mxu0 0.0
        %2372 = vmatpush1.msra.mxu0 0.0
        %2373 = vmatprep.subr.mxu0 0.0
        %2374 = vmatpush1.msra.mxu0 0.0
        %2375 = vmatprep.subr.mxu0 0.0
        %2376 = vmatpush1.msra.mxu0 0.0
        %2377 = vmatprep.subr.mxu0 0.0
        %2378 = vmatpush1.msra.mxu0 0.0
        %2379 = vmatprep.subr.mxu0 0.0
        %2380 = vmatpush1.msra.mxu0 0.0
        %2381 = vmatprep.subr.mxu0 0.0
        %2382 = vmatpush1.msra.mxu0 0.0
        %2383 = vmatprep.subr.mxu0 0.0
        %2384 = vmatpush1.msra.mxu0 0.0
        %2385 = vmatprep.subr.mxu0 0.0
        %2386 = vmatpush1.msra.mxu0 0.0
        %2387 = vmatprep.subr.mxu0 0.0
        %2388 = vmatpush1.msra.mxu0 0.0
        %2389 = vmatprep.subr.mxu0 0.0
        %2390 = vmatpush1.msra.mxu0 0.0
        %2391 = vmatprep.subr.mxu0 0.0
        %2392 = vmatpush1.msra.mxu0 0.0
        %2393 = vmatprep.subr.mxu0 0.0
        %2394 = vmatpush1.msra.mxu0 0.0
        %2395 = vmatprep.subr.mxu0 0.0
        %2396 = vmatpush1.msra.mxu0 0.0
        %2397 = vmatprep.subr.mxu0 0.0
        %2398 = vmatpush1.msra.mxu0 0.0
        %2399 = vmatprep.subr.mxu0 0.0
        %2400 = vmatpush1.msra.mxu0 0.0
        %2401 = vmatprep.subr.mxu0 0.0
        %2402 = vmatpush1.msra.mxu0 0.0
        %2403 = vmatprep.mubr.f32.mxu0 0.0
        %2404 = vmatmul.mubr.f32.gmra.mrb[0].mxu0 %v2337
        %v2405 = vpop.f32.mrb[0].mxu0
        %v2406 = vadd.f32 0.0, %v2405
        %v2407 = vpop.f32.mrb[0].mxu0
        %2408 = vdwg.mxu0
        %v2410 = vsel %vm830, %v2330, 0
        %v2413 = vsel %vm830, %v2406, 0
        %2415 = vmatprep.subr.mxu0 0.0
        %2416 = vmatpush1.msra.mxu0 %v826
        %2417 = vmatprep.subr.mxu0 0.0
        %2418 = vmatpush1.msra.mxu0 0.0
        %2419 = vmatprep.subr.mxu0 0.0
        %2420 = vmatpush1.msra.mxu0 0.0
        %2421 = vmatprep.subr.mxu0 0.0
        %2422 = vmatpush1.msra.mxu0 0.0
        %2423 = vmatprep.subr.mxu0 0.0
        %2424 = vmatpush1.msra.mxu0 0.0
        %2425 = vmatprep.subr.mxu0 0.0
        %2426 = vmatpush1.msra.mxu0 0.0
        %2427 = vmatprep.subr.mxu0 0.0
        %2428 = vmatpush1.msra.mxu0 0.0
        %2429 = vmatprep.subr.mxu0 0.0
        %2430 = vmatpush1.msra.mxu0 0.0
        %2431 = vmatprep.subr.mxu0 0.0
        %2432 = vmatpush1.msra.mxu0 0.0
        %2433 = vmatprep.subr.mxu0 0.0
        %2434 = vmatpush1.msra.mxu0 0.0
        %2435 = vmatprep.subr.mxu0 0.0
        %2436 = vmatpush1.msra.mxu0 0.0
        %2437 = vmatprep.subr.mxu0 0.0
        %2438 = vmatpush1.msra.mxu0 0.0
        %2439 = vmatprep.subr.mxu0 0.0
        %2440 = vmatpush1.msra.mxu0 0.0
        %2441 = vmatprep.subr.mxu0 0.0
        %2442 = vmatpush1.msra.mxu0 0.0
        %2443 = vmatprep.subr.mxu0 0.0
        %2444 = vmatpush1.msra.mxu0 0.0
        %2445 = vmatprep.subr.mxu0 0.0
        %2446 = vmatpush1.msra.mxu0 0.0
        %2447 = vmatprep.subr.mxu0 0.0
        %2448 = vmatpush1.msra.mxu0 0.0
        %2449 = vmatprep.subr.mxu0 0.0
        %2450 = vmatpush1.msra.mxu0 0.0
        %2451 = vmatprep.subr.mxu0 0.0
        %2452 = vmatpush1.msra.mxu0 0.0
        %2453 = vmatprep.subr.mxu0 0.0
        %2454 = vmatpush1.msra.mxu0 0.0
        %2455 = vmatprep.subr.mxu0 0.0
        %2456 = vmatpush1.msra.mxu0 0.0
        %2457 = vmatprep.subr.mxu0 0.0
        %2458 = vmatpush1.msra.mxu0 0.0
        %2459 = vmatprep.subr.mxu0 0.0
        %2460 = vmatpush1.msra.mxu0 0.0
        %2461 = vmatprep.subr.mxu0 0.0
        %2462 = vmatpush1.msra.mxu0 0.0
        %2463 = vmatprep.subr.mxu0 0.0
        %2464 = vmatpush1.msra.mxu0 0.0
        %2465 = vmatprep.subr.mxu0 0.0
        %2466 = vmatpush1.msra.mxu0 0.0
        %2467 = vmatprep.subr.mxu0 0.0
        %2468 = vmatpush1.msra.mxu0 0.0
        %2469 = vmatprep.subr.mxu0 0.0
        %2470 = vmatpush1.msra.mxu0 0.0
        %2471 = vmatprep.subr.mxu0 0.0
        %2472 = vmatpush1.msra.mxu0 0.0
        %2473 = vmatprep.subr.mxu0 0.0
        %2474 = vmatpush1.msra.mxu0 0.0
        %2475 = vmatprep.subr.mxu0 0.0
        %2476 = vmatpush1.msra.mxu0 0.0
        %2477 = vmatprep.subr.mxu0 0.0
        %2478 = vmatpush1.msra.mxu0 0.0
        %2479 = vmatprep.mubr.f32.mxu0 0.0
        %2480 = vmatmul.mubr.f32.gmra.mrb[0].mxu0 %v2410
        %v2481 = vpop.f32.mrb[0].mxu0
        %v2482 = vadd.f32 0.0, %v2481
        %v2483 = vpop.f32.mrb[0].mxu0
        %2484 = vmatprep.mubr.f32.mxu0 0.0
        %2485 = vmatmul.mubr.f32.gmra.mrb[0].mxu0 %v2413
        %v2486 = vpop.f32.mrb[0].mxu0
        %v2487 = vadd.f32 0.0, %v2486
        %v2488 = vpop.f32.mrb[0].mxu0
        %2489 = vdwg.mxu0
        %v2490 = vadd.f32 %v2073, %v2482
        %v2491 = vadd.f32 %v2074, %v2487
        %v2492 = vadd.f32 %v2490, %v728
        %v2493 = vadd.f32 %v2491, %v729
        %v2494 = vsel %vm741, %v2492, 0.0
        %2495 = vadd.xlane.f32.xlu0 %v2494
        %v2496 = vpop.xlane.xlu0 %2495
        %v2497 = vsel %vm741, %v2493, 0.0
        %2498 = vadd.xlane.f32.xlu0 %v2497
        %v2499 = vpop.xlane.xlu0 %2498
        %v2500 = vrcp.pop 32.0
        %v2501 = vmul.f32 %v2496, %v2500
        %v2502 = vmul.f32 %v2499, %v2500
        %v2503 = vsub.f32 %v2492, %v2501
        %v2504 = vsub.f32 %v2493, %v2502
        %v2505 = vmul.f32 %v2503, %v2503
        %v2506 = vmul.f32 %v2504, %v2504
        %v2507 = vsel %vm741, %v2505, 0.0
        %2508 = vadd.xlane.f32.xlu0 %v2507
        %v2509 = vpop.xlane.xlu0 %2508
        %v2510 = vsel %vm741, %v2506, 0.0
        %2511 = vadd.xlane.f32.xlu0 %v2510
        %v2512 = vpop.xlane.xlu0 %2511
        %v2513 = vmul.f32 %v2509, %v2500
        %v2514 = vmul.f32 %v2512, %v2500
        %v2515 = vadd.f32 %v2513, 1e-05
        %v2516 = vadd.f32 %v2514, 1e-05
        %v2517 = vrsqrt.pop %v2515
        %v2518 = vrsqrt.pop %v2516
        %v2519 = vmul.f32 %v2503, %v2517
        %v2520 = vmul.f32 %v2504, %v2518
        %v2521 = vlaneseq
        %v2522 = vshrl.u32 %v2521, 7
        %v2523 = vsub.s32 0, %v2522
        %v2524 = vrot.slane %v736, %v2523
        %v2525 = vmul.f32 %v2519, %v2524
        %v2526 = vmul.f32 %v2520, %v2524
        %v2527 = vlaneseq
        %v2528 = vshrl.u32 %v2527, 7
        %v2529 = vsub.s32 1, %v2528
        %v2530 = vrot.slane %v736, %v2529
        %v2531 = vadd.f32 %v2525, %v2530
        %v2532 = vadd.f32 %v2526, %v2530
        %2533 = vst.msk [vmem:[%s687] sm:$0xff] %vm830, %v1008
        %2534 = vst.msk [vmem:[%s687 + $0x8] sm:$0xff] %vm830, %v1009
        %2535 = vst.msk [vmem:[%s687 + $0x10] sm:$0xff] %vm830, %v1342
        %2536 = vst.msk [vmem:[%s687 + $0x18] sm:$0xff] %vm830, %v1343
        %2537 = vst.msk [vmem:[%s687 + $0x20] sm:$0xff] %vm830, %v1838
        %2538 = vst.msk [vmem:[%s687 + $0x28] sm:$0xff] %vm830, %v1839
        %2539 = vst.msk [vmem:[%s687 + $0x30] sm:$0xff] %vm830, %v2255
        %2540 = vst.msk [vmem:[%s687 + $0x38] sm:$0xff] %vm830, %v2256
        %v2541 = vld [vmem:[%s709] sm:$0xff]
        %v2542 = vld [vmem:[%s709 + $0x8] sm:$0xff]
        %v2543 = vld [vmem:[%s709 + $0x10] sm:$0xff]
        %v2544 = vld [vmem:[%s709 + $0x18] sm:$0xff]
        %v2546 = vsel %vm741, %v2531, 0
        %v2549 = vsel %vm741, %v2532, 0
        %2551 = vmatprep.subr.mxu0 0.0
        %2552 = vmatpush1.msra.mxu0 %v2541
        %2553 = vmatprep.subr.mxu0 0.0
        %2554 = vmatpush1.msra.mxu0 %v2542
        %2555 = vmatprep.subr.mxu0 0.0
        %2556 = vmatpush1.msra.mxu0 %v2543
        %2557 = vmatprep.subr.mxu0 0.0
        %2558 = vmatpush1.msra.mxu0 %v2544
        %2559 = vmatprep.subr.mxu0 0.0
        %2560 = vmatpush1.msra.mxu0 0.0
        %2561 = vmatprep.subr.mxu0 0.0
        %2562 = vmatpush1.msra.mxu0 0.0
        %2563 = vmatprep.subr.mxu0 0.0
        %2564 = vmatpush1.msra.mxu0 0.0
        %2565 = vmatprep.subr.mxu0 0.0
        %2566 = vmatpush1.msra.mxu0 0.0
        %2567 = vmatprep.subr.mxu0 0.0
        %2568 = vmatpush1.msra.mxu0 0.0
        %2569 = vmatprep.subr.mxu0 0.0
        %2570 = vmatpush1.msra.mxu0 0.0
        %2571 = vmatprep.subr.mxu0 0.0
        %2572 = vmatpush1.msra.mxu0 0.0
        %2573 = vmatprep.subr.mxu0 0.0
        %2574 = vmatpush1.msra.mxu0 0.0
        %2575 = vmatprep.subr.mxu0 0.0
        %2576 = vmatpush1.msra.mxu0 0.0
        %2577 = vmatprep.subr.mxu0 0.0
        %2578 = vmatpush1.msra.mxu0 0.0
        %2579 = vmatprep.subr.mxu0 0.0
        %2580 = vmatpush1.msra.mxu0 0.0
        %2581 = vmatprep.subr.mxu0 0.0
        %2582 = vmatpush1.msra.mxu0 0.0
        %2583 = vmatprep.subr.mxu0 0.0
        %2584 = vmatpush1.msra.mxu0 0.0
        %2585 = vmatprep.subr.mxu0 0.0
        %2586 = vmatpush1.msra.mxu0 0.0
        %2587 = vmatprep.subr.mxu0 0.0
        %2588 = vmatpush1.msra.mxu0 0.0
        %2589 = vmatprep.subr.mxu0 0.0
        %2590 = vmatpush1.msra.mxu0 0.0
        %2591 = vmatprep.subr.mxu0 0.0
        %2592 = vmatpush1.msra.mxu0 0.0
        %2593 = vmatprep.subr.mxu0 0.0
        %2594 = vmatpush1.msra.mxu0 0.0
        %2595 = vmatprep.subr.mxu0 0.0
        %2596 = vmatpush1.msra.mxu0 0.0
        %2597 = vmatprep.subr.mxu0 0.0
        %2598 = vmatpush1.msra.mxu0 0.0
        %2599 = vmatprep.subr.mxu0 0.0
        %2600 = vmatpush1.msra.mxu0 0.0
        %2601 = vmatprep.subr.mxu0 0.0
        %2602 = vmatpush1.msra.mxu0 0.0
        %2603 = vmatprep.subr.mxu0 0.0
        %2604 = vmatpush1.msra.mxu0 0.0
        %2605 = vmatprep.subr.mxu0 0.0
        %2606 = vmatpush1.msra.mxu0 0.0
        %2607 = vmatprep.subr.mxu0 0.0
        %2608 = vmatpush1.msra.mxu0 0.0
        %2609 = vmatprep.subr.mxu0 0.0
        %2610 = vmatpush1.msra.mxu0 0.0
        %2611 = vmatprep.subr.mxu0 0.0
        %2612 = vmatpush1.msra.mxu0 0.0
        %2613 = vmatprep.subr.mxu0 0.0
        %2614 = vmatpush1.msra.mxu0 0.0
        %2615 = vmatprep.mubr.f32.mxu0 0.0
        %2616 = vmatmul.mubr.f32.gmra.mrb[0].mxu0 %v2546
        %v2617 = vpop.f32.mrb[0].mxu0
        %v2618 = vadd.f32 0.0, %v2617
        %v2619 = vpop.f32.mrb[0].mxu0
        %2620 = vmatprep.mubr.f32.mxu0 0.0
        %2621 = vmatmul.mubr.f32.gmra.mrb[0].mxu0 %v2549
        %v2622 = vpop.f32.mrb[0].mxu0
        %v2623 = vadd.f32 0.0, %v2622
        %v2624 = vpop.f32.mrb[0].mxu0
        %2625 = vdwg.mxu0
        %v2626 = vld [vmem:[%s593] sm:$0xff]
        %v2627 = vld [vmem:[%s593 + $0x8] sm:$0xff]
        %v2628 = vld [vmem:[%s593 + $0x10] sm:$0xff]
        %v2629 = vld [vmem:[%s593 + $0x18] sm:$0xff]
        %v2631 = vsel %vm741, %v730, 0
        %v2634 = vsel %vm741, %v731, 0
        %2636 = vmatprep.subr.mxu0 0.0
        %2637 = vmatpush1.msra.mxu0 %v2626
        %2638 = vmatprep.subr.mxu0 0.0
        %2639 = vmatpush1.msra.mxu0 %v2627
        %2640 = vmatprep.subr.mxu0 0.0
        %2641 = vmatpush1.msra.mxu0 %v2628
        %2642 = vmatprep.subr.mxu0 0.0
        %2643 = vmatpush1.msra.mxu0 %v2629
        %2644 = vmatprep.subr.mxu0 0.0
        %2645 = vmatpush1.msra.mxu0 0.0
        %2646 = vmatprep.subr.mxu0 0.0
        %2647 = vmatpush1.msra.mxu0 0.0
        %2648 = vmatprep.subr.mxu0 0.0
        %2649 = vmatpush1.msra.mxu0 0.0
        %2650 = vmatprep.subr.mxu0 0.0
        %2651 = vmatpush1.msra.mxu0 0.0
        %2652 = vmatprep.subr.mxu0 0.0
        %2653 = vmatpush1.msra.mxu0 0.0
        %2654 = vmatprep.subr.mxu0 0.0
        %2655 = vmatpush1.msra.mxu0 0.0
        %2656 = vmatprep.subr.mxu0 0.0
        %2657 = vmatpush1.msra.mxu0 0.0
        %2658 = vmatprep.subr.mxu0 0.0
        %2659 = vmatpush1.msra.mxu0 0.0
        %2660 = vmatprep.subr.mxu0 0.0
        %2661 = vmatpush1.msra.mxu0 0.0
        %2662 = vmatprep.subr.mxu0 0.0
        %2663 = vmatpush1.msra.mxu0 0.0
        %2664 = vmatprep.subr.mxu0 0.0
        %2665 = vmatpush1.msra.mxu0 0.0
        %2666 = vmatprep.subr.mxu0 0.0
        %2667 = vmatpush1.msra.mxu0 0.0
        %2668 = vmatprep.subr.mxu0 0.0
        %2669 = vmatpush1.msra.mxu0 0.0
        %2670 = vmatprep.subr.mxu0 0.0
        %2671 = vmatpush1.msra.mxu0 0.0
        %2672 = vmatprep.subr.mxu0 0.0
        %2673 = vmatpush1.msra.mxu0 0.0
        %2674 = vmatprep.subr.mxu0 0.0
        %2675 = vmatpush1.msra.mxu0 0.0
        %2676 = vmatprep.subr.mxu0 0.0
        %2677 = vmatpush1.msra.mxu0 0.0
        %2678 = vmatprep.subr.mxu0 0.0
        %2679 = vmatpush1.msra.mxu0 0.0
        %2680 = vmatprep.subr.mxu0 0.0
        %2681 = vmatpush1.msra.mxu0 0.0
        %2682 = vmatprep.subr.mxu0 0.0
        %2683 = vmatpush1.msra.mxu0 0.0
        %2684 = vmatprep.subr.mxu0 0.0
        %2685 = vmatpush1.msra.mxu0 0.0
        %2686 = vmatprep.subr.mxu0 0.0
        %2687 = vmatpush1.msra.mxu0 0.0
        %2688 = vmatprep.subr.mxu0 0.0
        %2689 = vmatpush1.msra.mxu0 0.0
        %2690 = vmatprep.subr.mxu0 0.0
        %2691 = vmatpush1.msra.mxu0 0.0
        %2692 = vmatprep.subr.mxu0 0.0
        %2693 = vmatpush1.msra.mxu0 0.0
        %2694 = vmatprep.subr.mxu0 0.0
        %2695 = vmatpush1.msra.mxu0 0.0
        %2696 = vmatprep.subr.mxu0 0.0
        %2697 = vmatpush1.msra.mxu0 0.0
        %2698 = vmatprep.subr.mxu0 0.0
        %2699 = vmatpush1.msra.mxu0 0.0
        %2700 = vmatprep.mubr.f32.mxu0 0.0
        %2701 = vmatmul.mubr.f32.gmra.mrb[0].mxu0 %v2631
        %v2702 = vpop.f32.mrb[0].mxu0
        %v2703 = vadd.f32 0.0, %v2702
        %v2704 = vpop.f32.mrb[0].mxu0
        %2705 = vmatprep.mubr.f32.mxu0 0.0
        %2706 = vmatmul.mubr.f32.gmra.mrb[0].mxu0 %v2634
        %v2707 = vpop.f32.mrb[0].mxu0
        %v2708 = vadd.f32 0.0, %v2707
        %v2709 = vpop.f32.mrb[0].mxu0
        %2710 = vdwg.mxu0
        %v2711 = vld [vmem:[%s602] sm:$0xff]
        %v2712 = vld [vmem:[%s602 + $0x8] sm:$0xff]
        %v2713 = vld [vmem:[%s602 + $0x10] sm:$0xff]
        %v2714 = vld [vmem:[%s602 + $0x18] sm:$0xff]
        %v2716 = vsel %vm830, %v2618, 0
        %v2719 = vsel %vm830, %v2703, 0
        %2721 = vmatprep.subr.mxu0 0.0
        %2722 = vmatpush1.xpose.msra.mxu0 %v2719
        %2723 = vmatprep.subr.mxu0 0.0
        %2724 = vmatpush1.xpose.msra.mxu0 0.0
        %2725 = vmatprep.subr.mxu0 0.0
        %2726 = vmatpush1.xpose.msra.mxu0 0.0
        %2727 = vmatprep.subr.mxu0 0.0
        %2728 = vmatpush1.xpose.msra.mxu0 0.0
        %2729 = vmatprep.subr.mxu0 0.0
        %2730 = vmatpush1.xpose.msra.mxu0 0.0
        %2731 = vmatprep.subr.mxu0 0.0
        %2732 = vmatpush1.xpose.msra.mxu0 0.0
        %2733 = vmatprep.subr.mxu0 0.0
        %2734 = vmatpush1.xpose.msra.mxu0 0.0
        %2735 = vmatprep.subr.mxu0 0.0
        %2736 = vmatpush1.xpose.msra.mxu0 0.0
        %2737 = vmatprep.subr.mxu0 0.0
        %2738 = vmatpush1.xpose.msra.mxu0 0.0
        %2739 = vmatprep.subr.mxu0 0.0
        %2740 = vmatpush1.xpose.msra.mxu0 0.0
        %2741 = vmatprep.subr.mxu0 0.0
        %2742 = vmatpush1.xpose.msra.mxu0 0.0
        %2743 = vmatprep.subr.mxu0 0.0
        %2744 = vmatpush1.xpose.msra.mxu0 0.0
        %2745 = vmatprep.subr.mxu0 0.0
        %2746 = vmatpush1.xpose.msra.mxu0 0.0
        %2747 = vmatprep.subr.mxu0 0.0
        %2748 = vmatpush1.xpose.msra.mxu0 0.0
        %2749 = vmatprep.subr.mxu0 0.0
        %2750 = vmatpush1.xpose.msra.mxu0 0.0
        %2751 = vmatprep.subr.mxu0 0.0
        %2752 = vmatpush1.xpose.msra.mxu0 0.0
        %2753 = vmatprep.subr.mxu0 0.0
        %2754 = vmatpush1.xpose.msra.mxu0 0.0
        %2755 = vmatprep.subr.mxu0 0.0
        %2756 = vmatpush1.xpose.msra.mxu0 0.0
        %2757 = vmatprep.subr.mxu0 0.0
        %2758 = vmatpush1.xpose.msra.mxu0 0.0
        %2759 = vmatprep.subr.mxu0 0.0
        %2760 = vmatpush1.xpose.msra.mxu0 0.0
        %2761 = vmatprep.subr.mxu0 0.0
        %2762 = vmatpush1.xpose.msra.mxu0 0.0
        %2763 = vmatprep.subr.mxu0 0.0
        %2764 = vmatpush1.xpose.msra.mxu0 0.0
        %2765 = vmatprep.subr.mxu0 0.0
        %2766 = vmatpush1.xpose.msra.mxu0 0.0
        %2767 = vmatprep.subr.mxu0 0.0
        %2768 = vmatpush1.xpose.msra.mxu0 0.0
        %2769 = vmatprep.subr.mxu0 0.0
        %2770 = vmatpush1.xpose.msra.mxu0 0.0
        %2771 = vmatprep.subr.mxu0 0.0
        %2772 = vmatpush1.xpose.msra.mxu0 0.0
        %2773 = vmatprep.subr.mxu0 0.0
        %2774 = vmatpush1.xpose.msra.mxu0 0.0
        %2775 = vmatprep.subr.mxu0 0.0
        %2776 = vmatpush1.xpose.msra.mxu0 0.0
        %2777 = vmatprep.subr.mxu0 0.0
        %2778 = vmatpush1.xpose.msra.mxu0 0.0
        %2779 = vmatprep.subr.mxu0 0.0
        %2780 = vmatpush1.xpose.msra.mxu0 0.0
        %2781 = vmatprep.subr.mxu0 0.0
        %2782 = vmatpush1.xpose.msra.mxu0 0.0
        %2783 = vmatprep.subr.mxu0 0.0
        %2784 = vmatpush1.xpose.msra.mxu0 0.0
        %2785 = vmatprep.mubr.f32.mxu0 0.0
        %2786 = vmatmul.mubr.f32.gmra.mrb[0].mxu0 %v2716
        %v2787 = vpop.f32.mrb[0].mxu0
        %v2788 = vadd.f32 0.0, %v2787
        %v2789 = vpop.f32.mrb[0].mxu0
        %2790 = vdwg.mxu0
        %v2792 = vsel %vm830, %v2623, 0
        %v2795 = vsel %vm830, %v2708, 0
        %2797 = vmatprep.subr.mxu0 0.0
        %2798 = vmatpush1.xpose.msra.mxu0 %v2795
        %2799 = vmatprep.subr.mxu0 0.0
        %2800 = vmatpush1.xpose.msra.mxu0 0.0
        %2801 = vmatprep.subr.mxu0 0.0
        %2802 = vmatpush1.xpose.msra.mxu0 0.0
        %2803 = vmatprep.subr.mxu0 0.0
        %2804 = vmatpush1.xpose.msra.mxu0 0.0
        %2805 = vmatprep.subr.mxu0 0.0
        %2806 = vmatpush1.xpose.msra.mxu0 0.0
        %2807 = vmatprep.subr.mxu0 0.0
        %2808 = vmatpush1.xpose.msra.mxu0 0.0
        %2809 = vmatprep.subr.mxu0 0.0
        %2810 = vmatpush1.xpose.msra.mxu0 0.0
        %2811 = vmatprep.subr.mxu0 0.0
        %2812 = vmatpush1.xpose.msra.mxu0 0.0
        %2813 = vmatprep.subr.mxu0 0.0
        %2814 = vmatpush1.xpose.msra.mxu0 0.0
        %2815 = vmatprep.subr.mxu0 0.0
        %2816 = vmatpush1.xpose.msra.mxu0 0.0
        %2817 = vmatprep.subr.mxu0 0.0
        %2818 = vmatpush1.xpose.msra.mxu0 0.0
        %2819 = vmatprep.subr.mxu0 0.0
        %2820 = vmatpush1.xpose.msra.mxu0 0.0
        %2821 = vmatprep.subr.mxu0 0.0
        %2822 = vmatpush1.xpose.msra.mxu0 0.0
        %2823 = vmatprep.subr.mxu0 0.0
        %2824 = vmatpush1.xpose.msra.mxu0 0.0
        %2825 = vmatprep.subr.mxu0 0.0
        %2826 = vmatpush1.xpose.msra.mxu0 0.0
        %2827 = vmatprep.subr.mxu0 0.0
        %2828 = vmatpush1.xpose.msra.mxu0 0.0
        %2829 = vmatprep.subr.mxu0 0.0
        %2830 = vmatpush1.xpose.msra.mxu0 0.0
        %2831 = vmatprep.subr.mxu0 0.0
        %2832 = vmatpush1.xpose.msra.mxu0 0.0
        %2833 = vmatprep.subr.mxu0 0.0
        %2834 = vmatpush1.xpose.msra.mxu0 0.0
        %2835 = vmatprep.subr.mxu0 0.0
        %2836 = vmatpush1.xpose.msra.mxu0 0.0
        %2837 = vmatprep.subr.mxu0 0.0
        %2838 = vmatpush1.xpose.msra.mxu0 0.0
        %2839 = vmatprep.subr.mxu0 0.0
        %2840 = vmatpush1.xpose.msra.mxu0 0.0
        %2841 = vmatprep.subr.mxu0 0.0
        %2842 = vmatpush1.xpose.msra.mxu0 0.0
        %2843 = vmatprep.subr.mxu0 0.0
        %2844 = vmatpush1.xpose.msra.mxu0 0.0
        %2845 = vmatprep.subr.mxu0 0.0
        %2846 = vmatpush1.xpose.msra.mxu0 0.0
        %2847 = vmatprep.subr.mxu0 0.0
        %2848 = vmatpush1.xpose.msra.mxu0 0.0
        %2849 = vmatprep.subr.mxu0 0.0
        %2850 = vmatpush1.xpose.msra.mxu0 0.0
        %2851 = vmatprep.subr.mxu0 0.0
        %2852 = vmatpush1.xpose.msra.mxu0 0.0
        %2853 = vmatprep.subr.mxu0 0.0
        %2854 = vmatpush1.xpose.msra.mxu0 0.0
        %2855 = vmatprep.subr.mxu0 0.0
        %2856 = vmatpush1.xpose.msra.mxu0 0.0
        %2857 = vmatprep.subr.mxu0 0.0
        %2858 = vmatpush1.xpose.msra.mxu0 0.0
        %2859 = vmatprep.subr.mxu0 0.0
        %2860 = vmatpush1.xpose.msra.mxu0 0.0
        %2861 = vmatprep.mubr.f32.mxu0 0.0
        %2862 = vmatmul.mubr.f32.gmra.mrb[0].mxu0 %v2792
        %v2863 = vpop.f32.mrb[0].mxu0
        %v2864 = vadd.f32 0.0, %v2863
        %v2865 = vpop.f32.mrb[0].mxu0
        %2866 = vdwg.mxu0
        %v2867 = vmul.f32 %v2788, 0.35355338
        %v2868 = vmul.f32 %v2864, 0.35355338
        %vm2869 = vcmp.gt.f32.partialorder %v734, 0.0
        %vm2870 = vcmp.gt.f32.partialorder %v735, 0.0
        %v2871 = vsel %vm2869, -1e+09, %v2867
        %v2872 = vsel %vm2870, -1e+09, %v2868
        %v2873 = vsel %vm830, %v2871, -inf
        %2874 = vmax.xlane.f32.xlu0 %v2873
        %v2875 = vpop.xlane.xlu0 %2874
        %v2876 = vsel %vm830, %v2872, -inf
        %2877 = vmax.xlane.f32.xlu0 %v2876
        %v2878 = vpop.xlane.xlu0 %2877
        %v2879 = vsub.f32 %v2871, %v2875
        %v2880 = vsub.f32 %v2872, %v2878
        %v2881 = vmul.f32 %v2879, 1.442695
        %v2882 = vpow.pop %v2881
        %v2883 = vmul.f32 %v2880, 1.442695
        %v2884 = vpow.pop %v2883
        %v2885 = vsel %vm830, %v2882, 0.0
        %2886 = vadd.xlane.f32.xlu0 %v2885
        %v2887 = vpop.xlane.xlu0 %2886
        %v2888 = vsel %vm830, %v2884, 0.0
        %2889 = vadd.xlane.f32.xlu0 %v2888
        %v2890 = vpop.xlane.xlu0 %2889
        %v2891 = vrcp.pop %v2887
        %v2892 = vrcp.pop %v2890
        %v2893 = vmul.f32 %v2882, %v2891
        %v2894 = vmul.f32 %v2884, %v2892
        %2895 = vrot.lane.b32.xlu0 %v2703, 96
        %v2896 = vpop.permute.xlu0 %2895
        %v2899 = vsel %vm830, %v2893, 0
        %2901 = vmatprep.subr.mxu0 0.0
        %2902 = vmatpush1.msra.mxu0 %v2896
        %2903 = vmatprep.subr.mxu0 0.0
        %2904 = vmatpush1.msra.mxu0 0.0
        %2905 = vmatprep.subr.mxu0 0.0
        %2906 = vmatpush1.msra.mxu0 0.0
        %2907 = vmatprep.subr.mxu0 0.0
        %2908 = vmatpush1.msra.mxu0 0.0
        %2909 = vmatprep.subr.mxu0 0.0
        %2910 = vmatpush1.msra.mxu0 0.0
        %2911 = vmatprep.subr.mxu0 0.0
        %2912 = vmatpush1.msra.mxu0 0.0
        %2913 = vmatprep.subr.mxu0 0.0
        %2914 = vmatpush1.msra.mxu0 0.0
        %2915 = vmatprep.subr.mxu0 0.0
        %2916 = vmatpush1.msra.mxu0 0.0
        %2917 = vmatprep.subr.mxu0 0.0
        %2918 = vmatpush1.msra.mxu0 0.0
        %2919 = vmatprep.subr.mxu0 0.0
        %2920 = vmatpush1.msra.mxu0 0.0
        %2921 = vmatprep.subr.mxu0 0.0
        %2922 = vmatpush1.msra.mxu0 0.0
        %2923 = vmatprep.subr.mxu0 0.0
        %2924 = vmatpush1.msra.mxu0 0.0
        %2925 = vmatprep.subr.mxu0 0.0
        %2926 = vmatpush1.msra.mxu0 0.0
        %2927 = vmatprep.subr.mxu0 0.0
        %2928 = vmatpush1.msra.mxu0 0.0
        %2929 = vmatprep.subr.mxu0 0.0
        %2930 = vmatpush1.msra.mxu0 0.0
        %2931 = vmatprep.subr.mxu0 0.0
        %2932 = vmatpush1.msra.mxu0 0.0
        %2933 = vmatprep.subr.mxu0 0.0
        %2934 = vmatpush1.msra.mxu0 0.0
        %2935 = vmatprep.subr.mxu0 0.0
        %2936 = vmatpush1.msra.mxu0 0.0
        %2937 = vmatprep.subr.mxu0 0.0
        %2938 = vmatpush1.msra.mxu0 0.0
        %2939 = vmatprep.subr.mxu0 0.0
        %2940 = vmatpush1.msra.mxu0 0.0
        %2941 = vmatprep.subr.mxu0 0.0
        %2942 = vmatpush1.msra.mxu0 0.0
        %2943 = vmatprep.subr.mxu0 0.0
        %2944 = vmatpush1.msra.mxu0 0.0
        %2945 = vmatprep.subr.mxu0 0.0
        %2946 = vmatpush1.msra.mxu0 0.0
        %2947 = vmatprep.subr.mxu0 0.0
        %2948 = vmatpush1.msra.mxu0 0.0
        %2949 = vmatprep.subr.mxu0 0.0
        %2950 = vmatpush1.msra.mxu0 0.0
        %2951 = vmatprep.subr.mxu0 0.0
        %2952 = vmatpush1.msra.mxu0 0.0
        %2953 = vmatprep.subr.mxu0 0.0
        %2954 = vmatpush1.msra.mxu0 0.0
        %2955 = vmatprep.subr.mxu0 0.0
        %2956 = vmatpush1.msra.mxu0 0.0
        %2957 = vmatprep.subr.mxu0 0.0
        %2958 = vmatpush1.msra.mxu0 0.0
        %2959 = vmatprep.subr.mxu0 0.0
        %2960 = vmatpush1.msra.mxu0 0.0
        %2961 = vmatprep.subr.mxu0 0.0
        %2962 = vmatpush1.msra.mxu0 0.0
        %2963 = vmatprep.subr.mxu0 0.0
        %2964 = vmatpush1.msra.mxu0 0.0
        %2965 = vmatprep.mubr.f32.mxu0 0.0
        %2966 = vmatmul.mubr.f32.gmra.mrb[0].mxu0 %v2899
        %v2967 = vpop.f32.mrb[0].mxu0
        %v2968 = vadd.f32 0.0, %v2967
        %v2969 = vpop.f32.mrb[0].mxu0
        %2970 = vdwg.mxu0
        %2971 = vrot.lane.b32.xlu0 %v2708, 96
        %v2972 = vpop.permute.xlu0 %2971
        %v2975 = vsel %vm830, %v2894, 0
        %2977 = vmatprep.subr.mxu0 0.0
        %2978 = vmatpush1.msra.mxu0 %v2972
        %2979 = vmatprep.subr.mxu0 0.0
        %2980 = vmatpush1.msra.mxu0 0.0
        %2981 = vmatprep.subr.mxu0 0.0
        %2982 = vmatpush1.msra.mxu0 0.0
        %2983 = vmatprep.subr.mxu0 0.0
        %2984 = vmatpush1.msra.mxu0 0.0
        %2985 = vmatprep.subr.mxu0 0.0
        %2986 = vmatpush1.msra.mxu0 0.0
        %2987 = vmatprep.subr.mxu0 0.0
        %2988 = vmatpush1.msra.mxu0 0.0
        %2989 = vmatprep.subr.mxu0 0.0
        %2990 = vmatpush1.msra.mxu0 0.0
        %2991 = vmatprep.subr.mxu0 0.0
        %2992 = vmatpush1.msra.mxu0 0.0
        %2993 = vmatprep.subr.mxu0 0.0
        %2994 = vmatpush1.msra.mxu0 0.0
        %2995 = vmatprep.subr.mxu0 0.0
        %2996 = vmatpush1.msra.mxu0 0.0
        %2997 = vmatprep.subr.mxu0 0.0
        %2998 = vmatpush1.msra.mxu0 0.0
        %2999 = vmatprep.subr.mxu0 0.0
        %3000 = vmatpush1.msra.mxu0 0.0
        %3001 = vmatprep.subr.mxu0 0.0
        %3002 = vmatpush1.msra.mxu0 0.0
        %3003 = vmatprep.subr.mxu0 0.0
        %3004 = vmatpush1.msra.mxu0 0.0
        %3005 = vmatprep.subr.mxu0 0.0
        %3006 = vmatpush1.msra.mxu0 0.0
        %3007 = vmatprep.subr.mxu0 0.0
        %3008 = vmatpush1.msra.mxu0 0.0
        %3009 = vmatprep.subr.mxu0 0.0
        %3010 = vmatpush1.msra.mxu0 0.0
        %3011 = vmatprep.subr.mxu0 0.0
        %3012 = vmatpush1.msra.mxu0 0.0
        %3013 = vmatprep.subr.mxu0 0.0
        %3014 = vmatpush1.msra.mxu0 0.0
        %3015 = vmatprep.subr.mxu0 0.0
        %3016 = vmatpush1.msra.mxu0 0.0
        %3017 = vmatprep.subr.mxu0 0.0
        %3018 = vmatpush1.msra.mxu0 0.0
        %3019 = vmatprep.subr.mxu0 0.0
        %3020 = vmatpush1.msra.mxu0 0.0
        %3021 = vmatprep.subr.mxu0 0.0
        %3022 = vmatpush1.msra.mxu0 0.0
        %3023 = vmatprep.subr.mxu0 0.0
        %3024 = vmatpush1.msra.mxu0 0.0
        %3025 = vmatprep.subr.mxu0 0.0
        %3026 = vmatpush1.msra.mxu0 0.0
        %3027 = vmatprep.subr.mxu0 0.0
        %3028 = vmatpush1.msra.mxu0 0.0
        %3029 = vmatprep.subr.mxu0 0.0
        %3030 = vmatpush1.msra.mxu0 0.0
        %3031 = vmatprep.subr.mxu0 0.0
        %3032 = vmatpush1.msra.mxu0 0.0
        %3033 = vmatprep.subr.mxu0 0.0
        %3034 = vmatpush1.msra.mxu0 0.0
        %3035 = vmatprep.subr.mxu0 0.0
        %3036 = vmatpush1.msra.mxu0 0.0
        %3037 = vmatprep.subr.mxu0 0.0
        %3038 = vmatpush1.msra.mxu0 0.0
        %3039 = vmatprep.subr.mxu0 0.0
        %3040 = vmatpush1.msra.mxu0 0.0
        %3041 = vmatprep.mubr.f32.mxu0 0.0
        %3042 = vmatmul.mubr.f32.gmra.mrb[0].mxu0 %v2975
        %v3043 = vpop.f32.mrb[0].mxu0
        %v3044 = vadd.f32 0.0, %v3043
        %v3045 = vpop.f32.mrb[0].mxu0
        %3046 = vdwg.mxu0
        %3047 = vrot.lane.b32.xlu0 %v2618, 120
        %v3048 = vpop.permute.xlu0 %3047
        %3049 = vrot.lane.b32.xlu0 %v2703, 120
        %v3050 = vpop.permute.xlu0 %3049
        %v3051 = vsel %vm830, %v3048, 0
        %v3053 = vsel %vm830, %v3050, 0
        %3055 = vmatprep.subr.mxu0 0.0
        %3056 = vmatpush1.xpose.msra.mxu0 %v3053
        %3057 = vmatprep.subr.mxu0 0.0
        %3058 = vmatpush1.xpose.msra.mxu0 0.0
        %3059 = vmatprep.subr.mxu0 0.0
        %3060 = vmatpush1.xpose.msra.mxu0 0.0
        %3061 = vmatprep.subr.mxu0 0.0
        %3062 = vmatpush1.xpose.msra.mxu0 0.0
        %3063 = vmatprep.subr.mxu0 0.0
        %3064 = vmatpush1.xpose.msra.mxu0 0.0
        %3065 = vmatprep.subr.mxu0 0.0
        %3066 = vmatpush1.xpose.msra.mxu0 0.0
        %3067 = vmatprep.subr.mxu0 0.0
        %3068 = vmatpush1.xpose.msra.mxu0 0.0
        %3069 = vmatprep.subr.mxu0 0.0
        %3070 = vmatpush1.xpose.msra.mxu0 0.0
        %3071 = vmatprep.subr.mxu0 0.0
        %3072 = vmatpush1.xpose.msra.mxu0 0.0
        %3073 = vmatprep.subr.mxu0 0.0
        %3074 = vmatpush1.xpose.msra.mxu0 0.0
        %3075 = vmatprep.subr.mxu0 0.0
        %3076 = vmatpush1.xpose.msra.mxu0 0.0
        %3077 = vmatprep.subr.mxu0 0.0
        %3078 = vmatpush1.xpose.msra.mxu0 0.0
        %3079 = vmatprep.subr.mxu0 0.0
        %3080 = vmatpush1.xpose.msra.mxu0 0.0
        %3081 = vmatprep.subr.mxu0 0.0
        %3082 = vmatpush1.xpose.msra.mxu0 0.0
        %3083 = vmatprep.subr.mxu0 0.0
        %3084 = vmatpush1.xpose.msra.mxu0 0.0
        %3085 = vmatprep.subr.mxu0 0.0
        %3086 = vmatpush1.xpose.msra.mxu0 0.0
        %3087 = vmatprep.subr.mxu0 0.0
        %3088 = vmatpush1.xpose.msra.mxu0 0.0
        %3089 = vmatprep.subr.mxu0 0.0
        %3090 = vmatpush1.xpose.msra.mxu0 0.0
        %3091 = vmatprep.subr.mxu0 0.0
        %3092 = vmatpush1.xpose.msra.mxu0 0.0
        %3093 = vmatprep.subr.mxu0 0.0
        %3094 = vmatpush1.xpose.msra.mxu0 0.0
        %3095 = vmatprep.subr.mxu0 0.0
        %3096 = vmatpush1.xpose.msra.mxu0 0.0
        %3097 = vmatprep.subr.mxu0 0.0
        %3098 = vmatpush1.xpose.msra.mxu0 0.0
        %3099 = vmatprep.subr.mxu0 0.0
        %3100 = vmatpush1.xpose.msra.mxu0 0.0
        %3101 = vmatprep.subr.mxu0 0.0
        %3102 = vmatpush1.xpose.msra.mxu0 0.0
        %3103 = vmatprep.subr.mxu0 0.0
        %3104 = vmatpush1.xpose.msra.mxu0 0.0
        %3105 = vmatprep.subr.mxu0 0.0
        %3106 = vmatpush1.xpose.msra.mxu0 0.0
        %3107 = vmatprep.subr.mxu0 0.0
        %3108 = vmatpush1.xpose.msra.mxu0 0.0
        %3109 = vmatprep.subr.mxu0 0.0
        %3110 = vmatpush1.xpose.msra.mxu0 0.0
        %3111 = vmatprep.subr.mxu0 0.0
        %3112 = vmatpush1.xpose.msra.mxu0 0.0
        %3113 = vmatprep.subr.mxu0 0.0
        %3114 = vmatpush1.xpose.msra.mxu0 0.0
        %3115 = vmatprep.subr.mxu0 0.0
        %3116 = vmatpush1.xpose.msra.mxu0 0.0
        %3117 = vmatprep.subr.mxu0 0.0
        %3118 = vmatpush1.xpose.msra.mxu0 0.0
        %3119 = vmatprep.mubr.f32.mxu0 0.0
        %3120 = vmatmul.mubr.f32.gmra.mrb[0].mxu0 %v3051
        %v3121 = vpop.f32.mrb[0].mxu0
        %v3122 = vadd.f32 0.0, %v3121
        %v3123 = vpop.f32.mrb[0].mxu0
        %3124 = vdwg.mxu0
        %3125 = vrot.lane.b32.xlu0 %v2623, 120
        %v3126 = vpop.permute.xlu0 %3125
        %3127 = vrot.lane.b32.xlu0 %v2708, 120
        %v3128 = vpop.permute.xlu0 %3127
        %v3129 = vsel %vm830, %v3126, 0
        %v3131 = vsel %vm830, %v3128, 0
        %3133 = vmatprep.subr.mxu0 0.0
        %3134 = vmatpush1.xpose.msra.mxu0 %v3131
        %3135 = vmatprep.subr.mxu0 0.0
        %3136 = vmatpush1.xpose.msra.mxu0 0.0
        %3137 = vmatprep.subr.mxu0 0.0
        %3138 = vmatpush1.xpose.msra.mxu0 0.0
        %3139 = vmatprep.subr.mxu0 0.0
        %3140 = vmatpush1.xpose.msra.mxu0 0.0
        %3141 = vmatprep.subr.mxu0 0.0
        %3142 = vmatpush1.xpose.msra.mxu0 0.0
        %3143 = vmatprep.subr.mxu0 0.0
        %3144 = vmatpush1.xpose.msra.mxu0 0.0
        %3145 = vmatprep.subr.mxu0 0.0
        %3146 = vmatpush1.xpose.msra.mxu0 0.0
        %3147 = vmatprep.subr.mxu0 0.0
        %3148 = vmatpush1.xpose.msra.mxu0 0.0
        %3149 = vmatprep.subr.mxu0 0.0
        %3150 = vmatpush1.xpose.msra.mxu0 0.0
        %3151 = vmatprep.subr.mxu0 0.0
        %3152 = vmatpush1.xpose.msra.mxu0 0.0
        %3153 = vmatprep.subr.mxu0 0.0
        %3154 = vmatpush1.xpose.msra.mxu0 0.0
        %3155 = vmatprep.subr.mxu0 0.0
        %3156 = vmatpush1.xpose.msra.mxu0 0.0
        %3157 = vmatprep.subr.mxu0 0.0
        %3158 = vmatpush1.xpose.msra.mxu0 0.0
        %3159 = vmatprep.subr.mxu0 0.0
        %3160 = vmatpush1.xpose.msra.mxu0 0.0
        %3161 = vmatprep.subr.mxu0 0.0
        %3162 = vmatpush1.xpose.msra.mxu0 0.0
        %3163 = vmatprep.subr.mxu0 0.0
        %3164 = vmatpush1.xpose.msra.mxu0 0.0
        %3165 = vmatprep.subr.mxu0 0.0
        %3166 = vmatpush1.xpose.msra.mxu0 0.0
        %3167 = vmatprep.subr.mxu0 0.0
        %3168 = vmatpush1.xpose.msra.mxu0 0.0
        %3169 = vmatprep.subr.mxu0 0.0
        %3170 = vmatpush1.xpose.msra.mxu0 0.0
        %3171 = vmatprep.subr.mxu0 0.0
        %3172 = vmatpush1.xpose.msra.mxu0 0.0
        %3173 = vmatprep.subr.mxu0 0.0
        %3174 = vmatpush1.xpose.msra.mxu0 0.0
        %3175 = vmatprep.subr.mxu0 0.0
        %3176 = vmatpush1.xpose.msra.mxu0 0.0
        %3177 = vmatprep.subr.mxu0 0.0
        %3178 = vmatpush1.xpose.msra.mxu0 0.0
        %3179 = vmatprep.subr.mxu0 0.0
        %3180 = vmatpush1.xpose.msra.mxu0 0.0
        %3181 = vmatprep.subr.mxu0 0.0
        %3182 = vmatpush1.xpose.msra.mxu0 0.0
        %3183 = vmatprep.subr.mxu0 0.0
        %3184 = vmatpush1.xpose.msra.mxu0 0.0
        %3185 = vmatprep.subr.mxu0 0.0
        %3186 = vmatpush1.xpose.msra.mxu0 0.0
        %3187 = vmatprep.subr.mxu0 0.0
        %3188 = vmatpush1.xpose.msra.mxu0 0.0
        %3189 = vmatprep.subr.mxu0 0.0
        %3190 = vmatpush1.xpose.msra.mxu0 0.0
        %3191 = vmatprep.subr.mxu0 0.0
        %3192 = vmatpush1.xpose.msra.mxu0 0.0
        %3193 = vmatprep.subr.mxu0 0.0
        %3194 = vmatpush1.xpose.msra.mxu0 0.0
        %3195 = vmatprep.subr.mxu0 0.0
        %3196 = vmatpush1.xpose.msra.mxu0 0.0
        %3197 = vmatprep.mubr.f32.mxu0 0.0
        %3198 = vmatmul.mubr.f32.gmra.mrb[0].mxu0 %v3129
        %v3199 = vpop.f32.mrb[0].mxu0
        %v3200 = vadd.f32 0.0, %v3199
        %v3201 = vpop.f32.mrb[0].mxu0
        %3202 = vdwg.mxu0
        %v3203 = vmul.f32 %v3122, 0.35355338
        %v3204 = vmul.f32 %v3200, 0.35355338
        %v3205 = vsel %vm2869, -1e+09, %v3203
        %v3206 = vsel %vm2870, -1e+09, %v3204
        %v3207 = vsel %vm830, %v3205, -inf
        %3208 = vmax.xlane.f32.xlu0 %v3207
        %v3209 = vpop.xlane.xlu0 %3208
        %v3210 = vsel %vm830, %v3206, -inf
        %3211 = vmax.xlane.f32.xlu0 %v3210
        %v3212 = vpop.xlane.xlu0 %3211
        %v3213 = vsub.f32 %v3205, %v3209
        %v3214 = vsub.f32 %v3206, %v3212
        %v3215 = vmul.f32 %v3213, 1.442695
        %v3216 = vpow.pop %v3215
        %v3217 = vmul.f32 %v3214, 1.442695
        %v3218 = vpow.pop %v3217
        %v3219 = vsel %vm830, %v3216, 0.0
        %3220 = vadd.xlane.f32.xlu0 %v3219
        %v3221 = vpop.xlane.xlu0 %3220
        %v3222 = vsel %vm830, %v3218, 0.0
        %3223 = vadd.xlane.f32.xlu0 %v3222
        %v3224 = vpop.xlane.xlu0 %3223
        %v3225 = vrcp.pop %v3221
        %v3226 = vrcp.pop %v3224
        %v3227 = vmul.f32 %v3216, %v3225
        %v3228 = vmul.f32 %v3218, %v3226
        %3229 = vrot.lane.b32.xlu0 %v2703, 88
        %v3230 = vpop.permute.xlu0 %3229
        %v3233 = vsel %vm830, %v3227, 0
        %3235 = vmatprep.subr.mxu0 0.0
        %3236 = vmatpush1.msra.mxu0 %v3230
        %3237 = vmatprep.subr.mxu0 0.0
        %3238 = vmatpush1.msra.mxu0 0.0
        %3239 = vmatprep.subr.mxu0 0.0
        %3240 = vmatpush1.msra.mxu0 0.0
        %3241 = vmatprep.subr.mxu0 0.0
        %3242 = vmatpush1.msra.mxu0 0.0
        %3243 = vmatprep.subr.mxu0 0.0
        %3244 = vmatpush1.msra.mxu0 0.0
        %3245 = vmatprep.subr.mxu0 0.0
        %3246 = vmatpush1.msra.mxu0 0.0
        %3247 = vmatprep.subr.mxu0 0.0
        %3248 = vmatpush1.msra.mxu0 0.0
        %3249 = vmatprep.subr.mxu0 0.0
        %3250 = vmatpush1.msra.mxu0 0.0
        %3251 = vmatprep.subr.mxu0 0.0
        %3252 = vmatpush1.msra.mxu0 0.0
        %3253 = vmatprep.subr.mxu0 0.0
        %3254 = vmatpush1.msra.mxu0 0.0
        %3255 = vmatprep.subr.mxu0 0.0
        %3256 = vmatpush1.msra.mxu0 0.0
        %3257 = vmatprep.subr.mxu0 0.0
        %3258 = vmatpush1.msra.mxu0 0.0
        %3259 = vmatprep.subr.mxu0 0.0
        %3260 = vmatpush1.msra.mxu0 0.0
        %3261 = vmatprep.subr.mxu0 0.0
        %3262 = vmatpush1.msra.mxu0 0.0
        %3263 = vmatprep.subr.mxu0 0.0
        %3264 = vmatpush1.msra.mxu0 0.0
        %3265 = vmatprep.subr.mxu0 0.0
        %3266 = vmatpush1.msra.mxu0 0.0
        %3267 = vmatprep.subr.mxu0 0.0
        %3268 = vmatpush1.msra.mxu0 0.0
        %3269 = vmatprep.subr.mxu0 0.0
        %3270 = vmatpush1.msra.mxu0 0.0
        %3271 = vmatprep.subr.mxu0 0.0
        %3272 = vmatpush1.msra.mxu0 0.0
        %3273 = vmatprep.subr.mxu0 0.0
        %3274 = vmatpush1.msra.mxu0 0.0
        %3275 = vmatprep.subr.mxu0 0.0
        %3276 = vmatpush1.msra.mxu0 0.0
        %3277 = vmatprep.subr.mxu0 0.0
        %3278 = vmatpush1.msra.mxu0 0.0
        %3279 = vmatprep.subr.mxu0 0.0
        %3280 = vmatpush1.msra.mxu0 0.0
        %3281 = vmatprep.subr.mxu0 0.0
        %3282 = vmatpush1.msra.mxu0 0.0
        %3283 = vmatprep.subr.mxu0 0.0
        %3284 = vmatpush1.msra.mxu0 0.0
        %3285 = vmatprep.subr.mxu0 0.0
        %3286 = vmatpush1.msra.mxu0 0.0
        %3287 = vmatprep.subr.mxu0 0.0
        %3288 = vmatpush1.msra.mxu0 0.0
        %3289 = vmatprep.subr.mxu0 0.0
        %3290 = vmatpush1.msra.mxu0 0.0
        %3291 = vmatprep.subr.mxu0 0.0
        %3292 = vmatpush1.msra.mxu0 0.0
        %3293 = vmatprep.subr.mxu0 0.0
        %3294 = vmatpush1.msra.mxu0 0.0
        %3295 = vmatprep.subr.mxu0 0.0
        %3296 = vmatpush1.msra.mxu0 0.0
        %3297 = vmatprep.subr.mxu0 0.0
        %3298 = vmatpush1.msra.mxu0 0.0
        %3299 = vmatprep.mubr.f32.mxu0 0.0
        %3300 = vmatmul.mubr.f32.gmra.mrb[0].mxu0 %v3233
        %v3301 = vpop.f32.mrb[0].mxu0
        %v3302 = vadd.f32 0.0, %v3301
        %v3303 = vpop.f32.mrb[0].mxu0
        %3304 = vdwg.mxu0
        %3305 = vrot.lane.b32.xlu0 %v2708, 88
        %v3306 = vpop.permute.xlu0 %3305
        %v3309 = vsel %vm830, %v3228, 0
        %3311 = vmatprep.subr.mxu0 0.0
        %3312 = vmatpush1.msra.mxu0 %v3306
        %3313 = vmatprep.subr.mxu0 0.0
        %3314 = vmatpush1.msra.mxu0 0.0
        %3315 = vmatprep.subr.mxu0 0.0
        %3316 = vmatpush1.msra.mxu0 0.0
        %3317 = vmatprep.subr.mxu0 0.0
        %3318 = vmatpush1.msra.mxu0 0.0
        %3319 = vmatprep.subr.mxu0 0.0
        %3320 = vmatpush1.msra.mxu0 0.0
        %3321 = vmatprep.subr.mxu0 0.0
        %3322 = vmatpush1.msra.mxu0 0.0
        %3323 = vmatprep.subr.mxu0 0.0
        %3324 = vmatpush1.msra.mxu0 0.0
        %3325 = vmatprep.subr.mxu0 0.0
        %3326 = vmatpush1.msra.mxu0 0.0
        %3327 = vmatprep.subr.mxu0 0.0
        %3328 = vmatpush1.msra.mxu0 0.0
        %3329 = vmatprep.subr.mxu0 0.0
        %3330 = vmatpush1.msra.mxu0 0.0
        %3331 = vmatprep.subr.mxu0 0.0
        %3332 = vmatpush1.msra.mxu0 0.0
        %3333 = vmatprep.subr.mxu0 0.0
        %3334 = vmatpush1.msra.mxu0 0.0
        %3335 = vmatprep.subr.mxu0 0.0
        %3336 = vmatpush1.msra.mxu0 0.0
        %3337 = vmatprep.subr.mxu0 0.0
        %3338 = vmatpush1.msra.mxu0 0.0
        %3339 = vmatprep.subr.mxu0 0.0
        %3340 = vmatpush1.msra.mxu0 0.0
        %3341 = vmatprep.subr.mxu0 0.0
        %3342 = vmatpush1.msra.mxu0 0.0
        %3343 = vmatprep.subr.mxu0 0.0
        %3344 = vmatpush1.msra.mxu0 0.0
        %3345 = vmatprep.subr.mxu0 0.0
        %3346 = vmatpush1.msra.mxu0 0.0
        %3347 = vmatprep.subr.mxu0 0.0
        %3348 = vmatpush1.msra.mxu0 0.0
        %3349 = vmatprep.subr.mxu0 0.0
        %3350 = vmatpush1.msra.mxu0 0.0
        %3351 = vmatprep.subr.mxu0 0.0
        %3352 = vmatpush1.msra.mxu0 0.0
        %3353 = vmatprep.subr.mxu0 0.0
        %3354 = vmatpush1.msra.mxu0 0.0
        %3355 = vmatprep.subr.mxu0 0.0
        %3356 = vmatpush1.msra.mxu0 0.0
        %3357 = vmatprep.subr.mxu0 0.0
        %3358 = vmatpush1.msra.mxu0 0.0
        %3359 = vmatprep.subr.mxu0 0.0
        %3360 = vmatpush1.msra.mxu0 0.0
        %3361 = vmatprep.subr.mxu0 0.0
        %3362 = vmatpush1.msra.mxu0 0.0
        %3363 = vmatprep.subr.mxu0 0.0
        %3364 = vmatpush1.msra.mxu0 0.0
        %3365 = vmatprep.subr.mxu0 0.0
        %3366 = vmatpush1.msra.mxu0 0.0
        %3367 = vmatprep.subr.mxu0 0.0
        %3368 = vmatpush1.msra.mxu0 0.0
        %3369 = vmatprep.subr.mxu0 0.0
        %3370 = vmatpush1.msra.mxu0 0.0
        %3371 = vmatprep.subr.mxu0 0.0
        %3372 = vmatpush1.msra.mxu0 0.0
        %3373 = vmatprep.subr.mxu0 0.0
        %3374 = vmatpush1.msra.mxu0 0.0
        %3375 = vmatprep.mubr.f32.mxu0 0.0
        %3376 = vmatmul.mubr.f32.gmra.mrb[0].mxu0 %v3309
        %v3377 = vpop.f32.mrb[0].mxu0
        %v3378 = vadd.f32 0.0, %v3377
        %v3379 = vpop.f32.mrb[0].mxu0
        %3380 = vdwg.mxu0
        %v3382 = vsel %vm830, %v3302, 0
        %v3385 = vsel %vm830, %v3378, 0
        %3387 = vmatprep.subr.mxu0 0.0
        %3388 = vmatpush1.msra.mxu0 %v2712
        %3389 = vmatprep.subr.mxu0 0.0
        %3390 = vmatpush1.msra.mxu0 0.0
        %3391 = vmatprep.subr.mxu0 0.0
        %3392 = vmatpush1.msra.mxu0 0.0
        %3393 = vmatprep.subr.mxu0 0.0
        %3394 = vmatpush1.msra.mxu0 0.0
        %3395 = vmatprep.subr.mxu0 0.0
        %3396 = vmatpush1.msra.mxu0 0.0
        %3397 = vmatprep.subr.mxu0 0.0
        %3398 = vmatpush1.msra.mxu0 0.0
        %3399 = vmatprep.subr.mxu0 0.0
        %3400 = vmatpush1.msra.mxu0 0.0
        %3401 = vmatprep.subr.mxu0 0.0
        %3402 = vmatpush1.msra.mxu0 0.0
        %3403 = vmatprep.subr.mxu0 0.0
        %3404 = vmatpush1.msra.mxu0 0.0
        %3405 = vmatprep.subr.mxu0 0.0
        %3406 = vmatpush1.msra.mxu0 0.0
        %3407 = vmatprep.subr.mxu0 0.0
        %3408 = vmatpush1.msra.mxu0 0.0
        %3409 = vmatprep.subr.mxu0 0.0
        %3410 = vmatpush1.msra.mxu0 0.0
        %3411 = vmatprep.subr.mxu0 0.0
        %3412 = vmatpush1.msra.mxu0 0.0
        %3413 = vmatprep.subr.mxu0 0.0
        %3414 = vmatpush1.msra.mxu0 0.0
        %3415 = vmatprep.subr.mxu0 0.0
        %3416 = vmatpush1.msra.mxu0 0.0
        %3417 = vmatprep.subr.mxu0 0.0
        %3418 = vmatpush1.msra.mxu0 0.0
        %3419 = vmatprep.subr.mxu0 0.0
        %3420 = vmatpush1.msra.mxu0 0.0
        %3421 = vmatprep.subr.mxu0 0.0
        %3422 = vmatpush1.msra.mxu0 0.0
        %3423 = vmatprep.subr.mxu0 0.0
        %3424 = vmatpush1.msra.mxu0 0.0
        %3425 = vmatprep.subr.mxu0 0.0
        %3426 = vmatpush1.msra.mxu0 0.0
        %3427 = vmatprep.subr.mxu0 0.0
        %3428 = vmatpush1.msra.mxu0 0.0
        %3429 = vmatprep.subr.mxu0 0.0
        %3430 = vmatpush1.msra.mxu0 0.0
        %3431 = vmatprep.subr.mxu0 0.0
        %3432 = vmatpush1.msra.mxu0 0.0
        %3433 = vmatprep.subr.mxu0 0.0
        %3434 = vmatpush1.msra.mxu0 0.0
        %3435 = vmatprep.subr.mxu0 0.0
        %3436 = vmatpush1.msra.mxu0 0.0
        %3437 = vmatprep.subr.mxu0 0.0
        %3438 = vmatpush1.msra.mxu0 0.0
        %3439 = vmatprep.subr.mxu0 0.0
        %3440 = vmatpush1.msra.mxu0 0.0
        %3441 = vmatprep.subr.mxu0 0.0
        %3442 = vmatpush1.msra.mxu0 0.0
        %3443 = vmatprep.subr.mxu0 0.0
        %3444 = vmatpush1.msra.mxu0 0.0
        %3445 = vmatprep.subr.mxu0 0.0
        %3446 = vmatpush1.msra.mxu0 0.0
        %3447 = vmatprep.subr.mxu0 0.0
        %3448 = vmatpush1.msra.mxu0 0.0
        %3449 = vmatprep.subr.mxu0 0.0
        %3450 = vmatpush1.msra.mxu0 0.0
        %3451 = vmatprep.mubr.f32.mxu0 0.0
        %3452 = vmatmul.mubr.f32.gmra.mrb[0].mxu0 %v3382
        %v3453 = vpop.f32.mrb[0].mxu0
        %v3454 = vadd.f32 0.0, %v3453
        %v3455 = vpop.f32.mrb[0].mxu0
        %3456 = vmatprep.mubr.f32.mxu0 0.0
        %3457 = vmatmul.mubr.f32.gmra.mrb[0].mxu0 %v3385
        %v3458 = vpop.f32.mrb[0].mxu0
        %v3459 = vadd.f32 0.0, %v3458
        %v3460 = vpop.f32.mrb[0].mxu0
        %3461 = vdwg.mxu0
        %v3463 = vsel %vm830, %v2968, 0
        %v3466 = vsel %vm830, %v3044, 0
        %3468 = vmatprep.subr.mxu0 0.0
        %3469 = vmatpush1.msra.mxu0 %v2711
        %3470 = vmatprep.subr.mxu0 0.0
        %3471 = vmatpush1.msra.mxu0 0.0
        %3472 = vmatprep.subr.mxu0 0.0
        %3473 = vmatpush1.msra.mxu0 0.0
        %3474 = vmatprep.subr.mxu0 0.0
        %3475 = vmatpush1.msra.mxu0 0.0
        %3476 = vmatprep.subr.mxu0 0.0
        %3477 = vmatpush1.msra.mxu0 0.0
        %3478 = vmatprep.subr.mxu0 0.0
        %3479 = vmatpush1.msra.mxu0 0.0
        %3480 = vmatprep.subr.mxu0 0.0
        %3481 = vmatpush1.msra.mxu0 0.0
        %3482 = vmatprep.subr.mxu0 0.0
        %3483 = vmatpush1.msra.mxu0 0.0
        %3484 = vmatprep.subr.mxu0 0.0
        %3485 = vmatpush1.msra.mxu0 0.0
        %3486 = vmatprep.subr.mxu0 0.0
        %3487 = vmatpush1.msra.mxu0 0.0
        %3488 = vmatprep.subr.mxu0 0.0
        %3489 = vmatpush1.msra.mxu0 0.0
        %3490 = vmatprep.subr.mxu0 0.0
        %3491 = vmatpush1.msra.mxu0 0.0
        %3492 = vmatprep.subr.mxu0 0.0
        %3493 = vmatpush1.msra.mxu0 0.0
        %3494 = vmatprep.subr.mxu0 0.0
        %3495 = vmatpush1.msra.mxu0 0.0
        %3496 = vmatprep.subr.mxu0 0.0
        %3497 = vmatpush1.msra.mxu0 0.0
        %3498 = vmatprep.subr.mxu0 0.0
        %3499 = vmatpush1.msra.mxu0 0.0
        %3500 = vmatprep.subr.mxu0 0.0
        %3501 = vmatpush1.msra.mxu0 0.0
        %3502 = vmatprep.subr.mxu0 0.0
        %3503 = vmatpush1.msra.mxu0 0.0
        %3504 = vmatprep.subr.mxu0 0.0
        %3505 = vmatpush1.msra.mxu0 0.0
        %3506 = vmatprep.subr.mxu0 0.0
        %3507 = vmatpush1.msra.mxu0 0.0
        %3508 = vmatprep.subr.mxu0 0.0
        %3509 = vmatpush1.msra.mxu0 0.0
        %3510 = vmatprep.subr.mxu0 0.0
        %3511 = vmatpush1.msra.mxu0 0.0
        %3512 = vmatprep.subr.mxu0 0.0
        %3513 = vmatpush1.msra.mxu0 0.0
        %3514 = vmatprep.subr.mxu0 0.0
        %3515 = vmatpush1.msra.mxu0 0.0
        %3516 = vmatprep.subr.mxu0 0.0
        %3517 = vmatpush1.msra.mxu0 0.0
        %3518 = vmatprep.subr.mxu0 0.0
        %3519 = vmatpush1.msra.mxu0 0.0
        %3520 = vmatprep.subr.mxu0 0.0
        %3521 = vmatpush1.msra.mxu0 0.0
        %3522 = vmatprep.subr.mxu0 0.0
        %3523 = vmatpush1.msra.mxu0 0.0
        %3524 = vmatprep.subr.mxu0 0.0
        %3525 = vmatpush1.msra.mxu0 0.0
        %3526 = vmatprep.subr.mxu0 0.0
        %3527 = vmatpush1.msra.mxu0 0.0
        %3528 = vmatprep.subr.mxu0 0.0
        %3529 = vmatpush1.msra.mxu0 0.0
        %3530 = vmatprep.subr.mxu0 0.0
        %3531 = vmatpush1.msra.mxu0 0.0
        %3532 = vmatprep.mubr.f32.mxu0 0.0
        %3533 = vmatmul.mubr.f32.gmra.mrb[0].mxu0 %v3463
        %v3534 = vpop.f32.mrb[0].mxu0
        %v3535 = vadd.f32 %v3454, %v3534
        %v3536 = vpop.f32.mrb[0].mxu0
        %3537 = vmatprep.mubr.f32.mxu0 0.0
        %3538 = vmatmul.mubr.f32.gmra.mrb[0].mxu0 %v3466
        %v3539 = vpop.f32.mrb[0].mxu0
        %v3540 = vadd.f32 %v3459, %v3539
        %v3541 = vpop.f32.mrb[0].mxu0
        %3542 = vdwg.mxu0
        %3543 = vrot.lane.b32.xlu0 %v2618, 112
        %v3544 = vpop.permute.xlu0 %3543
        %3545 = vrot.lane.b32.xlu0 %v2703, 112
        %v3546 = vpop.permute.xlu0 %3545
        %v3547 = vsel %vm830, %v3544, 0
        %v3549 = vsel %vm830, %v3546, 0
        %3551 = vmatprep.subr.mxu0 0.0
        %3552 = vmatpush1.xpose.msra.mxu0 %v3549
        %3553 = vmatprep.subr.mxu0 0.0
        %3554 = vmatpush1.xpose.msra.mxu0 0.0
        %3555 = vmatprep.subr.mxu0 0.0
        %3556 = vmatpush1.xpose.msra.mxu0 0.0
        %3557 = vmatprep.subr.mxu0 0.0
        %3558 = vmatpush1.xpose.msra.mxu0 0.0
        %3559 = vmatprep.subr.mxu0 0.0
        %3560 = vmatpush1.xpose.msra.mxu0 0.0
        %3561 = vmatprep.subr.mxu0 0.0
        %3562 = vmatpush1.xpose.msra.mxu0 0.0
        %3563 = vmatprep.subr.mxu0 0.0
        %3564 = vmatpush1.xpose.msra.mxu0 0.0
        %3565 = vmatprep.subr.mxu0 0.0
        %3566 = vmatpush1.xpose.msra.mxu0 0.0
        %3567 = vmatprep.subr.mxu0 0.0
        %3568 = vmatpush1.xpose.msra.mxu0 0.0
        %3569 = vmatprep.subr.mxu0 0.0
        %3570 = vmatpush1.xpose.msra.mxu0 0.0
        %3571 = vmatprep.subr.mxu0 0.0
        %3572 = vmatpush1.xpose.msra.mxu0 0.0
        %3573 = vmatprep.subr.mxu0 0.0
        %3574 = vmatpush1.xpose.msra.mxu0 0.0
        %3575 = vmatprep.subr.mxu0 0.0
        %3576 = vmatpush1.xpose.msra.mxu0 0.0
        %3577 = vmatprep.subr.mxu0 0.0
        %3578 = vmatpush1.xpose.msra.mxu0 0.0
        %3579 = vmatprep.subr.mxu0 0.0
        %3580 = vmatpush1.xpose.msra.mxu0 0.0
        %3581 = vmatprep.subr.mxu0 0.0
        %3582 = vmatpush1.xpose.msra.mxu0 0.0
        %3583 = vmatprep.subr.mxu0 0.0
        %3584 = vmatpush1.xpose.msra.mxu0 0.0
        %3585 = vmatprep.subr.mxu0 0.0
        %3586 = vmatpush1.xpose.msra.mxu0 0.0
        %3587 = vmatprep.subr.mxu0 0.0
        %3588 = vmatpush1.xpose.msra.mxu0 0.0
        %3589 = vmatprep.subr.mxu0 0.0
        %3590 = vmatpush1.xpose.msra.mxu0 0.0
        %3591 = vmatprep.subr.mxu0 0.0
        %3592 = vmatpush1.xpose.msra.mxu0 0.0
        %3593 = vmatprep.subr.mxu0 0.0
        %3594 = vmatpush1.xpose.msra.mxu0 0.0
        %3595 = vmatprep.subr.mxu0 0.0
        %3596 = vmatpush1.xpose.msra.mxu0 0.0
        %3597 = vmatprep.subr.mxu0 0.0
        %3598 = vmatpush1.xpose.msra.mxu0 0.0
        %3599 = vmatprep.subr.mxu0 0.0
        %3600 = vmatpush1.xpose.msra.mxu0 0.0
        %3601 = vmatprep.subr.mxu0 0.0
        %3602 = vmatpush1.xpose.msra.mxu0 0.0
        %3603 = vmatprep.subr.mxu0 0.0
        %3604 = vmatpush1.xpose.msra.mxu0 0.0
        %3605 = vmatprep.subr.mxu0 0.0
        %3606 = vmatpush1.xpose.msra.mxu0 0.0
        %3607 = vmatprep.subr.mxu0 0.0
        %3608 = vmatpush1.xpose.msra.mxu0 0.0
        %3609 = vmatprep.subr.mxu0 0.0
        %3610 = vmatpush1.xpose.msra.mxu0 0.0
        %3611 = vmatprep.subr.mxu0 0.0
        %3612 = vmatpush1.xpose.msra.mxu0 0.0
        %3613 = vmatprep.subr.mxu0 0.0
        %3614 = vmatpush1.xpose.msra.mxu0 0.0
        %3615 = vmatprep.mubr.f32.mxu0 0.0
        %3616 = vmatmul.mubr.f32.gmra.mrb[0].mxu0 %v3547
        %v3617 = vpop.f32.mrb[0].mxu0
        %v3618 = vadd.f32 0.0, %v3617
        %v3619 = vpop.f32.mrb[0].mxu0
        %3620 = vdwg.mxu0
        %3621 = vrot.lane.b32.xlu0 %v2623, 112
        %v3622 = vpop.permute.xlu0 %3621
        %3623 = vrot.lane.b32.xlu0 %v2708, 112
        %v3624 = vpop.permute.xlu0 %3623
        %v3625 = vsel %vm830, %v3622, 0
        %v3627 = vsel %vm830, %v3624, 0
        %3629 = vmatprep.subr.mxu0 0.0
        %3630 = vmatpush1.xpose.msra.mxu0 %v3627
        %3631 = vmatprep.subr.mxu0 0.0
        %3632 = vmatpush1.xpose.msra.mxu0 0.0
        %3633 = vmatprep.subr.mxu0 0.0
        %3634 = vmatpush1.xpose.msra.mxu0 0.0
        %3635 = vmatprep.subr.mxu0 0.0
        %3636 = vmatpush1.xpose.msra.mxu0 0.0
        %3637 = vmatprep.subr.mxu0 0.0
        %3638 = vmatpush1.xpose.msra.mxu0 0.0
        %3639 = vmatprep.subr.mxu0 0.0
        %3640 = vmatpush1.xpose.msra.mxu0 0.0
        %3641 = vmatprep.subr.mxu0 0.0
        %3642 = vmatpush1.xpose.msra.mxu0 0.0
        %3643 = vmatprep.subr.mxu0 0.0
        %3644 = vmatpush1.xpose.msra.mxu0 0.0
        %3645 = vmatprep.subr.mxu0 0.0
        %3646 = vmatpush1.xpose.msra.mxu0 0.0
        %3647 = vmatprep.subr.mxu0 0.0
        %3648 = vmatpush1.xpose.msra.mxu0 0.0
        %3649 = vmatprep.subr.mxu0 0.0
        %3650 = vmatpush1.xpose.msra.mxu0 0.0
        %3651 = vmatprep.subr.mxu0 0.0
        %3652 = vmatpush1.xpose.msra.mxu0 0.0
        %3653 = vmatprep.subr.mxu0 0.0
        %3654 = vmatpush1.xpose.msra.mxu0 0.0
        %3655 = vmatprep.subr.mxu0 0.0
        %3656 = vmatpush1.xpose.msra.mxu0 0.0
        %3657 = vmatprep.subr.mxu0 0.0
        %3658 = vmatpush1.xpose.msra.mxu0 0.0
        %3659 = vmatprep.subr.mxu0 0.0
        %3660 = vmatpush1.xpose.msra.mxu0 0.0
        %3661 = vmatprep.subr.mxu0 0.0
        %3662 = vmatpush1.xpose.msra.mxu0 0.0
        %3663 = vmatprep.subr.mxu0 0.0
        %3664 = vmatpush1.xpose.msra.mxu0 0.0
        %3665 = vmatprep.subr.mxu0 0.0
        %3666 = vmatpush1.xpose.msra.mxu0 0.0
        %3667 = vmatprep.subr.mxu0 0.0
        %3668 = vmatpush1.xpose.msra.mxu0 0.0
        %3669 = vmatprep.subr.mxu0 0.0
        %3670 = vmatpush1.xpose.msra.mxu0 0.0
        %3671 = vmatprep.subr.mxu0 0.0
        %3672 = vmatpush1.xpose.msra.mxu0 0.0
        %3673 = vmatprep.subr.mxu0 0.0
        %3674 = vmatpush1.xpose.msra.mxu0 0.0
        %3675 = vmatprep.subr.mxu0 0.0
        %3676 = vmatpush1.xpose.msra.mxu0 0.0
        %3677 = vmatprep.subr.mxu0 0.0
        %3678 = vmatpush1.xpose.msra.mxu0 0.0
        %3679 = vmatprep.subr.mxu0 0.0
        %3680 = vmatpush1.xpose.msra.mxu0 0.0
        %3681 = vmatprep.subr.mxu0 0.0
        %3682 = vmatpush1.xpose.msra.mxu0 0.0
        %3683 = vmatprep.subr.mxu0 0.0
        %3684 = vmatpush1.xpose.msra.mxu0 0.0
        %3685 = vmatprep.subr.mxu0 0.0
        %3686 = vmatpush1.xpose.msra.mxu0 0.0
        %3687 = vmatprep.subr.mxu0 0.0
        %3688 = vmatpush1.xpose.msra.mxu0 0.0
        %3689 = vmatprep.subr.mxu0 0.0
        %3690 = vmatpush1.xpose.msra.mxu0 0.0
        %3691 = vmatprep.subr.mxu0 0.0
        %3692 = vmatpush1.xpose.msra.mxu0 0.0
        %3693 = vmatprep.mubr.f32.mxu0 0.0
        %3694 = vmatmul.mubr.f32.gmra.mrb[0].mxu0 %v3625
        %v3695 = vpop.f32.mrb[0].mxu0
        %v3696 = vadd.f32 0.0, %v3695
        %v3697 = vpop.f32.mrb[0].mxu0
        %3698 = vdwg.mxu0
        %v3699 = vmul.f32 %v3618, 0.35355338
        %v3700 = vmul.f32 %v3696, 0.35355338
        %v3701 = vsel %vm2869, -1e+09, %v3699
        %v3702 = vsel %vm2870, -1e+09, %v3700
        %v3703 = vsel %vm830, %v3701, -inf
        %3704 = vmax.xlane.f32.xlu0 %v3703
        %v3705 = vpop.xlane.xlu0 %3704
        %v3706 = vsel %vm830, %v3702, -inf
        %3707 = vmax.xlane.f32.xlu0 %v3706
        %v3708 = vpop.xlane.xlu0 %3707
        %v3709 = vsub.f32 %v3701, %v3705
        %v3710 = vsub.f32 %v3702, %v3708
        %v3711 = vmul.f32 %v3709, 1.442695
        %v3712 = vpow.pop %v3711
        %v3713 = vmul.f32 %v3710, 1.442695
        %v3714 = vpow.pop %v3713
        %v3715 = vsel %vm830, %v3712, 0.0
        %3716 = vadd.xlane.f32.xlu0 %v3715
        %v3717 = vpop.xlane.xlu0 %3716
        %v3718 = vsel %vm830, %v3714, 0.0
        %3719 = vadd.xlane.f32.xlu0 %v3718
        %v3720 = vpop.xlane.xlu0 %3719
        %v3721 = vrcp.pop %v3717
        %v3722 = vrcp.pop %v3720
        %v3723 = vmul.f32 %v3712, %v3721
        %v3724 = vmul.f32 %v3714, %v3722
        %3725 = vrot.lane.b32.xlu0 %v2703, 80
        %v3726 = vpop.permute.xlu0 %3725
        %v3729 = vsel %vm830, %v3723, 0
        %3731 = vmatprep.subr.mxu0 0.0
        %3732 = vmatpush1.msra.mxu0 %v3726
        %3733 = vmatprep.subr.mxu0 0.0
        %3734 = vmatpush1.msra.mxu0 0.0
        %3735 = vmatprep.subr.mxu0 0.0
        %3736 = vmatpush1.msra.mxu0 0.0
        %3737 = vmatprep.subr.mxu0 0.0
        %3738 = vmatpush1.msra.mxu0 0.0
        %3739 = vmatprep.subr.mxu0 0.0
        %3740 = vmatpush1.msra.mxu0 0.0
        %3741 = vmatprep.subr.mxu0 0.0
        %3742 = vmatpush1.msra.mxu0 0.0
        %3743 = vmatprep.subr.mxu0 0.0
        %3744 = vmatpush1.msra.mxu0 0.0
        %3745 = vmatprep.subr.mxu0 0.0
        %3746 = vmatpush1.msra.mxu0 0.0
        %3747 = vmatprep.subr.mxu0 0.0
        %3748 = vmatpush1.msra.mxu0 0.0
        %3749 = vmatprep.subr.mxu0 0.0
        %3750 = vmatpush1.msra.mxu0 0.0
        %3751 = vmatprep.subr.mxu0 0.0
        %3752 = vmatpush1.msra.mxu0 0.0
        %3753 = vmatprep.subr.mxu0 0.0
        %3754 = vmatpush1.msra.mxu0 0.0
        %3755 = vmatprep.subr.mxu0 0.0
        %3756 = vmatpush1.msra.mxu0 0.0
        %3757 = vmatprep.subr.mxu0 0.0
        %3758 = vmatpush1.msra.mxu0 0.0
        %3759 = vmatprep.subr.mxu0 0.0
        %3760 = vmatpush1.msra.mxu0 0.0
        %3761 = vmatprep.subr.mxu0 0.0
        %3762 = vmatpush1.msra.mxu0 0.0
        %3763 = vmatprep.subr.mxu0 0.0
        %3764 = vmatpush1.msra.mxu0 0.0
        %3765 = vmatprep.subr.mxu0 0.0
        %3766 = vmatpush1.msra.mxu0 0.0
        %3767 = vmatprep.subr.mxu0 0.0
        %3768 = vmatpush1.msra.mxu0 0.0
        %3769 = vmatprep.subr.mxu0 0.0
        %3770 = vmatpush1.msra.mxu0 0.0
        %3771 = vmatprep.subr.mxu0 0.0
        %3772 = vmatpush1.msra.mxu0 0.0
        %3773 = vmatprep.subr.mxu0 0.0
        %3774 = vmatpush1.msra.mxu0 0.0
        %3775 = vmatprep.subr.mxu0 0.0
        %3776 = vmatpush1.msra.mxu0 0.0
        %3777 = vmatprep.subr.mxu0 0.0
        %3778 = vmatpush1.msra.mxu0 0.0
        %3779 = vmatprep.subr.mxu0 0.0
        %3780 = vmatpush1.msra.mxu0 0.0
        %3781 = vmatprep.subr.mxu0 0.0
        %3782 = vmatpush1.msra.mxu0 0.0
        %3783 = vmatprep.subr.mxu0 0.0
        %3784 = vmatpush1.msra.mxu0 0.0
        %3785 = vmatprep.subr.mxu0 0.0
        %3786 = vmatpush1.msra.mxu0 0.0
        %3787 = vmatprep.subr.mxu0 0.0
        %3788 = vmatpush1.msra.mxu0 0.0
        %3789 = vmatprep.subr.mxu0 0.0
        %3790 = vmatpush1.msra.mxu0 0.0
        %3791 = vmatprep.subr.mxu0 0.0
        %3792 = vmatpush1.msra.mxu0 0.0
        %3793 = vmatprep.subr.mxu0 0.0
        %3794 = vmatpush1.msra.mxu0 0.0
        %3795 = vmatprep.mubr.f32.mxu0 0.0
        %3796 = vmatmul.mubr.f32.gmra.mrb[0].mxu0 %v3729
        %v3797 = vpop.f32.mrb[0].mxu0
        %v3798 = vadd.f32 0.0, %v3797
        %v3799 = vpop.f32.mrb[0].mxu0
        %3800 = vdwg.mxu0
        %3801 = vrot.lane.b32.xlu0 %v2708, 80
        %v3802 = vpop.permute.xlu0 %3801
        %v3805 = vsel %vm830, %v3724, 0
        %3807 = vmatprep.subr.mxu0 0.0
        %3808 = vmatpush1.msra.mxu0 %v3802
        %3809 = vmatprep.subr.mxu0 0.0
        %3810 = vmatpush1.msra.mxu0 0.0
        %3811 = vmatprep.subr.mxu0 0.0
        %3812 = vmatpush1.msra.mxu0 0.0
        %3813 = vmatprep.subr.mxu0 0.0
        %3814 = vmatpush1.msra.mxu0 0.0
        %3815 = vmatprep.subr.mxu0 0.0
        %3816 = vmatpush1.msra.mxu0 0.0
        %3817 = vmatprep.subr.mxu0 0.0
        %3818 = vmatpush1.msra.mxu0 0.0
        %3819 = vmatprep.subr.mxu0 0.0
        %3820 = vmatpush1.msra.mxu0 0.0
        %3821 = vmatprep.subr.mxu0 0.0
        %3822 = vmatpush1.msra.mxu0 0.0
        %3823 = vmatprep.subr.mxu0 0.0
        %3824 = vmatpush1.msra.mxu0 0.0
        %3825 = vmatprep.subr.mxu0 0.0
        %3826 = vmatpush1.msra.mxu0 0.0
        %3827 = vmatprep.subr.mxu0 0.0
        %3828 = vmatpush1.msra.mxu0 0.0
        %3829 = vmatprep.subr.mxu0 0.0
        %3830 = vmatpush1.msra.mxu0 0.0
        %3831 = vmatprep.subr.mxu0 0.0
        %3832 = vmatpush1.msra.mxu0 0.0
        %3833 = vmatprep.subr.mxu0 0.0
        %3834 = vmatpush1.msra.mxu0 0.0
        %3835 = vmatprep.subr.mxu0 0.0
        %3836 = vmatpush1.msra.mxu0 0.0
        %3837 = vmatprep.subr.mxu0 0.0
        %3838 = vmatpush1.msra.mxu0 0.0
        %3839 = vmatprep.subr.mxu0 0.0
        %3840 = vmatpush1.msra.mxu0 0.0
        %3841 = vmatprep.subr.mxu0 0.0
        %3842 = vmatpush1.msra.mxu0 0.0
        %3843 = vmatprep.subr.mxu0 0.0
        %3844 = vmatpush1.msra.mxu0 0.0
        %3845 = vmatprep.subr.mxu0 0.0
        %3846 = vmatpush1.msra.mxu0 0.0
        %3847 = vmatprep.subr.mxu0 0.0
        %3848 = vmatpush1.msra.mxu0 0.0
        %3849 = vmatprep.subr.mxu0 0.0
        %3850 = vmatpush1.msra.mxu0 0.0
        %3851 = vmatprep.subr.mxu0 0.0
        %3852 = vmatpush1.msra.mxu0 0.0
        %3853 = vmatprep.subr.mxu0 0.0
        %3854 = vmatpush1.msra.mxu0 0.0
        %3855 = vmatprep.subr.mxu0 0.0
        %3856 = vmatpush1.msra.mxu0 0.0
        %3857 = vmatprep.subr.mxu0 0.0
        %3858 = vmatpush1.msra.mxu0 0.0
        %3859 = vmatprep.subr.mxu0 0.0
        %3860 = vmatpush1.msra.mxu0 0.0
        %3861 = vmatprep.subr.mxu0 0.0
        %3862 = vmatpush1.msra.mxu0 0.0
        %3863 = vmatprep.subr.mxu0 0.0
        %3864 = vmatpush1.msra.mxu0 0.0
        %3865 = vmatprep.subr.mxu0 0.0
        %3866 = vmatpush1.msra.mxu0 0.0
        %3867 = vmatprep.subr.mxu0 0.0
        %3868 = vmatpush1.msra.mxu0 0.0
        %3869 = vmatprep.subr.mxu0 0.0
        %3870 = vmatpush1.msra.mxu0 0.0
        %3871 = vmatprep.mubr.f32.mxu0 0.0
        %3872 = vmatmul.mubr.f32.gmra.mrb[0].mxu0 %v3805
        %v3873 = vpop.f32.mrb[0].mxu0
        %v3874 = vadd.f32 0.0, %v3873
        %v3875 = vpop.f32.mrb[0].mxu0
        %3876 = vdwg.mxu0
        %v3878 = vsel %vm830, %v3798, 0
        %v3881 = vsel %vm830, %v3874, 0
        %3883 = vmatprep.subr.mxu0 0.0
        %3884 = vmatpush1.msra.mxu0 %v2713
        %3885 = vmatprep.subr.mxu0 0.0
        %3886 = vmatpush1.msra.mxu0 0.0
        %3887 = vmatprep.subr.mxu0 0.0
        %3888 = vmatpush1.msra.mxu0 0.0
        %3889 = vmatprep.subr.mxu0 0.0
        %3890 = vmatpush1.msra.mxu0 0.0
        %3891 = vmatprep.subr.mxu0 0.0
        %3892 = vmatpush1.msra.mxu0 0.0
        %3893 = vmatprep.subr.mxu0 0.0
        %3894 = vmatpush1.msra.mxu0 0.0
        %3895 = vmatprep.subr.mxu0 0.0
        %3896 = vmatpush1.msra.mxu0 0.0
        %3897 = vmatprep.subr.mxu0 0.0
        %3898 = vmatpush1.msra.mxu0 0.0
        %3899 = vmatprep.subr.mxu0 0.0
        %3900 = vmatpush1.msra.mxu0 0.0
        %3901 = vmatprep.subr.mxu0 0.0
        %3902 = vmatpush1.msra.mxu0 0.0
        %3903 = vmatprep.subr.mxu0 0.0
        %3904 = vmatpush1.msra.mxu0 0.0
        %3905 = vmatprep.subr.mxu0 0.0
        %3906 = vmatpush1.msra.mxu0 0.0
        %3907 = vmatprep.subr.mxu0 0.0
        %3908 = vmatpush1.msra.mxu0 0.0
        %3909 = vmatprep.subr.mxu0 0.0
        %3910 = vmatpush1.msra.mxu0 0.0
        %3911 = vmatprep.subr.mxu0 0.0
        %3912 = vmatpush1.msra.mxu0 0.0
        %3913 = vmatprep.subr.mxu0 0.0
        %3914 = vmatpush1.msra.mxu0 0.0
        %3915 = vmatprep.subr.mxu0 0.0
        %3916 = vmatpush1.msra.mxu0 0.0
        %3917 = vmatprep.subr.mxu0 0.0
        %3918 = vmatpush1.msra.mxu0 0.0
        %3919 = vmatprep.subr.mxu0 0.0
        %3920 = vmatpush1.msra.mxu0 0.0
        %3921 = vmatprep.subr.mxu0 0.0
        %3922 = vmatpush1.msra.mxu0 0.0
        %3923 = vmatprep.subr.mxu0 0.0
        %3924 = vmatpush1.msra.mxu0 0.0
        %3925 = vmatprep.subr.mxu0 0.0
        %3926 = vmatpush1.msra.mxu0 0.0
        %3927 = vmatprep.subr.mxu0 0.0
        %3928 = vmatpush1.msra.mxu0 0.0
        %3929 = vmatprep.subr.mxu0 0.0
        %3930 = vmatpush1.msra.mxu0 0.0
        %3931 = vmatprep.subr.mxu0 0.0
        %3932 = vmatpush1.msra.mxu0 0.0
        %3933 = vmatprep.subr.mxu0 0.0
        %3934 = vmatpush1.msra.mxu0 0.0
        %3935 = vmatprep.subr.mxu0 0.0
        %3936 = vmatpush1.msra.mxu0 0.0
        %3937 = vmatprep.subr.mxu0 0.0
        %3938 = vmatpush1.msra.mxu0 0.0
        %3939 = vmatprep.subr.mxu0 0.0
        %3940 = vmatpush1.msra.mxu0 0.0
        %3941 = vmatprep.subr.mxu0 0.0
        %3942 = vmatpush1.msra.mxu0 0.0
        %3943 = vmatprep.subr.mxu0 0.0
        %3944 = vmatpush1.msra.mxu0 0.0
        %3945 = vmatprep.subr.mxu0 0.0
        %3946 = vmatpush1.msra.mxu0 0.0
        %3947 = vmatprep.mubr.f32.mxu0 0.0
        %3948 = vmatmul.mubr.f32.gmra.mrb[0].mxu0 %v3878
        %v3949 = vpop.f32.mrb[0].mxu0
        %v3950 = vadd.f32 0.0, %v3949
        %v3951 = vpop.f32.mrb[0].mxu0
        %3952 = vmatprep.mubr.f32.mxu0 0.0
        %3953 = vmatmul.mubr.f32.gmra.mrb[0].mxu0 %v3881
        %v3954 = vpop.f32.mrb[0].mxu0
        %v3955 = vadd.f32 0.0, %v3954
        %v3956 = vpop.f32.mrb[0].mxu0
        %3957 = vdwg.mxu0
        %v3958 = vadd.f32 %v3535, %v3950
        %v3959 = vadd.f32 %v3540, %v3955
        %3960 = vrot.lane.b32.xlu0 %v2618, 104
        %v3961 = vpop.permute.xlu0 %3960
        %3962 = vrot.lane.b32.xlu0 %v2703, 104
        %v3963 = vpop.permute.xlu0 %3962
        %v3964 = vsel %vm830, %v3961, 0
        %v3966 = vsel %vm830, %v3963, 0
        %3968 = vmatprep.subr.mxu0 0.0
        %3969 = vmatpush1.xpose.msra.mxu0 %v3966
        %3970 = vmatprep.subr.mxu0 0.0
        %3971 = vmatpush1.xpose.msra.mxu0 0.0
        %3972 = vmatprep.subr.mxu0 0.0
        %3973 = vmatpush1.xpose.msra.mxu0 0.0
        %3974 = vmatprep.subr.mxu0 0.0
        %3975 = vmatpush1.xpose.msra.mxu0 0.0
        %3976 = vmatprep.subr.mxu0 0.0
        %3977 = vmatpush1.xpose.msra.mxu0 0.0
        %3978 = vmatprep.subr.mxu0 0.0
        %3979 = vmatpush1.xpose.msra.mxu0 0.0
        %3980 = vmatprep.subr.mxu0 0.0
        %3981 = vmatpush1.xpose.msra.mxu0 0.0
        %3982 = vmatprep.subr.mxu0 0.0
        %3983 = vmatpush1.xpose.msra.mxu0 0.0
        %3984 = vmatprep.subr.mxu0 0.0
        %3985 = vmatpush1.xpose.msra.mxu0 0.0
        %3986 = vmatprep.subr.mxu0 0.0
        %3987 = vmatpush1.xpose.msra.mxu0 0.0
        %3988 = vmatprep.subr.mxu0 0.0
        %3989 = vmatpush1.xpose.msra.mxu0 0.0
        %3990 = vmatprep.subr.mxu0 0.0
        %3991 = vmatpush1.xpose.msra.mxu0 0.0
        %3992 = vmatprep.subr.mxu0 0.0
        %3993 = vmatpush1.xpose.msra.mxu0 0.0
        %3994 = vmatprep.subr.mxu0 0.0
        %3995 = vmatpush1.xpose.msra.mxu0 0.0
        %3996 = vmatprep.subr.mxu0 0.0
        %3997 = vmatpush1.xpose.msra.mxu0 0.0
        %3998 = vmatprep.subr.mxu0 0.0
        %3999 = vmatpush1.xpose.msra.mxu0 0.0
        %4000 = vmatprep.subr.mxu0 0.0
        %4001 = vmatpush1.xpose.msra.mxu0 0.0
        %4002 = vmatprep.subr.mxu0 0.0
        %4003 = vmatpush1.xpose.msra.mxu0 0.0
        %4004 = vmatprep.subr.mxu0 0.0
        %4005 = vmatpush1.xpose.msra.mxu0 0.0
        %4006 = vmatprep.subr.mxu0 0.0
        %4007 = vmatpush1.xpose.msra.mxu0 0.0
        %4008 = vmatprep.subr.mxu0 0.0
        %4009 = vmatpush1.xpose.msra.mxu0 0.0
        %4010 = vmatprep.subr.mxu0 0.0
        %4011 = vmatpush1.xpose.msra.mxu0 0.0
        %4012 = vmatprep.subr.mxu0 0.0
        %4013 = vmatpush1.xpose.msra.mxu0 0.0
        %4014 = vmatprep.subr.mxu0 0.0
        %4015 = vmatpush1.xpose.msra.mxu0 0.0
        %4016 = vmatprep.subr.mxu0 0.0
        %4017 = vmatpush1.xpose.msra.mxu0 0.0
        %4018 = vmatprep.subr.mxu0 0.0
        %4019 = vmatpush1.xpose.msra.mxu0 0.0
        %4020 = vmatprep.subr.mxu0 0.0
        %4021 = vmatpush1.xpose.msra.mxu0 0.0
        %4022 = vmatprep.subr.mxu0 0.0
        %4023 = vmatpush1.xpose.msra.mxu0 0.0
        %4024 = vmatprep.subr.mxu0 0.0
        %4025 = vmatpush1.xpose.msra.mxu0 0.0
        %4026 = vmatprep.subr.mxu0 0.0
        %4027 = vmatpush1.xpose.msra.mxu0 0.0
        %4028 = vmatprep.subr.mxu0 0.0
        %4029 = vmatpush1.xpose.msra.mxu0 0.0
        %4030 = vmatprep.subr.mxu0 0.0
        %4031 = vmatpush1.xpose.msra.mxu0 0.0
        %4032 = vmatprep.mubr.f32.mxu0 0.0
        %4033 = vmatmul.mubr.f32.gmra.mrb[0].mxu0 %v3964
        %v4034 = vpop.f32.mrb[0].mxu0
        %v4035 = vadd.f32 0.0, %v4034
        %v4036 = vpop.f32.mrb[0].mxu0
        %4037 = vdwg.mxu0
        %4038 = vrot.lane.b32.xlu0 %v2623, 104
        %v4039 = vpop.permute.xlu0 %4038
        %4040 = vrot.lane.b32.xlu0 %v2708, 104
        %v4041 = vpop.permute.xlu0 %4040
        %v4042 = vsel %vm830, %v4039, 0
        %v4044 = vsel %vm830, %v4041, 0
        %4046 = vmatprep.subr.mxu0 0.0
        %4047 = vmatpush1.xpose.msra.mxu0 %v4044
        %4048 = vmatprep.subr.mxu0 0.0
        %4049 = vmatpush1.xpose.msra.mxu0 0.0
        %4050 = vmatprep.subr.mxu0 0.0
        %4051 = vmatpush1.xpose.msra.mxu0 0.0
        %4052 = vmatprep.subr.mxu0 0.0
        %4053 = vmatpush1.xpose.msra.mxu0 0.0
        %4054 = vmatprep.subr.mxu0 0.0
        %4055 = vmatpush1.xpose.msra.mxu0 0.0
        %4056 = vmatprep.subr.mxu0 0.0
        %4057 = vmatpush1.xpose.msra.mxu0 0.0
        %4058 = vmatprep.subr.mxu0 0.0
        %4059 = vmatpush1.xpose.msra.mxu0 0.0
        %4060 = vmatprep.subr.mxu0 0.0
        %4061 = vmatpush1.xpose.msra.mxu0 0.0
        %4062 = vmatprep.subr.mxu0 0.0
        %4063 = vmatpush1.xpose.msra.mxu0 0.0
        %4064 = vmatprep.subr.mxu0 0.0
        %4065 = vmatpush1.xpose.msra.mxu0 0.0
        %4066 = vmatprep.subr.mxu0 0.0
        %4067 = vmatpush1.xpose.msra.mxu0 0.0
        %4068 = vmatprep.subr.mxu0 0.0
        %4069 = vmatpush1.xpose.msra.mxu0 0.0
        %4070 = vmatprep.subr.mxu0 0.0
        %4071 = vmatpush1.xpose.msra.mxu0 0.0
        %4072 = vmatprep.subr.mxu0 0.0
        %4073 = vmatpush1.xpose.msra.mxu0 0.0
        %4074 = vmatprep.subr.mxu0 0.0
        %4075 = vmatpush1.xpose.msra.mxu0 0.0
        %4076 = vmatprep.subr.mxu0 0.0
        %4077 = vmatpush1.xpose.msra.mxu0 0.0
        %4078 = vmatprep.subr.mxu0 0.0
        %4079 = vmatpush1.xpose.msra.mxu0 0.0
        %4080 = vmatprep.subr.mxu0 0.0
        %4081 = vmatpush1.xpose.msra.mxu0 0.0
        %4082 = vmatprep.subr.mxu0 0.0
        %4083 = vmatpush1.xpose.msra.mxu0 0.0
        %4084 = vmatprep.subr.mxu0 0.0
        %4085 = vmatpush1.xpose.msra.mxu0 0.0
        %4086 = vmatprep.subr.mxu0 0.0
        %4087 = vmatpush1.xpose.msra.mxu0 0.0
        %4088 = vmatprep.subr.mxu0 0.0
        %4089 = vmatpush1.xpose.msra.mxu0 0.0
        %4090 = vmatprep.subr.mxu0 0.0
        %4091 = vmatpush1.xpose.msra.mxu0 0.0
        %4092 = vmatprep.subr.mxu0 0.0
        %4093 = vmatpush1.xpose.msra.mxu0 0.0
        %4094 = vmatprep.subr.mxu0 0.0
        %4095 = vmatpush1.xpose.msra.mxu0 0.0
        %4096 = vmatprep.subr.mxu0 0.0
        %4097 = vmatpush1.xpose.msra.mxu0 0.0
        %4098 = vmatprep.subr.mxu0 0.0
        %4099 = vmatpush1.xpose.msra.mxu0 0.0
        %4100 = vmatprep.subr.mxu0 0.0
        %4101 = vmatpush1.xpose.msra.mxu0 0.0
        %4102 = vmatprep.subr.mxu0 0.0
        %4103 = vmatpush1.xpose.msra.mxu0 0.0
        %4104 = vmatprep.subr.mxu0 0.0
        %4105 = vmatpush1.xpose.msra.mxu0 0.0
        %4106 = vmatprep.subr.mxu0 0.0
        %4107 = vmatpush1.xpose.msra.mxu0 0.0
        %4108 = vmatprep.subr.mxu0 0.0
        %4109 = vmatpush1.xpose.msra.mxu0 0.0
        %4110 = vmatprep.mubr.f32.mxu0 0.0
        %4111 = vmatmul.mubr.f32.gmra.mrb[0].mxu0 %v4042
        %v4112 = vpop.f32.mrb[0].mxu0
        %v4113 = vadd.f32 0.0, %v4112
        %v4114 = vpop.f32.mrb[0].mxu0
        %4115 = vdwg.mxu0
        %v4116 = vmul.f32 %v4035, 0.35355338
        %v4117 = vmul.f32 %v4113, 0.35355338
        %v4118 = vsel %vm2869, -1e+09, %v4116
        %v4119 = vsel %vm2870, -1e+09, %v4117
        %v4120 = vsel %vm830, %v4118, -inf
        %4121 = vmax.xlane.f32.xlu0 %v4120
        %v4122 = vpop.xlane.xlu0 %4121
        %v4123 = vsel %vm830, %v4119, -inf
        %4124 = vmax.xlane.f32.xlu0 %v4123
        %v4125 = vpop.xlane.xlu0 %4124
        %v4126 = vsub.f32 %v4118, %v4122
        %v4127 = vsub.f32 %v4119, %v4125
        %v4128 = vmul.f32 %v4126, 1.442695
        %v4129 = vpow.pop %v4128
        %v4130 = vmul.f32 %v4127, 1.442695
        %v4131 = vpow.pop %v4130
        %v4132 = vsel %vm830, %v4129, 0.0
        %4133 = vadd.xlane.f32.xlu0 %v4132
        %v4134 = vpop.xlane.xlu0 %4133
        %v4135 = vsel %vm830, %v4131, 0.0
        %4136 = vadd.xlane.f32.xlu0 %v4135
        %v4137 = vpop.xlane.xlu0 %4136
        %v4138 = vrcp.pop %v4134
        %v4139 = vrcp.pop %v4137
        %v4140 = vmul.f32 %v4129, %v4138
        %v4141 = vmul.f32 %v4131, %v4139
        %4142 = vrot.lane.b32.xlu0 %v2703, 72
        %v4143 = vpop.permute.xlu0 %4142
        %v4146 = vsel %vm830, %v4140, 0
        %4148 = vmatprep.subr.mxu0 0.0
        %4149 = vmatpush1.msra.mxu0 %v4143
        %4150 = vmatprep.subr.mxu0 0.0
        %4151 = vmatpush1.msra.mxu0 0.0
        %4152 = vmatprep.subr.mxu0 0.0
        %4153 = vmatpush1.msra.mxu0 0.0
        %4154 = vmatprep.subr.mxu0 0.0
        %4155 = vmatpush1.msra.mxu0 0.0
        %4156 = vmatprep.subr.mxu0 0.0
        %4157 = vmatpush1.msra.mxu0 0.0
        %4158 = vmatprep.subr.mxu0 0.0
        %4159 = vmatpush1.msra.mxu0 0.0
        %4160 = vmatprep.subr.mxu0 0.0
        %4161 = vmatpush1.msra.mxu0 0.0
        %4162 = vmatprep.subr.mxu0 0.0
        %4163 = vmatpush1.msra.mxu0 0.0
        %4164 = vmatprep.subr.mxu0 0.0
        %4165 = vmatpush1.msra.mxu0 0.0
        %4166 = vmatprep.subr.mxu0 0.0
        %4167 = vmatpush1.msra.mxu0 0.0
        %4168 = vmatprep.subr.mxu0 0.0
        %4169 = vmatpush1.msra.mxu0 0.0
        %4170 = vmatprep.subr.mxu0 0.0
        %4171 = vmatpush1.msra.mxu0 0.0
        %4172 = vmatprep.subr.mxu0 0.0
        %4173 = vmatpush1.msra.mxu0 0.0
        %4174 = vmatprep.subr.mxu0 0.0
        %4175 = vmatpush1.msra.mxu0 0.0
        %4176 = vmatprep.subr.mxu0 0.0
        %4177 = vmatpush1.msra.mxu0 0.0
        %4178 = vmatprep.subr.mxu0 0.0
        %4179 = vmatpush1.msra.mxu0 0.0
        %4180 = vmatprep.subr.mxu0 0.0
        %4181 = vmatpush1.msra.mxu0 0.0
        %4182 = vmatprep.subr.mxu0 0.0
        %4183 = vmatpush1.msra.mxu0 0.0
        %4184 = vmatprep.subr.mxu0 0.0
        %4185 = vmatpush1.msra.mxu0 0.0
        %4186 = vmatprep.subr.mxu0 0.0
        %4187 = vmatpush1.msra.mxu0 0.0
        %4188 = vmatprep.subr.mxu0 0.0
        %4189 = vmatpush1.msra.mxu0 0.0
        %4190 = vmatprep.subr.mxu0 0.0
        %4191 = vmatpush1.msra.mxu0 0.0
        %4192 = vmatprep.subr.mxu0 0.0
        %4193 = vmatpush1.msra.mxu0 0.0
        %4194 = vmatprep.subr.mxu0 0.0
        %4195 = vmatpush1.msra.mxu0 0.0
        %4196 = vmatprep.subr.mxu0 0.0
        %4197 = vmatpush1.msra.mxu0 0.0
        %4198 = vmatprep.subr.mxu0 0.0
        %4199 = vmatpush1.msra.mxu0 0.0
        %4200 = vmatprep.subr.mxu0 0.0
        %4201 = vmatpush1.msra.mxu0 0.0
        %4202 = vmatprep.subr.mxu0 0.0
        %4203 = vmatpush1.msra.mxu0 0.0
        %4204 = vmatprep.subr.mxu0 0.0
        %4205 = vmatpush1.msra.mxu0 0.0
        %4206 = vmatprep.subr.mxu0 0.0
        %4207 = vmatpush1.msra.mxu0 0.0
        %4208 = vmatprep.subr.mxu0 0.0
        %4209 = vmatpush1.msra.mxu0 0.0
        %4210 = vmatprep.subr.mxu0 0.0
        %4211 = vmatpush1.msra.mxu0 0.0
        %4212 = vmatprep.mubr.f32.mxu0 0.0
        %4213 = vmatmul.mubr.f32.gmra.mrb[0].mxu0 %v4146
        %v4214 = vpop.f32.mrb[0].mxu0
        %v4215 = vadd.f32 0.0, %v4214
        %v4216 = vpop.f32.mrb[0].mxu0
        %4217 = vdwg.mxu0
        %4218 = vrot.lane.b32.xlu0 %v2708, 72
        %v4219 = vpop.permute.xlu0 %4218
        %v4222 = vsel %vm830, %v4141, 0
        %4224 = vmatprep.subr.mxu0 0.0
        %4225 = vmatpush1.msra.mxu0 %v4219
        %4226 = vmatprep.subr.mxu0 0.0
        %4227 = vmatpush1.msra.mxu0 0.0
        %4228 = vmatprep.subr.mxu0 0.0
        %4229 = vmatpush1.msra.mxu0 0.0
        %4230 = vmatprep.subr.mxu0 0.0
        %4231 = vmatpush1.msra.mxu0 0.0
        %4232 = vmatprep.subr.mxu0 0.0
        %4233 = vmatpush1.msra.mxu0 0.0
        %4234 = vmatprep.subr.mxu0 0.0
        %4235 = vmatpush1.msra.mxu0 0.0
        %4236 = vmatprep.subr.mxu0 0.0
        %4237 = vmatpush1.msra.mxu0 0.0
        %4238 = vmatprep.subr.mxu0 0.0
        %4239 = vmatpush1.msra.mxu0 0.0
        %4240 = vmatprep.subr.mxu0 0.0
        %4241 = vmatpush1.msra.mxu0 0.0
        %4242 = vmatprep.subr.mxu0 0.0
        %4243 = vmatpush1.msra.mxu0 0.0
        %4244 = vmatprep.subr.mxu0 0.0
        %4245 = vmatpush1.msra.mxu0 0.0
        %4246 = vmatprep.subr.mxu0 0.0
        %4247 = vmatpush1.msra.mxu0 0.0
        %4248 = vmatprep.subr.mxu0 0.0
        %4249 = vmatpush1.msra.mxu0 0.0
        %4250 = vmatprep.subr.mxu0 0.0
        %4251 = vmatpush1.msra.mxu0 0.0
        %4252 = vmatprep.subr.mxu0 0.0
        %4253 = vmatpush1.msra.mxu0 0.0
        %4254 = vmatprep.subr.mxu0 0.0
        %4255 = vmatpush1.msra.mxu0 0.0
        %4256 = vmatprep.subr.mxu0 0.0
        %4257 = vmatpush1.msra.mxu0 0.0
        %4258 = vmatprep.subr.mxu0 0.0
        %4259 = vmatpush1.msra.mxu0 0.0
        %4260 = vmatprep.subr.mxu0 0.0
        %4261 = vmatpush1.msra.mxu0 0.0
        %4262 = vmatprep.subr.mxu0 0.0
        %4263 = vmatpush1.msra.mxu0 0.0
        %4264 = vmatprep.subr.mxu0 0.0
        %4265 = vmatpush1.msra.mxu0 0.0
        %4266 = vmatprep.subr.mxu0 0.0
        %4267 = vmatpush1.msra.mxu0 0.0
        %4268 = vmatprep.subr.mxu0 0.0
        %4269 = vmatpush1.msra.mxu0 0.0
        %4270 = vmatprep.subr.mxu0 0.0
        %4271 = vmatpush1.msra.mxu0 0.0
        %4272 = vmatprep.subr.mxu0 0.0
        %4273 = vmatpush1.msra.mxu0 0.0
        %4274 = vmatprep.subr.mxu0 0.0
        %4275 = vmatpush1.msra.mxu0 0.0
        %4276 = vmatprep.subr.mxu0 0.0
        %4277 = vmatpush1.msra.mxu0 0.0
        %4278 = vmatprep.subr.mxu0 0.0
        %4279 = vmatpush1.msra.mxu0 0.0
        %4280 = vmatprep.subr.mxu0 0.0
        %4281 = vmatpush1.msra.mxu0 0.0
        %4282 = vmatprep.subr.mxu0 0.0
        %4283 = vmatpush1.msra.mxu0 0.0
        %4284 = vmatprep.subr.mxu0 0.0
        %4285 = vmatpush1.msra.mxu0 0.0
        %4286 = vmatprep.subr.mxu0 0.0
        %4287 = vmatpush1.msra.mxu0 0.0
        %4288 = vmatprep.mubr.f32.mxu0 0.0
        %4289 = vmatmul.mubr.f32.gmra.mrb[0].mxu0 %v4222
        %v4290 = vpop.f32.mrb[0].mxu0
        %v4291 = vadd.f32 0.0, %v4290
        %v4292 = vpop.f32.mrb[0].mxu0
        %4293 = vdwg.mxu0
        %v4295 = vsel %vm830, %v4215, 0
        %v4298 = vsel %vm830, %v4291, 0
        %4300 = vmatprep.subr.mxu0 0.0
        %4301 = vmatpush1.msra.mxu0 %v2714
        %4302 = vmatprep.subr.mxu0 0.0
        %4303 = vmatpush1.msra.mxu0 0.0
        %4304 = vmatprep.subr.mxu0 0.0
        %4305 = vmatpush1.msra.mxu0 0.0
        %4306 = vmatprep.subr.mxu0 0.0
        %4307 = vmatpush1.msra.mxu0 0.0
        %4308 = vmatprep.subr.mxu0 0.0
        %4309 = vmatpush1.msra.mxu0 0.0
        %4310 = vmatprep.subr.mxu0 0.0
        %4311 = vmatpush1.msra.mxu0 0.0
        %4312 = vmatprep.subr.mxu0 0.0
        %4313 = vmatpush1.msra.mxu0 0.0
        %4314 = vmatprep.subr.mxu0 0.0
        %4315 = vmatpush1.msra.mxu0 0.0
        %4316 = vmatprep.subr.mxu0 0.0
        %4317 = vmatpush1.msra.mxu0 0.0
        %4318 = vmatprep.subr.mxu0 0.0
        %4319 = vmatpush1.msra.mxu0 0.0
        %4320 = vmatprep.subr.mxu0 0.0
        %4321 = vmatpush1.msra.mxu0 0.0
        %4322 = vmatprep.subr.mxu0 0.0
        %4323 = vmatpush1.msra.mxu0 0.0
        %4324 = vmatprep.subr.mxu0 0.0
        %4325 = vmatpush1.msra.mxu0 0.0
        %4326 = vmatprep.subr.mxu0 0.0
        %4327 = vmatpush1.msra.mxu0 0.0
        %4328 = vmatprep.subr.mxu0 0.0
        %4329 = vmatpush1.msra.mxu0 0.0
        %4330 = vmatprep.subr.mxu0 0.0
        %4331 = vmatpush1.msra.mxu0 0.0
        %4332 = vmatprep.subr.mxu0 0.0
        %4333 = vmatpush1.msra.mxu0 0.0
        %4334 = vmatprep.subr.mxu0 0.0
        %4335 = vmatpush1.msra.mxu0 0.0
        %4336 = vmatprep.subr.mxu0 0.0
        %4337 = vmatpush1.msra.mxu0 0.0
        %4338 = vmatprep.subr.mxu0 0.0
        %4339 = vmatpush1.msra.mxu0 0.0
        %4340 = vmatprep.subr.mxu0 0.0
        %4341 = vmatpush1.msra.mxu0 0.0
        %4342 = vmatprep.subr.mxu0 0.0
        %4343 = vmatpush1.msra.mxu0 0.0
        %4344 = vmatprep.subr.mxu0 0.0
        %4345 = vmatpush1.msra.mxu0 0.0
        %4346 = vmatprep.subr.mxu0 0.0
        %4347 = vmatpush1.msra.mxu0 0.0
        %4348 = vmatprep.subr.mxu0 0.0
        %4349 = vmatpush1.msra.mxu0 0.0
        %4350 = vmatprep.subr.mxu0 0.0
        %4351 = vmatpush1.msra.mxu0 0.0
        %4352 = vmatprep.subr.mxu0 0.0
        %4353 = vmatpush1.msra.mxu0 0.0
        %4354 = vmatprep.subr.mxu0 0.0
        %4355 = vmatpush1.msra.mxu0 0.0
        %4356 = vmatprep.subr.mxu0 0.0
        %4357 = vmatpush1.msra.mxu0 0.0
        %4358 = vmatprep.subr.mxu0 0.0
        %4359 = vmatpush1.msra.mxu0 0.0
        %4360 = vmatprep.subr.mxu0 0.0
        %4361 = vmatpush1.msra.mxu0 0.0
        %4362 = vmatprep.subr.mxu0 0.0
        %4363 = vmatpush1.msra.mxu0 0.0
        %4364 = vmatprep.mubr.f32.mxu0 0.0
        %4365 = vmatmul.mubr.f32.gmra.mrb[0].mxu0 %v4295
        %v4366 = vpop.f32.mrb[0].mxu0
        %v4367 = vadd.f32 0.0, %v4366
        %v4368 = vpop.f32.mrb[0].mxu0
        %4369 = vmatprep.mubr.f32.mxu0 0.0
        %4370 = vmatmul.mubr.f32.gmra.mrb[0].mxu0 %v4298
        %v4371 = vpop.f32.mrb[0].mxu0
        %v4372 = vadd.f32 0.0, %v4371
        %v4373 = vpop.f32.mrb[0].mxu0
        %4374 = vdwg.mxu0
        %v4375 = vadd.f32 %v3958, %v4367
        %v4376 = vadd.f32 %v3959, %v4372
        %v4377 = vadd.f32 %v4375, %v2531
        %v4378 = vadd.f32 %v4376, %v2532
        %v4379 = vsel %vm741, %v4377, 0.0
        %4380 = vadd.xlane.f32.xlu0 %v4379
        %v4381 = vpop.xlane.xlu0 %4380
        %v4382 = vsel %vm741, %v4378, 0.0
        %4383 = vadd.xlane.f32.xlu0 %v4382
        %v4384 = vpop.xlane.xlu0 %4383
        %v4385 = vmul.f32 %v4381, %v2500
        %v4386 = vmul.f32 %v4384, %v2500
        %v4387 = vsub.f32 %v4377, %v4385
        %v4388 = vsub.f32 %v4378, %v4386
        %v4389 = vmul.f32 %v4387, %v4387
        %v4390 = vmul.f32 %v4388, %v4388
        %v4391 = vsel %vm741, %v4389, 0.0
        %4392 = vadd.xlane.f32.xlu0 %v4391
        %v4393 = vpop.xlane.xlu0 %4392
        %v4394 = vsel %vm741, %v4390, 0.0
        %4395 = vadd.xlane.f32.xlu0 %v4394
        %v4396 = vpop.xlane.xlu0 %4395
        %v4397 = vmul.f32 %v4393, %v2500
        %v4398 = vmul.f32 %v4396, %v2500
        %v4399 = vadd.f32 %v4397, 1e-05
        %v4400 = vadd.f32 %v4398, 1e-05
        %v4401 = vrsqrt.pop %v4399
        %v4402 = vrsqrt.pop %v4400
        %v4403 = vmul.f32 %v4387, %v4401
        %v4404 = vmul.f32 %v4388, %v4402
        %v4405 = vlaneseq
        %v4406 = vshrl.u32 %v4405, 7
        %v4407 = vsub.s32 2, %v4406
        %v4408 = vrot.slane %v736, %v4407
        %v4409 = vmul.f32 %v4403, %v4408
        %v4410 = vmul.f32 %v4404, %v4408
        %v4411 = vlaneseq
        %v4412 = vshrl.u32 %v4411, 7
        %v4413 = vsub.s32 3, %v4412
        %v4414 = vrot.slane %v736, %v4413
        %v4415 = vadd.f32 %v4409, %v4414
        %v4416 = vadd.f32 %v4410, %v4414
        %4417 = vst.msk [vmem:[%s694] sm:$0xff] %vm830, %v2893
        %4418 = vst.msk [vmem:[%s694 + $0x8] sm:$0xff] %vm830, %v2894
        %4419 = vst.msk [vmem:[%s694 + $0x10] sm:$0xff] %vm830, %v3227
        %4420 = vst.msk [vmem:[%s694 + $0x18] sm:$0xff] %vm830, %v3228
        %4421 = vst.msk [vmem:[%s694 + $0x20] sm:$0xff] %vm830, %v3723
        %4422 = vst.msk [vmem:[%s694 + $0x28] sm:$0xff] %vm830, %v3724
        %4423 = vst.msk [vmem:[%s694 + $0x30] sm:$0xff] %vm830, %v4140
        %4424 = vst.msk [vmem:[%s694 + $0x38] sm:$0xff] %vm830, %v4141
        %v4425 = vld [vmem:[%s611] sm:$0xff]
        %v4426 = vld [vmem:[%s611 + $0x8] sm:$0xff]
        %v4427 = vld [vmem:[%s611 + $0x10] sm:$0xff]
        %v4428 = vld [vmem:[%s611 + $0x18] sm:$0xff]
        %v4430 = vsel %vm741, %v4415, 0
        %v4433 = vsel %vm741, %v4416, 0
        %4435 = vmatprep.subr.mxu0 0.0
        %4436 = vmatpush1.msra.mxu0 %v4425
        %4437 = vmatprep.subr.mxu0 0.0
        %4438 = vmatpush1.msra.mxu0 %v4426
        %4439 = vmatprep.subr.mxu0 0.0
        %4440 = vmatpush1.msra.mxu0 %v4427
        %4441 = vmatprep.subr.mxu0 0.0
        %4442 = vmatpush1.msra.mxu0 %v4428
        %4443 = vmatprep.subr.mxu0 0.0
        %4444 = vmatpush1.msra.mxu0 0.0
        %4445 = vmatprep.subr.mxu0 0.0
        %4446 = vmatpush1.msra.mxu0 0.0
        %4447 = vmatprep.subr.mxu0 0.0
        %4448 = vmatpush1.msra.mxu0 0.0
        %4449 = vmatprep.subr.mxu0 0.0
        %4450 = vmatpush1.msra.mxu0 0.0
        %4451 = vmatprep.subr.mxu0 0.0
        %4452 = vmatpush1.msra.mxu0 0.0
        %4453 = vmatprep.subr.mxu0 0.0
        %4454 = vmatpush1.msra.mxu0 0.0
        %4455 = vmatprep.subr.mxu0 0.0
        %4456 = vmatpush1.msra.mxu0 0.0
        %4457 = vmatprep.subr.mxu0 0.0
        %4458 = vmatpush1.msra.mxu0 0.0
        %4459 = vmatprep.subr.mxu0 0.0
        %4460 = vmatpush1.msra.mxu0 0.0
        %4461 = vmatprep.subr.mxu0 0.0
        %4462 = vmatpush1.msra.mxu0 0.0
        %4463 = vmatprep.subr.mxu0 0.0
        %4464 = vmatpush1.msra.mxu0 0.0
        %4465 = vmatprep.subr.mxu0 0.0
        %4466 = vmatpush1.msra.mxu0 0.0
        %4467 = vmatprep.subr.mxu0 0.0
        %4468 = vmatpush1.msra.mxu0 0.0
        %4469 = vmatprep.subr.mxu0 0.0
        %4470 = vmatpush1.msra.mxu0 0.0
        %4471 = vmatprep.subr.mxu0 0.0
        %4472 = vmatpush1.msra.mxu0 0.0
        %4473 = vmatprep.subr.mxu0 0.0
        %4474 = vmatpush1.msra.mxu0 0.0
        %4475 = vmatprep.subr.mxu0 0.0
        %4476 = vmatpush1.msra.mxu0 0.0
        %4477 = vmatprep.subr.mxu0 0.0
        %4478 = vmatpush1.msra.mxu0 0.0
        %4479 = vmatprep.subr.mxu0 0.0
        %4480 = vmatpush1.msra.mxu0 0.0
        %4481 = vmatprep.subr.mxu0 0.0
        %4482 = vmatpush1.msra.mxu0 0.0
        %4483 = vmatprep.subr.mxu0 0.0
        %4484 = vmatpush1.msra.mxu0 0.0
        %4485 = vmatprep.subr.mxu0 0.0
        %4486 = vmatpush1.msra.mxu0 0.0
        %4487 = vmatprep.subr.mxu0 0.0
        %4488 = vmatpush1.msra.mxu0 0.0
        %4489 = vmatprep.subr.mxu0 0.0
        %4490 = vmatpush1.msra.mxu0 0.0
        %4491 = vmatprep.subr.mxu0 0.0
        %4492 = vmatpush1.msra.mxu0 0.0
        %4493 = vmatprep.subr.mxu0 0.0
        %4494 = vmatpush1.msra.mxu0 0.0
        %4495 = vmatprep.subr.mxu0 0.0
        %4496 = vmatpush1.msra.mxu0 0.0
        %4497 = vmatprep.subr.mxu0 0.0
        %4498 = vmatpush1.msra.mxu0 0.0
        %4499 = vmatprep.mubr.f32.mxu0 0.0
        %4500 = vmatmul.mubr.f32.gmra.mrb[0].mxu0 %v4430
        %v4501 = vpop.f32.mrb[0].mxu0
        %v4502 = vadd.f32 0.0, %v4501
        %v4503 = vpop.f32.mrb[0].mxu0
        %4504 = vmatprep.mubr.f32.mxu0 0.0
        %4505 = vmatmul.mubr.f32.gmra.mrb[0].mxu0 %v4433
        %v4506 = vpop.f32.mrb[0].mxu0
        %v4507 = vadd.f32 0.0, %v4506
        %v4508 = vpop.f32.mrb[0].mxu0
        %4509 = vdwg.mxu0
        %v4510 = vmax.f32 %v4502, 0.0
        %v4511 = vmax.f32 %v4507, 0.0
        %v4512 = vld [vmem:[%s714] sm:$0xff]
        %v4513 = vld [vmem:[%s714 + $0x8] sm:$0xff]
        %v4514 = vld [vmem:[%s714 + $0x10] sm:$0xff]
        %v4515 = vld [vmem:[%s714 + $0x18] sm:$0xff]
        %v4516 = vld [vmem:[%s714 + $0x20] sm:$0xff]
        %v4517 = vld [vmem:[%s714 + $0x28] sm:$0xff]
        %v4518 = vld [vmem:[%s714 + $0x30] sm:$0xff]
        %v4519 = vld [vmem:[%s714 + $0x38] sm:$0xff]
        %vm4520 = vcmask 523264
        %v4522 = vsel %vm4520, %v4510, 0
        %v4525 = vsel %vm4520, %v4511, 0
        %4527 = vmatprep.subr.mxu0 0.0
        %4528 = vmatpush1.msra.mxu0 %v4512
        %4529 = vmatprep.subr.mxu0 0.0
        %4530 = vmatpush1.msra.mxu0 %v4513
        %4531 = vmatprep.subr.mxu0 0.0
        %4532 = vmatpush1.msra.mxu0 %v4514
        %4533 = vmatprep.subr.mxu0 0.0
        %4534 = vmatpush1.msra.mxu0 %v4515
        %4535 = vmatprep.subr.mxu0 0.0
        %4536 = vmatpush1.msra.mxu0 %v4516
        %4537 = vmatprep.subr.mxu0 0.0
        %4538 = vmatpush1.msra.mxu0 %v4517
        %4539 = vmatprep.subr.mxu0 0.0
        %4540 = vmatpush1.msra.mxu0 %v4518
        %4541 = vmatprep.subr.mxu0 0.0
        %4542 = vmatpush1.msra.mxu0 %v4519
        %4543 = vmatprep.subr.mxu0 0.0
        %4544 = vmatpush1.msra.mxu0 0.0
        %4545 = vmatprep.subr.mxu0 0.0
        %4546 = vmatpush1.msra.mxu0 0.0
        %4547 = vmatprep.subr.mxu0 0.0
        %4548 = vmatpush1.msra.mxu0 0.0
        %4549 = vmatprep.subr.mxu0 0.0
        %4550 = vmatpush1.msra.mxu0 0.0
        %4551 = vmatprep.subr.mxu0 0.0
        %4552 = vmatpush1.msra.mxu0 0.0
        %4553 = vmatprep.subr.mxu0 0.0
        %4554 = vmatpush1.msra.mxu0 0.0
        %4555 = vmatprep.subr.mxu0 0.0
        %4556 = vmatpush1.msra.mxu0 0.0
        %4557 = vmatprep.subr.mxu0 0.0
        %4558 = vmatpush1.msra.mxu0 0.0
        %4559 = vmatprep.subr.mxu0 0.0
        %4560 = vmatpush1.msra.mxu0 0.0
        %4561 = vmatprep.subr.mxu0 0.0
        %4562 = vmatpush1.msra.mxu0 0.0
        %4563 = vmatprep.subr.mxu0 0.0
        %4564 = vmatpush1.msra.mxu0 0.0
        %4565 = vmatprep.subr.mxu0 0.0
        %4566 = vmatpush1.msra.mxu0 0.0
        %4567 = vmatprep.subr.mxu0 0.0
        %4568 = vmatpush1.msra.mxu0 0.0
        %4569 = vmatprep.subr.mxu0 0.0
        %4570 = vmatpush1.msra.mxu0 0.0
        %4571 = vmatprep.subr.mxu0 0.0
        %4572 = vmatpush1.msra.mxu0 0.0
        %4573 = vmatprep.subr.mxu0 0.0
        %4574 = vmatpush1.msra.mxu0 0.0
        %4575 = vmatprep.subr.mxu0 0.0
        %4576 = vmatpush1.msra.mxu0 0.0
        %4577 = vmatprep.subr.mxu0 0.0
        %4578 = vmatpush1.msra.mxu0 0.0
        %4579 = vmatprep.subr.mxu0 0.0
        %4580 = vmatpush1.msra.mxu0 0.0
        %4581 = vmatprep.subr.mxu0 0.0
        %4582 = vmatpush1.msra.mxu0 0.0
        %4583 = vmatprep.subr.mxu0 0.0
        %4584 = vmatpush1.msra.mxu0 0.0
        %4585 = vmatprep.subr.mxu0 0.0
        %4586 = vmatpush1.msra.mxu0 0.0
        %4587 = vmatprep.subr.mxu0 0.0
        %4588 = vmatpush1.msra.mxu0 0.0
        %4589 = vmatprep.subr.mxu0 0.0
        %4590 = vmatpush1.msra.mxu0 0.0
        %4591 = vmatprep.mubr.f32.mxu0 0.0
        %4592 = vmatmul.mubr.f32.gmra.mrb[0].mxu0 %v4522
        %v4593 = vpop.f32.mrb[0].mxu0
        %v4594 = vadd.f32 %v4415, %v4593
        %v4595 = vpop.f32.mrb[0].mxu0
        %4596 = vmatprep.mubr.f32.mxu0 0.0
        %4597 = vmatmul.mubr.f32.gmra.mrb[0].mxu0 %v4525
        %v4598 = vpop.f32.mrb[0].mxu0
        %v4599 = vadd.f32 %v4416, %v4598
        %v4600 = vpop.f32.mrb[0].mxu0
        %4601 = vdwg.mxu0
        %v4602 = vsel %vm741, %v4594, 0.0
        %4603 = vadd.xlane.f32.xlu0 %v4602
        %v4604 = vpop.xlane.xlu0 %4603
        %v4605 = vsel %vm741, %v4599, 0.0
        %4606 = vadd.xlane.f32.xlu0 %v4605
        %v4607 = vpop.xlane.xlu0 %4606
        %v4608 = vmul.f32 %v4604, %v2500
        %v4609 = vmul.f32 %v4607, %v2500
        %v4610 = vsub.f32 %v4594, %v4608
        %v4611 = vsub.f32 %v4599, %v4609
        %v4612 = vmul.f32 %v4610, %v4610
        %v4613 = vmul.f32 %v4611, %v4611
        %v4614 = vsel %vm741, %v4612, 0.0
        %4615 = vadd.xlane.f32.xlu0 %v4614
        %v4616 = vpop.xlane.xlu0 %4615
        %v4617 = vsel %vm741, %v4613, 0.0
        %4618 = vadd.xlane.f32.xlu0 %v4617
        %v4619 = vpop.xlane.xlu0 %4618
        %v4620 = vmul.f32 %v4616, %v2500
        %v4621 = vmul.f32 %v4619, %v2500
        %v4622 = vadd.f32 %v4620, 1e-05
        %v4623 = vadd.f32 %v4621, 1e-05
        %v4624 = vrsqrt.pop %v4622
        %v4625 = vrsqrt.pop %v4623
        %v4626 = vmul.f32 %v4610, %v4624
        %v4627 = vmul.f32 %v4611, %v4625
        %v4628 = vlaneseq
        %v4629 = vshrl.u32 %v4628, 7
        %v4630 = vsub.s32 4, %v4629
        %v4631 = vrot.slane %v736, %v4630
        %v4632 = vmul.f32 %v4626, %v4631
        %v4633 = vmul.f32 %v4627, %v4631
        %v4634 = vlaneseq
        %v4635 = vshrl.u32 %v4634, 7
        %v4636 = vsub.s32 5, %v4635
        %v4637 = vrot.slane %v736, %v4636
        %v4638 = vadd.f32 %v4632, %v4637
        %v4639 = vadd.f32 %v4633, %v4637
        %4640 = vst.msk [vmem:[#allocation2] sm:$0xff] %vm741, %v4638
        %4641 = vst.msk [vmem:[#allocation2 + $0x8] sm:$0xff] %vm741, %v4639
        %4642 = vst.msk [vmem:[#allocation14] sm:$0xff] %vm741, %v4638
        %4643 = vst.msk [vmem:[#allocation14 + $0x8] sm:$0xff] %vm741, %v4639
        %s4644 = sand.u32 %s33, 1
        %s4645 = scalar_lea.sflag [#allocation16], %s4644
        %s4646 = sand.u32 %s354, 1
        %s4647 = smul.addr %s4646, 64
        %s4648 = scalar_lea.vmem [#allocation15], %s4647
        %s4649 = sand.u32 %s33, 1
        %s4650 = scalar_lea.sflag [#allocation16], %s4649
        %s4651 = sand.u32 %s380, 1
        %s4652 = smul.addr %s4651, 64
        %s4653 = scalar_lea.vmem [#allocation17], %s4652
        // Predicated region
        $region101: #{tpu_custom_call.1} parent=67 // pred_check
          %p4654 = pneg %p338
        $region102: #{tpu_custom_call.1} parent=67 // pred_check_branch
          %4656 = sbr.rel (%p4654) target = $region104
        $region103: #{tpu_custom_call.1} parent=67 // pred_region
          %s4658 = ssub.s32 256, 256
          %4659 = vsyncadd [#allocation5], %s4658
          %s4660 = sshll.u32 [#allocation14], 4
          %s4661 = int_to_ptr.vmem [resolvable:$true] %s4660
          %4666 = dma.vmem_to_hbm [thread:$0]  %s4661, 256, %s12, [#allocation5], 128, 128, 8
        $region104: #{tpu_custom_call.1} parent=67 // pred_fallthru
          _
        // Predicated region
        $region105: #{tpu_custom_call.1} parent=67 // pred_check
          %p4667 = pneg %p364
        $region106: #{tpu_custom_call.1} parent=67 // pred_check_branch
          %4669 = sbr.rel (%p4667) target = $region108
        $region107: #{tpu_custom_call.1} parent=67 // pred_region
          %s4671 = ssub.s32 1024, 1024
          %4672 = vsyncadd %s4645, %s4671
          %s4673 = smul.addr %s33, 8
          %s4674 = smul.addr %s4673, 128
          %s4675 = scalar_lea.hbm %s13, %s4674
          %s4676 = sshll.u32 %s4648, 4
          %s4677 = int_to_ptr.vmem [resolvable:$true] %s4676
          %4682 = dma.vmem_to_hbm [thread:$0]  %s4677, 1024, %s4675, %s4645, 128, 128, 8
        $region108: #{tpu_custom_call.1} parent=67 // pred_fallthru
          _
        // Predicated region
        $region109: #{tpu_custom_call.1} parent=67 // pred_check
          %p4683 = pneg %p390
        $region110: #{tpu_custom_call.1} parent=67 // pred_check_branch
          %4685 = sbr.rel (%p4683) target = $region112
        $region111: #{tpu_custom_call.1} parent=67 // pred_region
          %s4687 = ssub.s32 1024, 1024
          %4688 = vsyncadd %s4650, %s4687
          %s4689 = smul.addr %s33, 8
          %s4690 = smul.addr %s4689, 128
          %s4691 = scalar_lea.hbm %s14, %s4690
          %s4692 = sshll.u32 %s4653, 4
          %s4693 = int_to_ptr.vmem [resolvable:$true] %s4692
          %4698 = dma.vmem_to_hbm [thread:$0]  %s4693, 1024, %s4691, %s4650, 128, 128, 8
        $region112: #{tpu_custom_call.1} parent=67 // pred_fallthru
          _
        // Predicated region
        $region113: #{tpu_custom_call.1} parent=67 // pred_check
          %p4699 = pneg %p338
        $region114: #{tpu_custom_call.1} parent=67 // pred_check_branch
          %4701 = sbr.rel (%p4699) target = $region116
        $region115: #{tpu_custom_call.1} parent=67 // pred_region
          %4702 = dma.done [#allocation5], 256
        $region116: #{tpu_custom_call.1} parent=67 // pred_fallthru
          _
      $region68: #{tpu_custom_call.1} parent=5 // pred_fallthru
        _
      %p4703 = scmp.le.s32.totalorder 2, %s28
      // Predicated region
      $region117: #{tpu_custom_call.1} parent=5 // pred_check
        %p4704 = pneg %p4703
      $region118: #{tpu_custom_call.1} parent=5 // pred_check_branch
        %4706 = sbr.rel (%p4704) target = $region120
      $region119: #{tpu_custom_call.1} parent=5 // pred_region
        %s4707 = ssub.s32 %s28, 2
        // Predicated region
        $region121: #{tpu_custom_call.1} parent=119 // pred_check
          %p4708 = pneg %p370
        $region122: #{tpu_custom_call.1} parent=119 // pred_check_branch
          %4710 = sbr.rel (%p4708) target = $region124
        $region123: #{tpu_custom_call.1} parent=119 // pred_region
          %s4711 = sand.u32 %s34, 1
          %s4712 = scalar_lea.sflag [#allocation16], %s4711
          %s4713 = sand.u32 %s355, 1
          %s4714 = smul.addr %s4713, 64
          %s4715 = scalar_lea.vmem [#allocation15], %s4714
          %4716 = dma.done %s4712, 1024
        $region124: #{tpu_custom_call.1} parent=119 // pred_fallthru
          _
        // Predicated region
        $region125: #{tpu_custom_call.1} parent=119 // pred_check
          %p4717 = pneg %p396
        $region126: #{tpu_custom_call.1} parent=119 // pred_check_branch
          %4719 = sbr.rel (%p4717) target = $region128
        $region127: #{tpu_custom_call.1} parent=119 // pred_region
          %s4720 = sand.u32 %s34, 1
          %s4721 = scalar_lea.sflag [#allocation16], %s4720
          %s4722 = sand.u32 %s381, 1
          %s4723 = smul.addr %s4722, 64
          %s4724 = scalar_lea.vmem [#allocation17], %s4723
          %4725 = dma.done %s4721, 1024
        $region128: #{tpu_custom_call.1} parent=119 // pred_fallthru
          _
      $region120: #{tpu_custom_call.1} parent=5 // pred_fallthru
        _
    $region6: #{tpu_custom_call.1} parent=1 // loop_footer
      %s32 = sadd.s32 1, %s28
    $region7: #{tpu_custom_call.1} parent=1 // loop_footer_branch
      %27 = sbr.rel target = $region3
    $region8: #{tpu_custom_call.1} parent=1 // loop_exit
      _
    %4726 = vsyncpa [#allocation4], 1
    %s4727 = scalar_lea.sflag [#allocation4], 1
    %4728 = vsyncpa %s4727, 1
    %4729 = vsyncpa [#allocation7], 1
    %4730 = vsyncpa [#allocation10], 1
    %4731 = vsyncpa [#allocation5], 1
    %s4732 = scalar_lea.sflag [#allocation5], 1
    %4733 = vsyncpa %s4732, 1
    %4734 = vsyncpa [#allocation16], 1
    %s4735 = scalar_lea.sflag [#allocation16], 1
    %4736 = vsyncpa %s4735, 1

</llo_original>
